<compile_context>
chip_gen: v7x
topology: tpu7x:2x2x1
jax: 0.10.0
libtpu: 0.0.40
codegen_flags: <defaults>
</compile_context>

<pallas_src>
import jax
import jax.numpy as jnp
from jax import lax
from jax.experimental import pallas as pl
from jax.experimental.pallas import tpu as pltpu

NEG_SLOPE = 0.01        # PyTorch LeakyReLU default
_APPROX_RECIP = True    # set False for exact-division parity with PyTorch


# --------------------------------------------------------------- helpers ----
def _vmem_spec():
    return pl.BlockSpec(memory_space=pltpu.MemorySpace.VMEM)


def _leaky(x):
    return jnp.where(x > 0, x, NEG_SLOPE * x)


def _elu(x):
    return jnp.where(x > 0, x, jnp.exp(jnp.minimum(x, 0.0)) - 1.0)


def _dot(a, b):
    return jnp.dot(a, b, preferred_element_type=jnp.float32)


def _recip(x):
    if _APPROX_RECIP:
        return pl.reciprocal(x, approx=True)
    return 1.0 / x


def _masked_row_softmax(logits, mask):
    """Softmax over axis=1 restricted to mask>0. All-masked rows -> zeros."""
    neg = jnp.float32(-1e30)
    masked = jnp.where(mask > 0, logits, neg)
    m = jnp.max(masked, axis=1, keepdims=True)
    e = jnp.where(mask > 0, jnp.exp(masked - m), 0.0)
    denom = jnp.maximum(jnp.sum(e, axis=1, keepdims=True), 1e-30)
    return e * _recip(denom)


def _gru(x, h, wx, uh, gb):
    """PyTorch nn.GRUCell with concatenated (r|z|n) gate weights.

    wx: [in, 3G], uh: [G, 3G], gb: [2, 3G] (row0 = b_ih, row1 = b_hh).
    """
    G = h.shape[1]
    gi = _dot(x, wx) + gb[0:1, :]
    gh = _dot(h, uh) + gb[1:2, :]
    r = jax.nn.sigmoid(gi[:, :G] + gh[:, :G])
    z = jax.nn.sigmoid(gi[:, G:2 * G] + gh[:, G:2 * G])
    n = jnp.tanh(gi[:, 2 * G:] + r * gh[:, 2 * G:])
    return (1.0 - z) * n + z * h


# ------------------------------------------------ fused GetContext kernel ---
def _get_context_kernel(hv_ref, ef_ref, adj_ref,
                        wnode_ref, e1e_ref, biasg_ref,
                        e2d_ref, e2h_ref, e2b_ref, etw_ref,
                        wx_ref, uh_ref, gb_ref,
                        o_ref):
    N = adj_ref.shape[0]
    Fe = ef_ref.shape[2]
    G = etw_ref.shape[0]

    hv = hv_ref[...]                                              # [N, Fn]
    adj = adj_ref[...]                                            # [N, N]

    biasg = biasg_ref[...]                                        # [3, G]
    pn_b = biasg[0:1, :]
    e1_b = biasg[1:2, :]
    et_b = biasg[2:3, :]

    # project_node + project_edge1(node part) share one matmul on hv.
    node_proj = _dot(hv, wnode_ref[...])                          # [N, 2G]
    hv_new = _leaky(node_proj[:, :G] + pn_b)                      # [N, G]
    src_proj = node_proj[:, G:]                                   # [N, G]

    # project_edge1 edge part (lane-dense [N*N, G] matmul).
    edge_proj = _dot(ef_ref[...].reshape(N * N, Fe),
                     e1e_ref[...]).reshape(N, N, G)               # [N, N, G]
    he1 = _leaky(edge_proj + src_proj[None, :, :] + e1_b)         # [N, N, G]

    # project_edge2 on concat(dst hv_new, he1), decomposed -> scalar logit/edge.
    dst_part = _dot(hv_new, e2d_ref[...]) + e2b_ref[...]          # [N, 1]
    he_part = jnp.sum(he1 * e2h_ref[...], axis=-1)                # [N, N]
    logits = _leaky(dst_part + he_part)                           # [N, N] lane-dense

    attn = _masked_row_softmax(logits, adj)                       # [N, N]
    rowsum = jnp.sum(attn, axis=1, keepdims=True)                 # [N, 1]

    # AttentiveGRU1 with the attention sum distributed through edge_transform:
    # never materialize he1_t = he1 @ et_w  (saves N x MXU FLOPs and N*N*G VMEM).
    w_agg = jnp.sum(attn[:, :, None] * he1, axis=1)               # [N, G]
    context = _elu(_dot(w_agg, etw_ref[...]) + et_b * rowsum)     # [N, G]

    o_ref[...] = jnp.maximum(
        _gru(context, hv_new, wx_ref[...], uh_ref[...], gb_ref[...]), 0.0)


def get_context(node_feats, edge_feats, adj, p):
    N = node_feats.shape[0]
    G = p["et_w"].shape[0]
    assert N % 8 == 0, "pad the graph so N is a multiple of 8 (mask via adj)"
    args = (node_feats, edge_feats, adj, p["wnode"], p["e1e_w"], p["biasg"],
            p["e2d"], p["e2h"], p["e2b"], p["et_w"], p["wx"], p["uh"], p["gb"])
    return pl.pallas_call(
        _get_context_kernel,
        out_shape=jax.ShapeDtypeStruct((N, G), jnp.float32),
        in_specs=[_vmem_spec() for _ in args],
        out_specs=_vmem_spec(),
    )(*args)


# ---------------------------------------------- fused GNN layers (grid=L-1) --
def _gnn_fused_kernel(h_in_ref, adj_ref, wbig_ref, pes_ref, pnb_ref, peb_ref,
                      wx_ref, uh_ref, gb_ref, h_out_ref):
    l = pl.program_id(0)

    @pl.when(l == 0)
    def _():
        h_out_ref[...] = h_in_ref[...]        # node_h becomes resident in VMEM

    h = h_out_ref[...]                                            # [N, G]
    adj = adj_ref[...]
    G = h.shape[1]

    # One matmul gives project_node output and the dst rank-1 logit column.
    proj = _dot(h, wbig_ref[0])                                   # [N, G+1]
    hv_proj = proj[:, :G] + pnb_ref[0]                            # [N, G]
    dst_part = proj[:, G:G + 1]                                   # [N, 1]

    # src part produced lane-dense directly (contraction on feature dim).
    src_row = lax.dot_general(pes_ref[0], h, (((1,), (1,)), ((), ())),
                              preferred_element_type=jnp.float32)  # [1, N]

    logits = _leaky(dst_part + src_row + peb_ref[0])              # [N, N]
    attn = _masked_row_softmax(logits, adj)                       # [N, N]

    context = _elu(_dot(attn, hv_proj))                           # [N, G] (MXU)
    h_out_ref[...] = jnp.maximum(
        _gru(context, h, wx_ref[0], uh_ref[0], gb_ref[0]), 0.0)


def gnn_layers(node_h, adj, p):
    N, G = node_h.shape
    L = p["wbig"].shape[0]

    def fixed(shape):
        return pl.BlockSpec(shape, lambda l: (0,) * len(shape))

    def per_layer(shape):
        return pl.BlockSpec((1,) + shape, lambda l: (l,) + (0,) * len(shape))

    return pl.pallas_call(
        _gnn_fused_kernel,
        out_shape=jax.ShapeDtypeStruct((N, G), jnp.float32),
        grid=(L,),
        in_specs=[
            fixed((N, G)),                 # node_h (read once at l==0)
            fixed((N, N)),                 # adj (resident)
            per_layer((G, G + 1)),         # pn_w | ped_w
            per_layer((1, G)),             # pes_w
            per_layer((1, G)),             # pn_b
            per_layer((1, 1)),             # pe_b
            per_layer((G, 3 * G)),         # GRU Wx
            per_layer((G, 3 * G)),         # GRU Uh
            per_layer((2, 3 * G)),         # GRU biases
        ],
        out_specs=fixed((N, G)),           # resident accumulator across layers
        compiler_params=pltpu.CompilerParams(dimension_semantics=("arbitrary",)),
    )(node_h, adj, p["wbig"], p["pes"], p["pnb"], p["peb"],
      p["wx"], p["uh"], p["gb"])


# -------------------------------- fused readout timesteps + predict (grid=T) --
def _readout_fused_kernel(h_ref, wbig_ref, clg_ref, clb_ref, pnb_ref,
                          wx_ref, uh_ref, gb_ref, prw_ref, prb_ref,
                          pred_ref, g_scr):
    t = pl.program_id(0)
    h = h_ref[...]                                                # [N, G]
    G = h.shape[1]

    @pl.when(t == 0)
    def _():                                                      # dgl.sum_nodes
        g_scr[...] = jnp.sum(h, axis=0, keepdims=True)

    g = g_scr[...]                                                # [1, G]

    # One matmul gives project_nodes output and the node-logit column.
    proj = _dot(h, wbig_ref[0])                                   # [N, G+1]
    hv_p = proj[:, :G] + pnb_ref[0]                               # [N, G]
    z_h = proj[:, G:G + 1]                                        # [N, 1]

    g_relu = jnp.maximum(g, 0.0)
    z_g = _dot(g_relu, clg_ref[0])                                # [1, 1]
    z = _leaky(z_h + z_g + clb_ref[0])                            # [N, 1]

    # softmax over the graph's nodes
    m = jnp.max(z, axis=0, keepdims=True)
    e = jnp.exp(z - m)
    attn = e * _recip(jnp.sum(e, axis=0, keepdims=True))          # [N, 1]

    context = _elu(jnp.sum(attn * hv_p, axis=0, keepdims=True))   # [1, G]
    g_new = _gru(context, g, wx_ref[0], uh_ref[0], gb_ref[0])     # [1, G]
    g_scr[...] = g_new

    @pl.when(t == pl.num_programs(0) - 1)
    def _():                                                      # predict head
        pred_ref[...] = _dot(g_new, prw_ref[...]) + prb_ref[...]


def readout_and_predict(node_h, p, pred_p):
    N, G = node_h.shape
    T = p["wbig"].shape[0]
    pr_w, pr_b = pred_p
    n_tasks = pr_w.shape[1]

    def fixed(shape):
        return pl.BlockSpec(shape, lambda t: (0,) * len(shape))

    def per_t(shape):
        return pl.BlockSpec((1,) + shape, lambda t: (t,) + (0,) * len(shape))

    return pl.pallas_call(
        _readout_fused_kernel,
        out_shape=jax.ShapeDtypeStruct((1, n_tasks), jnp.float32),
        grid=(T,),
        in_specs=[
            fixed((N, G)),                 # node_h (resident)
            per_t((G, G + 1)),             # pn_w | clh_w
            per_t((G, 1)),                 # clg_w
            per_t((1, 1)),                 # cl_b
            per_t((1, G)),                 # pn_b
            per_t((G, 3 * G)),             # GRU Wx
            per_t((G, 3 * G)),             # GRU Uh
            per_t((2, 3 * G)),             # GRU biases
            fixed((G, n_tasks)),           # predict weight
            fixed((1, n_tasks)),           # predict bias
        ],
        out_specs=fixed((1, n_tasks)),
        scratch_shapes=[pltpu.VMEM((1, G), jnp.float32)],   # resident g_feats
        compiler_params=pltpu.CompilerParams(dimension_semantics=("arbitrary",)),
    )(node_h, p["wbig"], p["clg"], p["clb"], p["pnb"],
      p["wx"], p["uh"], p["gb"], pr_w, pr_b)


# ----------------------------------------------------------- parameters -----
def init_params(key, node_feat_size, edge_feat_size, graph_feat_size,
                num_layers, num_timesteps, n_tasks):
    """Raw parameters in PyTorch layout (Linear: [out, in]; GRUCell: [3H, in])."""
    keys = iter(jax.random.split(key, 128))

    def lin(out_f, in_f):
        return (0.1 * jax.random.normal(next(keys), (out_f, in_f), jnp.float32),
                0.1 * jax.random.normal(next(keys), (out_f,), jnp.float32))

    def gru(in_f, hid):
        return {
            "wih": 0.1 * jax.random.normal(next(keys), (3 * hid, in_f), jnp.float32),
            "whh": 0.1 * jax.random.normal(next(keys), (3 * hid, hid), jnp.float32),
            "bih": 0.1 * jax.random.normal(next(keys), (3 * hid,), jnp.float32),
            "bhh": 0.1 * jax.random.normal(next(keys), (3 * hid,), jnp.float32),
        }

    G = graph_feat_size
    return {
        "gc_pn": lin(G, node_feat_size),
        "gc_pe1": lin(G, node_feat_size + edge_feat_size),
        "gc_pe2": lin(1, 2 * G),
        "gc_et": lin(G, G),
        "gc_gru": gru(G, G),
        "gnn": [{"pe": lin(1, 2 * G), "pn": lin(G, G), "gru": gru(G, G)}
                for _ in range(num_layers - 1)],
        "readout": [{"cl": lin(1, 2 * G), "pn": lin(G, G), "gru": gru(G, G)}
                    for _ in range(num_timesteps)],
        "pred": lin(n_tasks, G),
    }


def prepare_params(raw, node_feat_size, edge_feat_size, graph_feat_size):
    """One-time prep: transpose, split concat-Linears, concat GRU gates, stack layers."""
    Fn, G = node_feat_size, graph_feat_size

    def gru_cat(p):
        wx = p["wih"].T                                   # [in, 3G] (r|z|n columns)
        uh = p["whh"].T                                   # [G, 3G]
        gb = jnp.stack([p["bih"], p["bhh"]], axis=0)      # [2, 3G]
        return wx, uh, gb

    # ---- GetContext ----
    pn_w, pn_b = raw["gc_pn"]
    e1_w, e1_b = raw["gc_pe1"]
    e2_w, e2_b = raw["gc_pe2"]
    et_w, et_b = raw["gc_et"]
    wx, uh, gb = gru_cat(raw["gc_gru"])
    gc = {
        "wnode": jnp.concatenate([pn_w.T, e1_w[:, :Fn].T], axis=1),   # [Fn, 2G]
        "e1e_w": e1_w[:, Fn:].T,                                      # [Fe, G]
        "biasg": jnp.stack([pn_b, e1_b, et_b], axis=0),               # [3, G]
        "e2d": e2_w[:, :G].T,                                         # [G, 1]
        "e2h": e2_w[:, G:],                                           # [1, G]
        "e2b": e2_b.reshape(1, 1),
        "et_w": et_w.T,                                               # [G, G]
        "wx": wx, "uh": uh, "gb": gb,
    }

    # ---- GNN layers, stacked on a leading layer dim ----
    if raw["gnn"]:
        wbig, pes, pnb, peb, wxs, uhs, gbs = [], [], [], [], [], [], []
        for lp in raw["gnn"]:
            pe_w, pe_b = lp["pe"]
            lpn_w, lpn_b = lp["pn"]
            wbig.append(jnp.concatenate([lpn_w.T, pe_w[:, :G].T], axis=1))  # [G,G+1]
            pes.append(pe_w[:, G:])                                         # [1, G]
            pnb.append(lpn_b.reshape(1, G))
            peb.append(pe_b.reshape(1, 1))
            a, b, c = gru_cat(lp["gru"])
            wxs.append(a), uhs.append(b), gbs.append(c)
        gnn = {"wbig": jnp.stack(wbig), "pes": jnp.stack(pes),
               "pnb": jnp.stack(pnb), "peb": jnp.stack(peb),
               "wx": jnp.stack(wxs), "uh": jnp.stack(uhs), "gb": jnp.stack(gbs)}
    else:
        gnn = None

    # ---- readout timesteps, stacked on a leading timestep dim ----
    if raw["readout"]:
        wbig, clg, clb, pnb, wxs, uhs, gbs = [], [], [], [], [], [], []
        for rp in raw["readout"]:
            cl_w, cl_b = rp["cl"]
            rpn_w, rpn_b = rp["pn"]
            wbig.append(jnp.concatenate([rpn_w.T, cl_w[:, G:].T], axis=1))  # [G,G+1]
            clg.append(cl_w[:, :G].T)                                       # [G, 1]
            clb.append(cl_b.reshape(1, 1))
            pnb.append(rpn_b.reshape(1, G))
            a, b, c = gru_cat(rp["gru"])
            wxs.append(a), uhs.append(b), gbs.append(c)
        ro = {"wbig": jnp.stack(wbig), "clg": jnp.stack(clg),
              "clb": jnp.stack(clb), "pnb": jnp.stack(pnb),
              "wx": jnp.stack(wxs), "uh": jnp.stack(uhs), "gb": jnp.stack(gbs)}
    else:
        ro = None

    pr_w, pr_b = raw["pred"]
    return {"gc": gc, "gnn": gnn, "readout": ro,
            "pred": (pr_w.T, pr_b.reshape(1, -1))}


# ------------------------------------------------------------ full forward --
def attentive_fp_forward(params, node_feats, edge_feats, adj):
    # TODO(synk): nn.Dropout layers are identity here (inference/eval semantics).
    node_h = get_context(node_feats, edge_feats, adj, params["gc"])   # [N, G]

    if params["gnn"] is not None:                                     # num_layers > 1
        node_h = gnn_layers(node_h, adj, params["gnn"])               # [N, G]

    if params["readout"] is not None:                                 # num_timesteps > 0
        return readout_and_predict(node_h, params["readout"], params["pred"])

    g = jnp.sum(node_h, axis=0, keepdims=True)                        # fallback T == 0
    return g @ params["pred"][0] + params["pred"][1]


# ------------------------------------------------------------------- main ---
if __name__ == "__main__":
    key = jax.random.PRNGKey(0)

    N = 8                      # nodes in the single graph (multiple of 8)
    node_feat_size = 16
    edge_feat_size = 8
    graph_feat_size = 32       # module default is 256 (already 128-lane aligned)
    num_layers = 2
    num_timesteps = 2
    n_tasks = 1

    k_p, k_n, k_e = jax.random.split(key, 3)
    raw = init_params(k_p, node_feat_size, edge_feat_size, graph_feat_size,
                      num_layers, num_timesteps, n_tasks)
    params = prepare_params(raw, node_feat_size, edge_feat_size, graph_feat_size)

    node_feats = jax.random.normal(k_n, (N, node_feat_size), jnp.float32)
    # dense edge features [dst, src, Fe]; entries off the adjacency are ignored.
    edge_feats = jax.random.normal(k_e, (N, N, edge_feat_size), jnp.float32)

    # adjacency: bidirectional ring (every node has 2 incoming edges). adj[dst, src] = 1.
    idx = jnp.arange(N)
    adj = jnp.zeros((N, N), jnp.float32)
    adj = adj.at[idx, (idx + 1) % N].set(1.0)
    adj = adj.at[idx, (idx - 1) % N].set(1.0)
    edge_feats = edge_feats * adj[:, :, None]

    fwd = jax.jit(attentive_fp_forward)
    out = fwd(params, node_feats, edge_feats, adj)
    out = jax.block_until_ready(out)
    assert out.shape == (1, n_tasks)
    print("KERNEL_OK")
</pallas_src>

<mosaic_0001>
module attributes {stable_mosaic.version = 11 : i64} {
  func.func @_get_context_kernel(%arg0: memref<8x16xf32, #tpu.memory_space<vmem>>, %arg1: memref<8x8x8xf32, #tpu.memory_space<vmem>>, %arg2: memref<8x8xf32, #tpu.memory_space<vmem>>, %arg3: memref<16x64xf32, #tpu.memory_space<vmem>>, %arg4: memref<8x32xf32, #tpu.memory_space<vmem>>, %arg5: memref<3x32xf32, #tpu.memory_space<vmem>>, %arg6: memref<32x1xf32, #tpu.memory_space<vmem>>, %arg7: memref<1x32xf32, #tpu.memory_space<vmem>>, %arg8: memref<1x1xf32, #tpu.memory_space<vmem>>, %arg9: memref<32x32xf32, #tpu.memory_space<vmem>>, %arg10: memref<32x96xf32, #tpu.memory_space<vmem>>, %arg11: memref<32x96xf32, #tpu.memory_space<vmem>>, %arg12: memref<2x96xf32, #tpu.memory_space<vmem>>, %arg13: memref<8x32xf32, #tpu.memory_space<vmem>>) attributes {dimension_semantics = [], scalar_prefetch = 0 : i64, scratch_operands = 0 : i64, tpu.core_type = #tpu.core_type<tc>} {
    %c0 = arith.constant 0 : index
    %c0_0 = arith.constant 0 : index
    %0 = vector.load %arg0[%c0, %c0_0] : memref<8x16xf32, #tpu.memory_space<vmem>>, vector<8x16xf32>
    %c0_1 = arith.constant 0 : index
    %c0_2 = arith.constant 0 : index
    %1 = vector.load %arg2[%c0_1, %c0_2] : memref<8x8xf32, #tpu.memory_space<vmem>>, vector<8x8xf32>
    %c0_3 = arith.constant 0 : index
    %c0_4 = arith.constant 0 : index
    %2 = vector.load %arg5[%c0_3, %c0_4] : memref<3x32xf32, #tpu.memory_space<vmem>>, vector<3x32xf32>
    %3 = vector.extract_strided_slice %2 {offsets = [0, 0], sizes = [1, 32], strides = [1, 1]} : vector<3x32xf32> to vector<1x32xf32>
    %4 = vector.extract_strided_slice %2 {offsets = [1, 0], sizes = [1, 32], strides = [1, 1]} : vector<3x32xf32> to vector<1x32xf32>
    %5 = vector.extract_strided_slice %2 {offsets = [2, 0], sizes = [1, 32], strides = [1, 1]} : vector<3x32xf32> to vector<1x32xf32>
    %c0_5 = arith.constant 0 : index
    %c0_6 = arith.constant 0 : index
    %6 = vector.load %arg3[%c0_5, %c0_6] : memref<16x64xf32, #tpu.memory_space<vmem>>, vector<16x64xf32>
    %cst = arith.constant dense<0.000000e+00> : vector<8x64xf32>
    %7 = tpu.matmul %0, %6, %cst {dimension_numbers = #tpu.dot_dimension_numbers<[1], [0], [0], [1], [0, 0, 1, 1], [], []>} : vector<8x16xf32>, vector<16x64xf32>, vector<8x64xf32> -> vector<8x64xf32>
    %8 = vector.extract_strided_slice %7 {offsets = [0, 0], sizes = [8, 32], strides = [1, 1]} : vector<8x64xf32> to vector<8x32xf32>
    %9 = vector.broadcast %3 : vector<1x32xf32> to vector<8x32xf32>
    %10 = arith.addf %8, %9 : vector<8x32xf32>
    %cst_7 = arith.constant 0.000000e+00 : f32
    %11 = vector.broadcast %cst_7 : f32 to vector<8x32xf32>
    %12 = arith.cmpf ogt, %10, %11 : vector<8x32xf32>
    %cst_8 = arith.constant 0.00999999977 : f32
    %13 = vector.broadcast %cst_8 : f32 to vector<8x32xf32>
    %14 = arith.mulf %13, %10 : vector<8x32xf32>
    %15 = arith.select %12, %10, %14 : vector<8x32xi1>, vector<8x32xf32>
    %16 = vector.extract_strided_slice %7 {offsets = [0, 32], sizes = [8, 32], strides = [1, 1]} : vector<8x64xf32> to vector<8x32xf32>
    %c0_9 = arith.constant 0 : index
    %c0_10 = arith.constant 0 : index
    %c0_11 = arith.constant 0 : index
    %17 = vector.load %arg1[%c0_9, %c0_10, %c0_11] : memref<8x8x8xf32, #tpu.memory_space<vmem>>, vector<8x8x8xf32>
    %18 = vector.shape_cast %17 : vector<8x8x8xf32> to vector<64x8xf32>
    %c0_12 = arith.constant 0 : index
    %c0_13 = arith.constant 0 : index
    %19 = vector.load %arg4[%c0_12, %c0_13] : memref<8x32xf32, #tpu.memory_space<vmem>>, vector<8x32xf32>
    %cst_14 = arith.constant dense<0.000000e+00> : vector<64x32xf32>
    %20 = tpu.matmul %18, %19, %cst_14 {dimension_numbers = #tpu.dot_dimension_numbers<[1], [0], [0], [1], [0, 0, 1, 1], [], []>} : vector<64x8xf32>, vector<8x32xf32>, vector<64x32xf32> -> vector<64x32xf32>
    %21 = vector.shape_cast %20 : vector<64x32xf32> to vector<8x8x32xf32>
    %22 = vector.shape_cast %16 : vector<8x32xf32> to vector<1x8x32xf32>
    %23 = vector.broadcast %22 : vector<1x8x32xf32> to vector<8x8x32xf32>
    %24 = arith.addf %21, %23 : vector<8x8x32xf32>
    %25 = vector.shape_cast %4 : vector<1x32xf32> to vector<1x1x32xf32>
    %26 = vector.broadcast %25 : vector<1x1x32xf32> to vector<8x8x32xf32>
    %27 = arith.addf %24, %26 : vector<8x8x32xf32>
    %cst_15 = arith.constant 0.000000e+00 : f32
    %28 = vector.broadcast %cst_15 : f32 to vector<8x8x32xf32>
    %29 = arith.cmpf ogt, %27, %28 : vector<8x8x32xf32>
    %cst_16 = arith.constant 0.00999999977 : f32
    %30 = vector.broadcast %cst_16 : f32 to vector<8x8x32xf32>
    %31 = arith.mulf %30, %27 : vector<8x8x32xf32>
    %32 = arith.select %29, %27, %31 : vector<8x8x32xi1>, vector<8x8x32xf32>
    %c0_17 = arith.constant 0 : index
    %c0_18 = arith.constant 0 : index
    %33 = vector.load %arg6[%c0_17, %c0_18] : memref<32x1xf32, #tpu.memory_space<vmem>>, vector<32x1xf32>
    %cst_19 = arith.constant dense<0.000000e+00> : vector<8x1xf32>
    %34 = tpu.matmul %15, %33, %cst_19 {dimension_numbers = #tpu.dot_dimension_numbers<[1], [0], [0], [1], [0, 0, 1, 1], [], []>} : vector<8x32xf32>, vector<32x1xf32>, vector<8x1xf32> -> vector<8x1xf32>
    %c0_20 = arith.constant 0 : index
    %c0_21 = arith.constant 0 : index
    %35 = vector.load %arg8[%c0_20, %c0_21] : memref<1x1xf32, #tpu.memory_space<vmem>>, vector<1x1xf32>
    %36 = vector.broadcast %35 : vector<1x1xf32> to vector<8x1xf32>
    %37 = arith.addf %34, %36 : vector<8x1xf32>
    %c0_22 = arith.constant 0 : index
    %c0_23 = arith.constant 0 : index
    %38 = vector.load %arg7[%c0_22, %c0_23] : memref<1x32xf32, #tpu.memory_space<vmem>>, vector<1x32xf32>
    %39 = vector.shape_cast %38 : vector<1x32xf32> to vector<1x1x32xf32>
    %40 = vector.broadcast %39 : vector<1x1x32xf32> to vector<8x8x32xf32>
    %41 = arith.mulf %32, %40 : vector<8x8x32xf32>
    %cst_24 = arith.constant dense<0.000000e+00> : vector<8x8xf32>
    %42 = vector.multi_reduction <add>, %41, %cst_24 [2] : vector<8x8x32xf32> to vector<8x8xf32>
    %43 = vector.broadcast %37 : vector<8x1xf32> to vector<8x8xf32>
    %44 = arith.addf %43, %42 : vector<8x8xf32>
    %cst_25 = arith.constant 0.000000e+00 : f32
    %45 = vector.broadcast %cst_25 : f32 to vector<8x8xf32>
    %46 = arith.cmpf ogt, %44, %45 : vector<8x8xf32>
    %cst_26 = arith.constant 0.00999999977 : f32
    %47 = vector.broadcast %cst_26 : f32 to vector<8x8xf32>
    %48 = arith.mulf %47, %44 : vector<8x8xf32>
    %49 = arith.select %46, %44, %48 : vector<8x8xi1>, vector<8x8xf32>
    %cst_27 = arith.constant 0.000000e+00 : f32
    %50 = vector.broadcast %cst_27 : f32 to vector<8x8xf32>
    %51 = arith.cmpf ogt, %1, %50 : vector<8x8xf32>
    %cst_28 = arith.constant -1.000000e+30 : f32
    %52 = vector.broadcast %cst_28 : f32 to vector<8x8xf32>
    %53 = arith.select %51, %49, %52 : vector<8x8xi1>, vector<8x8xf32>
    %cst_29 = arith.constant dense<0xFF800000> : vector<8xf32>
    %54 = vector.multi_reduction <maximumf>, %53, %cst_29 [1] : vector<8x8xf32> to vector<8xf32>
    %55 = vector.shape_cast %54 : vector<8xf32> to vector<8x1xf32>
    %cst_30 = arith.constant 0.000000e+00 : f32
    %56 = vector.broadcast %cst_30 : f32 to vector<8x8xf32>
    %57 = arith.cmpf ogt, %1, %56 : vector<8x8xf32>
    %58 = vector.broadcast %55 : vector<8x1xf32> to vector<8x8xf32>
    %59 = arith.subf %53, %58 : vector<8x8xf32>
    %60 = math.exp %59 : vector<8x8xf32>
    %cst_31 = arith.constant 0.000000e+00 : f32
    %61 = vector.broadcast %cst_31 : f32 to vector<8x8xf32>
    %62 = arith.select %57, %60, %61 : vector<8x8xi1>, vector<8x8xf32>
    %cst_32 = arith.constant dense<0.000000e+00> : vector<8xf32>
    %63 = vector.multi_reduction <add>, %62, %cst_32 [1] : vector<8x8xf32> to vector<8xf32>
    %64 = vector.shape_cast %63 : vector<8xf32> to vector<8x1xf32>
    %cst_33 = arith.constant 1.000000e-30 : f32
    %65 = vector.broadcast %cst_33 : f32 to vector<8x1xf32>
    %66 = arith.maximumf %64, %65 : vector<8x1xf32>
    %67 = tpu.reciprocal %66 {approx = true} : vector<8x1xf32> -> vector<8x1xf32>
    %68 = vector.broadcast %67 : vector<8x1xf32> to vector<8x8xf32>
    %69 = arith.mulf %62, %68 : vector<8x8xf32>
    %cst_34 = arith.constant dense<0.000000e+00> : vector<8xf32>
    %70 = vector.multi_reduction <add>, %69, %cst_34 [1] : vector<8x8xf32> to vector<8xf32>
    %71 = vector.shape_cast %70 : vector<8xf32> to vector<8x1xf32>
    %72 = vector.shape_cast %69 : vector<8x8xf32> to vector<8x8x1xf32>
    %73 = vector.broadcast %72 : vector<8x8x1xf32> to vector<8x8x32xf32>
    %74 = arith.mulf %73, %32 : vector<8x8x32xf32>
    %cst_35 = arith.constant dense<0.000000e+00> : vector<8x32xf32>
    %75 = vector.multi_reduction <add>, %74, %cst_35 [1] : vector<8x8x32xf32> to vector<8x32xf32>
    %c0_36 = arith.constant 0 : index
    %c0_37 = arith.constant 0 : index
    %76 = vector.load %arg9[%c0_36, %c0_37] : memref<32x32xf32, #tpu.memory_space<vmem>>, vector<32x32xf32>
    %cst_38 = arith.constant dense<0.000000e+00> : vector<8x32xf32>
    %77 = tpu.matmul %75, %76, %cst_38 {dimension_numbers = #tpu.dot_dimension_numbers<[1], [0], [0], [1], [0, 0, 1, 1], [], []>} : vector<8x32xf32>, vector<32x32xf32>, vector<8x32xf32> -> vector<8x32xf32>
    %78 = vector.broadcast %5 : vector<1x32xf32> to vector<8x32xf32>
    %79 = vector.broadcast %71 : vector<8x1xf32> to vector<8x32xf32>
    %80 = arith.mulf %78, %79 : vector<8x32xf32>
    %81 = arith.addf %77, %80 : vector<8x32xf32>
    %cst_39 = arith.constant 0.000000e+00 : f32
    %82 = vector.broadcast %cst_39 : f32 to vector<8x32xf32>
    %83 = arith.cmpf ogt, %81, %82 : vector<8x32xf32>
    %cst_40 = arith.constant 0.000000e+00 : f32
    %84 = vector.broadcast %cst_40 : f32 to vector<8x32xf32>
    %85 = arith.minimumf %81, %84 : vector<8x32xf32>
    %86 = math.exp %85 : vector<8x32xf32>
    %cst_41 = arith.constant 1.000000e+00 : f32
    %87 = vector.broadcast %cst_41 : f32 to vector<8x32xf32>
    %88 = arith.subf %86, %87 : vector<8x32xf32>
    %89 = arith.select %83, %81, %88 : vector<8x32xi1>, vector<8x32xf32>
    %c0_42 = arith.constant 0 : index
    %c0_43 = arith.constant 0 : index
    %90 = vector.load %arg10[%c0_42, %c0_43] : memref<32x96xf32, #tpu.memory_space<vmem>>, vector<32x96xf32>
    %c0_44 = arith.constant 0 : index
    %c0_45 = arith.constant 0 : index
    %91 = vector.load %arg11[%c0_44, %c0_45] : memref<32x96xf32, #tpu.memory_space<vmem>>, vector<32x96xf32>
    %c0_46 = arith.constant 0 : index
    %c0_47 = arith.constant 0 : index
    %92 = vector.load %arg12[%c0_46, %c0_47] : memref<2x96xf32, #tpu.memory_space<vmem>>, vector<2x96xf32>
    %cst_48 = arith.constant dense<0.000000e+00> : vector<8x96xf32>
    %93 = tpu.matmul %89, %90, %cst_48 {dimension_numbers = #tpu.dot_dimension_numbers<[1], [0], [0], [1], [0, 0, 1, 1], [], []>} : vector<8x32xf32>, vector<32x96xf32>, vector<8x96xf32> -> vector<8x96xf32>
    %94 = vector.extract_strided_slice %92 {offsets = [0, 0], sizes = [1, 96], strides = [1, 1]} : vector<2x96xf32> to vector<1x96xf32>
    %95 = vector.broadcast %94 : vector<1x96xf32> to vector<8x96xf32>
    %96 = arith.addf %93, %95 : vector<8x96xf32>
    %cst_49 = arith.constant dense<0.000000e+00> : vector<8x96xf32>
    %97 = tpu.matmul %15, %91, %cst_49 {dimension_numbers = #tpu.dot_dimension_numbers<[1], [0], [0], [1], [0, 0, 1, 1], [], []>} : vector<8x32xf32>, vector<32x96xf32>, vector<8x96xf32> -> vector<8x96xf32>
    %98 = vector.extract_strided_slice %92 {offsets = [1, 0], sizes = [1, 96], strides = [1, 1]} : vector<2x96xf32> to vector<1x96xf32>
    %99 = vector.broadcast %98 : vector<1x96xf32> to vector<8x96xf32>
    %100 = arith.addf %97, %99 : vector<8x96xf32>
    %101 = vector.extract_strided_slice %96 {offsets = [0, 0], sizes = [8, 32], strides = [1, 1]} : vector<8x96xf32> to vector<8x32xf32>
    %102 = vector.extract_strided_slice %100 {offsets = [0, 0], sizes = [8, 32], strides = [1, 1]} : vector<8x96xf32> to vector<8x32xf32>
    %103 = arith.addf %101, %102 : vector<8x32xf32>
    %104 = arith.negf %103 : vector<8x32xf32>
    %105 = math.exp %104 : vector<8x32xf32>
    %cst_50 = arith.constant 1.000000e+00 : f32
    %106 = vector.broadcast %cst_50 : f32 to vector<8x32xf32>
    %107 = arith.addf %106, %105 : vector<8x32xf32>
    %108 = arith.divf %106, %107 : vector<8x32xf32>
    %109 = vector.extract_strided_slice %96 {offsets = [0, 32], sizes = [8, 32], strides = [1, 1]} : vector<8x96xf32> to vector<8x32xf32>
    %110 = vector.extract_strided_slice %100 {offsets = [0, 32], sizes = [8, 32], strides = [1, 1]} : vector<8x96xf32> to vector<8x32xf32>
    %111 = arith.addf %109, %110 : vector<8x32xf32>
    %112 = arith.negf %111 : vector<8x32xf32>
    %113 = math.exp %112 : vector<8x32xf32>
    %cst_51 = arith.constant 1.000000e+00 : f32
    %114 = vector.broadcast %cst_51 : f32 to vector<8x32xf32>
    %115 = arith.addf %114, %113 : vector<8x32xf32>
    %116 = arith.divf %114, %115 : vector<8x32xf32>
    %117 = vector.extract_strided_slice %96 {offsets = [0, 64], sizes = [8, 32], strides = [1, 1]} : vector<8x96xf32> to vector<8x32xf32>
    %118 = vector.extract_strided_slice %100 {offsets = [0, 64], sizes = [8, 32], strides = [1, 1]} : vector<8x96xf32> to vector<8x32xf32>
    %119 = arith.mulf %108, %118 : vector<8x32xf32>
    %120 = arith.addf %117, %119 : vector<8x32xf32>
    %121 = math.tanh %120 : vector<8x32xf32>
    %cst_52 = arith.constant 1.000000e+00 : f32
    %122 = vector.broadcast %cst_52 : f32 to vector<8x32xf32>
    %123 = arith.subf %122, %116 : vector<8x32xf32>
    %124 = arith.mulf %123, %121 : vector<8x32xf32>
    %125 = arith.mulf %116, %15 : vector<8x32xf32>
    %126 = arith.addf %124, %125 : vector<8x32xf32>
    %cst_53 = arith.constant 0.000000e+00 : f32
    %127 = vector.broadcast %cst_53 : f32 to vector<8x32xf32>
    %128 = arith.maximumf %126, %127 : vector<8x32xf32>
    %c0_54 = arith.constant 0 : index
    %c0_55 = arith.constant 0 : index
    %129 = vector.load %arg13[%c0_54, %c0_55] : memref<8x32xf32, #tpu.memory_space<vmem>>, vector<8x32xf32>
    tpu.vector_store %arg13[%c0_54, %c0_55], %128 {strides = array<i32>} : memref<8x32xf32, #tpu.memory_space<vmem>>, vector<8x32xf32>,
    return
  }
}

module attributes {stable_mosaic.version = 11 : i64} {
  func.func @_gnn_fused_kernel(%arg0: i32, %arg1: memref<8x32xf32, #tpu.memory_space<vmem>>, %arg2: memref<8x8xf32, #tpu.memory_space<vmem>>, %arg3: memref<1x32x33xf32, #tpu.memory_space<vmem>>, %arg4: memref<1x1x32xf32, #tpu.memory_space<vmem>>, %arg5: memref<1x1x32xf32, #tpu.memory_space<vmem>>, %arg6: memref<1x1x1xf32, #tpu.memory_space<vmem>>, %arg7: memref<1x32x96xf32, #tpu.memory_space<vmem>>, %arg8: memref<1x32x96xf32, #tpu.memory_space<vmem>>, %arg9: memref<1x2x96xf32, #tpu.memory_space<vmem>>, %arg10: memref<8x32xf32, #tpu.memory_space<vmem>>) attributes {dimension_semantics = [#tpu.dimension_semantics<arbitrary>], iteration_bounds = array<i64: 1>, scalar_prefetch = 0 : i64, scratch_operands = 0 : i64, tpu.core_type = #tpu.core_type<tc>, window_params = [{pipeline_mode = #tpu.pipeline_mode<synchronous>, transform_indices = @transform_0, window_bounds = array<i64: 8, 32>}, {pipeline_mode = #tpu.pipeline_mode<synchronous>, transform_indices = @transform_1, window_bounds = array<i64: 8, 8>}, {transform_indices = @transform_2, window_bounds = array<i64: 1, 32, 33>}, {transform_indices = @transform_3, window_bounds = array<i64: 1, 1, 32>}, {transform_indices = @transform_4, window_bounds = array<i64: 1, 1, 32>}, {transform_indices = @transform_5, window_bounds = array<i64: 1, 1, 1>}, {transform_indices = @transform_6, window_bounds = array<i64: 1, 32, 96>}, {transform_indices = @transform_7, window_bounds = array<i64: 1, 32, 96>}, {transform_indices = @transform_8, window_bounds = array<i64: 1, 2, 96>}, {pipeline_mode = #tpu.pipeline_mode<synchronous>, transform_indices = @transform_9, window_bounds = array<i64: 8, 32>}]} {
    %c0_i32 = arith.constant 0 : i32
    %0 = arith.cmpi eq, %arg0, %c0_i32 : i32
    %1 = arith.extui %0 : i1 to i32
    %c0_i32_0 = arith.constant 0 : i32
    %2 = arith.cmpi ne, %1, %c0_i32_0 : i32
    scf.if %2 {
      %c0_47 = arith.constant 0 : index
      %c0_48 = arith.constant 0 : index
      %101 = vector.load %arg1[%c0_47, %c0_48] : memref<8x32xf32, #tpu.memory_space<vmem>>, vector<8x32xf32>
      %c0_49 = arith.constant 0 : index
      %c0_50 = arith.constant 0 : index
      %102 = vector.load %arg10[%c0_49, %c0_50] : memref<8x32xf32, #tpu.memory_space<vmem>>, vector<8x32xf32>
      tpu.vector_store %arg10[%c0_49, %c0_50], %101 {strides = array<i32>} : memref<8x32xf32, #tpu.memory_space<vmem>>, vector<8x32xf32>,
    } else {
    }
    %c0 = arith.constant 0 : index
    %c0_1 = arith.constant 0 : index
    %3 = vector.load %arg10[%c0, %c0_1] : memref<8x32xf32, #tpu.memory_space<vmem>>, vector<8x32xf32>
    %c0_2 = arith.constant 0 : index
    %c0_3 = arith.constant 0 : index
    %4 = vector.load %arg2[%c0_2, %c0_3] : memref<8x8xf32, #tpu.memory_space<vmem>>, vector<8x8xf32>
    %c0_4 = arith.constant 0 : index
    %c0_5 = arith.constant 0 : index
    %c0_6 = arith.constant 0 : index
    %5 = vector.load %arg3[%c0_4, %c0_5, %c0_6] : memref<1x32x33xf32, #tpu.memory_space<vmem>>, vector<1x32x33xf32>
    %6 = vector.shape_cast %5 : vector<1x32x33xf32> to vector<32x33xf32>
    %cst = arith.constant dense<0.000000e+00> : vector<8x33xf32>
    %7 = tpu.matmul %3, %6, %cst {dimension_numbers = #tpu.dot_dimension_numbers<[1], [0], [0], [1], [0, 0, 1, 1], [], []>} : vector<8x32xf32>, vector<32x33xf32>, vector<8x33xf32> -> vector<8x33xf32>
    %8 = vector.extract_strided_slice %7 {offsets = [0, 0], sizes = [8, 32], strides = [1, 1]} : vector<8x33xf32> to vector<8x32xf32>
    %c0_7 = arith.constant 0 : index
    %c0_8 = arith.constant 0 : index
    %c0_9 = arith.constant 0 : index
    %9 = vector.load %arg5[%c0_7, %c0_8, %c0_9] : memref<1x1x32xf32, #tpu.memory_space<vmem>>, vector<1x1x32xf32>
    %10 = vector.shape_cast %9 : vector<1x1x32xf32> to vector<1x32xf32>
    %11 = vector.broadcast %10 : vector<1x32xf32> to vector<8x32xf32>
    %12 = arith.addf %8, %11 : vector<8x32xf32>
    %13 = vector.extract_strided_slice %7 {offsets = [0, 32], sizes = [8, 1], strides = [1, 1]} : vector<8x33xf32> to vector<8x1xf32>
    %c0_10 = arith.constant 0 : index
    %c0_11 = arith.constant 0 : index
    %c0_12 = arith.constant 0 : index
    %14 = vector.load %arg4[%c0_10, %c0_11, %c0_12] : memref<1x1x32xf32, #tpu.memory_space<vmem>>, vector<1x1x32xf32>
    %15 = vector.shape_cast %14 : vector<1x1x32xf32> to vector<1x32xf32>
    %cst_13 = arith.constant dense<0.000000e+00> : vector<1x8xf32>
    %16 = tpu.matmul %15, %3, %cst_13 {dimension_numbers = #tpu.dot_dimension_numbers<[1], [1], [0], [0], [0, 0, 1, 0], [], []>} : vector<1x32xf32>, vector<8x32xf32>, vector<1x8xf32> -> vector<1x8xf32>
    %17 = vector.broadcast %13 : vector<8x1xf32> to vector<8x8xf32>
    %18 = vector.broadcast %16 : vector<1x8xf32> to vector<8x8xf32>
    %19 = arith.addf %17, %18 : vector<8x8xf32>
    %c0_14 = arith.constant 0 : index
    %c0_15 = arith.constant 0 : index
    %c0_16 = arith.constant 0 : index
    %20 = vector.load %arg6[%c0_14, %c0_15, %c0_16] : memref<1x1x1xf32, #tpu.memory_space<vmem>>, vector<1x1x1xf32>
    %21 = vector.shape_cast %20 : vector<1x1x1xf32> to vector<1x1xf32>
    %22 = vector.broadcast %21 : vector<1x1xf32> to vector<8x8xf32>
    %23 = arith.addf %19, %22 : vector<8x8xf32>
    %cst_17 = arith.constant 0.000000e+00 : f32
    %24 = vector.broadcast %cst_17 : f32 to vector<8x8xf32>
    %25 = arith.cmpf ogt, %23, %24 : vector<8x8xf32>
    %cst_18 = arith.constant 0.00999999977 : f32
    %26 = vector.broadcast %cst_18 : f32 to vector<8x8xf32>
    %27 = arith.mulf %26, %23 : vector<8x8xf32>
    %28 = arith.select %25, %23, %27 : vector<8x8xi1>, vector<8x8xf32>
    %cst_19 = arith.constant 0.000000e+00 : f32
    %29 = vector.broadcast %cst_19 : f32 to vector<8x8xf32>
    %30 = arith.cmpf ogt, %4, %29 : vector<8x8xf32>
    %cst_20 = arith.constant -1.000000e+30 : f32
    %31 = vector.broadcast %cst_20 : f32 to vector<8x8xf32>
    %32 = arith.select %30, %28, %31 : vector<8x8xi1>, vector<8x8xf32>
    %cst_21 = arith.constant dense<0xFF800000> : vector<8xf32>
    %33 = vector.multi_reduction <maximumf>, %32, %cst_21 [1] : vector<8x8xf32> to vector<8xf32>
    %34 = vector.shape_cast %33 : vector<8xf32> to vector<8x1xf32>
    %cst_22 = arith.constant 0.000000e+00 : f32
    %35 = vector.broadcast %cst_22 : f32 to vector<8x8xf32>
    %36 = arith.cmpf ogt, %4, %35 : vector<8x8xf32>
    %37 = vector.broadcast %34 : vector<8x1xf32> to vector<8x8xf32>
    %38 = arith.subf %32, %37 : vector<8x8xf32>
    %39 = math.exp %38 : vector<8x8xf32>
    %cst_23 = arith.constant 0.000000e+00 : f32
    %40 = vector.broadcast %cst_23 : f32 to vector<8x8xf32>
    %41 = arith.select %36, %39, %40 : vector<8x8xi1>, vector<8x8xf32>
    %cst_24 = arith.constant dense<0.000000e+00> : vector<8xf32>
    %42 = vector.multi_reduction <add>, %41, %cst_24 [1] : vector<8x8xf32> to vector<8xf32>
    %43 = vector.shape_cast %42 : vector<8xf32> to vector<8x1xf32>
    %cst_25 = arith.constant 1.000000e-30 : f32
    %44 = vector.broadcast %cst_25 : f32 to vector<8x1xf32>
    %45 = arith.maximumf %43, %44 : vector<8x1xf32>
    %46 = tpu.reciprocal %45 {approx = true} : vector<8x1xf32> -> vector<8x1xf32>
    %47 = vector.broadcast %46 : vector<8x1xf32> to vector<8x8xf32>
    %48 = arith.mulf %41, %47 : vector<8x8xf32>
    %cst_26 = arith.constant dense<0.000000e+00> : vector<8x32xf32>
    %49 = tpu.matmul %48, %12, %cst_26 {dimension_numbers = #tpu.dot_dimension_numbers<[1], [0], [0], [1], [0, 0, 1, 1], [], []>} : vector<8x8xf32>, vector<8x32xf32>, vector<8x32xf32> -> vector<8x32xf32>
    %cst_27 = arith.constant 0.000000e+00 : f32
    %50 = vector.broadcast %cst_27 : f32 to vector<8x32xf32>
    %51 = arith.cmpf ogt, %49, %50 : vector<8x32xf32>
    %cst_28 = arith.constant 0.000000e+00 : f32
    %52 = vector.broadcast %cst_28 : f32 to vector<8x32xf32>
    %53 = arith.minimumf %49, %52 : vector<8x32xf32>
    %54 = math.exp %53 : vector<8x32xf32>
    %cst_29 = arith.constant 1.000000e+00 : f32
    %55 = vector.broadcast %cst_29 : f32 to vector<8x32xf32>
    %56 = arith.subf %54, %55 : vector<8x32xf32>
    %57 = arith.select %51, %49, %56 : vector<8x32xi1>, vector<8x32xf32>
    %c0_30 = arith.constant 0 : index
    %c0_31 = arith.constant 0 : index
    %c0_32 = arith.constant 0 : index
    %58 = vector.load %arg7[%c0_30, %c0_31, %c0_32] : memref<1x32x96xf32, #tpu.memory_space<vmem>>, vector<1x32x96xf32>
    %59 = vector.shape_cast %58 : vector<1x32x96xf32> to vector<32x96xf32>
    %c0_33 = arith.constant 0 : index
    %c0_34 = arith.constant 0 : index
    %c0_35 = arith.constant 0 : index
    %60 = vector.load %arg8[%c0_33, %c0_34, %c0_35] : memref<1x32x96xf32, #tpu.memory_space<vmem>>, vector<1x32x96xf32>
    %61 = vector.shape_cast %60 : vector<1x32x96xf32> to vector<32x96xf32>
    %c0_36 = arith.constant 0 : index
    %c0_37 = arith.constant 0 : index
    %c0_38 = arith.constant 0 : index
    %62 = vector.load %arg9[%c0_36, %c0_37, %c0_38] : memref<1x2x96xf32, #tpu.memory_space<vmem>>, vector<1x2x96xf32>
    %63 = vector.shape_cast %62 : vector<1x2x96xf32> to vector<2x96xf32>
    %cst_39 = arith.constant dense<0.000000e+00> : vector<8x96xf32>
    %64 = tpu.matmul %57, %59, %cst_39 {dimension_numbers = #tpu.dot_dimension_numbers<[1], [0], [0], [1], [0, 0, 1, 1], [], []>} : vector<8x32xf32>, vector<32x96xf32>, vector<8x96xf32> -> vector<8x96xf32>
    %65 = vector.extract_strided_slice %63 {offsets = [0, 0], sizes = [1, 96], strides = [1, 1]} : vector<2x96xf32> to vector<1x96xf32>
    %66 = vector.broadcast %65 : vector<1x96xf32> to vector<8x96xf32>
    %67 = arith.addf %64, %66 : vector<8x96xf32>
    %cst_40 = arith.constant dense<0.000000e+00> : vector<8x96xf32>
    %68 = tpu.matmul %3, %61, %cst_40 {dimension_numbers = #tpu.dot_dimension_numbers<[1], [0], [0], [1], [0, 0, 1, 1], [], []>} : vector<8x32xf32>, vector<32x96xf32>, vector<8x96xf32> -> vector<8x96xf32>
    %69 = vector.extract_strided_slice %63 {offsets = [1, 0], sizes = [1, 96], strides = [1, 1]} : vector<2x96xf32> to vector<1x96xf32>
    %70 = vector.broadcast %69 : vector<1x96xf32> to vector<8x96xf32>
    %71 = arith.addf %68, %70 : vector<8x96xf32>
    %72 = vector.extract_strided_slice %67 {offsets = [0, 0], sizes = [8, 32], strides = [1, 1]} : vector<8x96xf32> to vector<8x32xf32>
    %73 = vector.extract_strided_slice %71 {offsets = [0, 0], sizes = [8, 32], strides = [1, 1]} : vector<8x96xf32> to vector<8x32xf32>
    %74 = arith.addf %72, %73 : vector<8x32xf32>
    %75 = arith.negf %74 : vector<8x32xf32>
    %76 = math.exp %75 : vector<8x32xf32>
    %cst_41 = arith.constant 1.000000e+00 : f32
    %77 = vector.broadcast %cst_41 : f32 to vector<8x32xf32>
    %78 = arith.addf %77, %76 : vector<8x32xf32>
    %79 = arith.divf %77, %78 : vector<8x32xf32>
    %80 = vector.extract_strided_slice %67 {offsets = [0, 32], sizes = [8, 32], strides = [1, 1]} : vector<8x96xf32> to vector<8x32xf32>
    %81 = vector.extract_strided_slice %71 {offsets = [0, 32], sizes = [8, 32], strides = [1, 1]} : vector<8x96xf32> to vector<8x32xf32>
    %82 = arith.addf %80, %81 : vector<8x32xf32>
    %83 = arith.negf %82 : vector<8x32xf32>
    %84 = math.exp %83 : vector<8x32xf32>
    %cst_42 = arith.constant 1.000000e+00 : f32
    %85 = vector.broadcast %cst_42 : f32 to vector<8x32xf32>
    %86 = arith.addf %85, %84 : vector<8x32xf32>
    %87 = arith.divf %85, %86 : vector<8x32xf32>
    %88 = vector.extract_strided_slice %67 {offsets = [0, 64], sizes = [8, 32], strides = [1, 1]} : vector<8x96xf32> to vector<8x32xf32>
    %89 = vector.extract_strided_slice %71 {offsets = [0, 64], sizes = [8, 32], strides = [1, 1]} : vector<8x96xf32> to vector<8x32xf32>
    %90 = arith.mulf %79, %89 : vector<8x32xf32>
    %91 = arith.addf %88, %90 : vector<8x32xf32>
    %92 = math.tanh %91 : vector<8x32xf32>
    %cst_43 = arith.constant 1.000000e+00 : f32
    %93 = vector.broadcast %cst_43 : f32 to vector<8x32xf32>
    %94 = arith.subf %93, %87 : vector<8x32xf32>
    %95 = arith.mulf %94, %92 : vector<8x32xf32>
    %96 = arith.mulf %87, %3 : vector<8x32xf32>
    %97 = arith.addf %95, %96 : vector<8x32xf32>
    %cst_44 = arith.constant 0.000000e+00 : f32
    %98 = vector.broadcast %cst_44 : f32 to vector<8x32xf32>
    %99 = arith.maximumf %97, %98 : vector<8x32xf32>
    %c0_45 = arith.constant 0 : index
    %c0_46 = arith.constant 0 : index
    %100 = vector.load %arg10[%c0_45, %c0_46] : memref<8x32xf32, #tpu.memory_space<vmem>>, vector<8x32xf32>
    tpu.vector_store %arg10[%c0_45, %c0_46], %99 {strides = array<i32>} : memref<8x32xf32, #tpu.memory_space<vmem>>, vector<8x32xf32>,
    return
  }
  func.func @transform_0(%arg0: i32) -> (i32, i32) {
    %c0_i32 = arith.constant 0 : i32
    %c0_i32_0 = arith.constant 0 : i32
    %c0_i32_1 = arith.constant 0 : i32
    return %c0_i32, %c0_i32_0 : i32, i32
  }
  func.func @transform_1(%arg0: i32) -> (i32, i32) {
    %c0_i32 = arith.constant 0 : i32
    %c0_i32_0 = arith.constant 0 : i32
    %c0_i32_1 = arith.constant 0 : i32
    return %c0_i32, %c0_i32_0 : i32, i32
  }
  func.func @transform_2(%arg0: i32) -> (i32, i32, i32) {
    %c0_i32 = arith.constant 0 : i32
    %c0_i32_0 = arith.constant 0 : i32
    %c0_i32_1 = arith.constant 0 : i32
    return %arg0, %c0_i32, %c0_i32_0 : i32, i32, i32
  }
  func.func @transform_3(%arg0: i32) -> (i32, i32, i32) {
    %c0_i32 = arith.constant 0 : i32
    %c0_i32_0 = arith.constant 0 : i32
    %c0_i32_1 = arith.constant 0 : i32
    return %arg0, %c0_i32, %c0_i32_0 : i32, i32, i32
  }
  func.func @transform_4(%arg0: i32) -> (i32, i32, i32) {
    %c0_i32 = arith.constant 0 : i32
    %c0_i32_0 = arith.constant 0 : i32
    %c0_i32_1 = arith.constant 0 : i32
    return %arg0, %c0_i32, %c0_i32_0 : i32, i32, i32
  }
  func.func @transform_5(%arg0: i32) -> (i32, i32, i32) {
    %c0_i32 = arith.constant 0 : i32
    %c0_i32_0 = arith.constant 0 : i32
    %c0_i32_1 = arith.constant 0 : i32
    return %arg0, %c0_i32, %c0_i32_0 : i32, i32, i32
  }
  func.func @transform_6(%arg0: i32) -> (i32, i32, i32) {
    %c0_i32 = arith.constant 0 : i32
    %c0_i32_0 = arith.constant 0 : i32
    %c0_i32_1 = arith.constant 0 : i32
    return %arg0, %c0_i32, %c0_i32_0 : i32, i32, i32
  }
  func.func @transform_7(%arg0: i32) -> (i32, i32, i32) {
    %c0_i32 = arith.constant 0 : i32
    %c0_i32_0 = arith.constant 0 : i32
    %c0_i32_1 = arith.constant 0 : i32
    return %arg0, %c0_i32, %c0_i32_0 : i32, i32, i32
  }
  func.func @transform_8(%arg0: i32) -> (i32, i32, i32) {
    %c0_i32 = arith.constant 0 : i32
    %c0_i32_0 = arith.constant 0 : i32
    %c0_i32_1 = arith.constant 0 : i32
    return %arg0, %c0_i32, %c0_i32_0 : i32, i32, i32
  }
  func.func @transform_9(%arg0: i32) -> (i32, i32) {
    %c0_i32 = arith.constant 0 : i32
    %c0_i32_0 = arith.constant 0 : i32
    %c0_i32_1 = arith.constant 0 : i32
    return %c0_i32, %c0_i32_0 : i32, i32
  }
}

module attributes {stable_mosaic.version = 11 : i64} {
  func.func @_readout_fused_kernel(%arg0: i32, %arg1: memref<8x32xf32, #tpu.memory_space<vmem>>, %arg2: memref<1x32x33xf32, #tpu.memory_space<vmem>>, %arg3: memref<1x32x1xf32, #tpu.memory_space<vmem>>, %arg4: memref<1x1x1xf32, #tpu.memory_space<vmem>>, %arg5: memref<1x1x32xf32, #tpu.memory_space<vmem>>, %arg6: memref<1x32x96xf32, #tpu.memory_space<vmem>>, %arg7: memref<1x32x96xf32, #tpu.memory_space<vmem>>, %arg8: memref<1x2x96xf32, #tpu.memory_space<vmem>>, %arg9: memref<32x1xf32, #tpu.memory_space<vmem>>, %arg10: memref<1x1xf32, #tpu.memory_space<vmem>>, %arg11: memref<1x1xf32, #tpu.memory_space<vmem>>, %arg12: memref<1x32xf32, #tpu.memory_space<vmem>>) attributes {dimension_semantics = [#tpu.dimension_semantics<arbitrary>], iteration_bounds = array<i64: 2>, scalar_prefetch = 0 : i64, scratch_operands = 1 : i64, tpu.core_type = #tpu.core_type<tc>, window_params = [{pipeline_mode = #tpu.pipeline_mode<synchronous>, transform_indices = @transform_0, window_bounds = array<i64: 8, 32>}, {transform_indices = @transform_1, window_bounds = array<i64: 1, 32, 33>}, {transform_indices = @transform_2, window_bounds = array<i64: 1, 32, 1>}, {transform_indices = @transform_3, window_bounds = array<i64: 1, 1, 1>}, {transform_indices = @transform_4, window_bounds = array<i64: 1, 1, 32>}, {transform_indices = @transform_5, window_bounds = array<i64: 1, 32, 96>}, {transform_indices = @transform_6, window_bounds = array<i64: 1, 32, 96>}, {transform_indices = @transform_7, window_bounds = array<i64: 1, 2, 96>}, {pipeline_mode = #tpu.pipeline_mode<synchronous>, transform_indices = @transform_8, window_bounds = array<i64: 32, 1>}, {pipeline_mode = #tpu.pipeline_mode<synchronous>, transform_indices = @transform_9, window_bounds = array<i64: 1, 1>}, {pipeline_mode = #tpu.pipeline_mode<synchronous>, transform_indices = @transform_10, window_bounds = array<i64: 1, 1>}]} {
    %c0 = arith.constant 0 : index
    %c0_0 = arith.constant 0 : index
    %0 = vector.load %arg1[%c0, %c0_0] : memref<8x32xf32, #tpu.memory_space<vmem>>, vector<8x32xf32>
    %c0_i32 = arith.constant 0 : i32
    %1 = arith.cmpi eq, %arg0, %c0_i32 : i32
    %2 = arith.extui %1 : i1 to i32
    %c0_i32_1 = arith.constant 0 : i32
    %3 = arith.cmpi ne, %2, %c0_i32_1 : i32
    scf.if %3 {
      %cst_43 = arith.constant dense<0.000000e+00> : vector<32xf32>
      %94 = vector.multi_reduction <add>, %0, %cst_43 [0] : vector<8x32xf32> to vector<32xf32>
      %95 = vector.shape_cast %94 : vector<32xf32> to vector<1x32xf32>
      %c0_44 = arith.constant 0 : index
      %c0_45 = arith.constant 0 : index
      %96 = vector.load %arg12[%c0_44, %c0_45] : memref<1x32xf32, #tpu.memory_space<vmem>>, vector<1x32xf32>
      tpu.vector_store %arg12[%c0_44, %c0_45], %95 {strides = array<i32>} : memref<1x32xf32, #tpu.memory_space<vmem>>, vector<1x32xf32>,
    } else {
    }
    %c0_2 = arith.constant 0 : index
    %c0_3 = arith.constant 0 : index
    %4 = vector.load %arg12[%c0_2, %c0_3] : memref<1x32xf32, #tpu.memory_space<vmem>>, vector<1x32xf32>
    %c0_4 = arith.constant 0 : index
    %c0_5 = arith.constant 0 : index
    %c0_6 = arith.constant 0 : index
    %5 = vector.load %arg2[%c0_4, %c0_5, %c0_6] : memref<1x32x33xf32, #tpu.memory_space<vmem>>, vector<1x32x33xf32>
    %6 = vector.shape_cast %5 : vector<1x32x33xf32> to vector<32x33xf32>
    %cst = arith.constant dense<0.000000e+00> : vector<8x33xf32>
    %7 = tpu.matmul %0, %6, %cst {dimension_numbers = #tpu.dot_dimension_numbers<[1], [0], [0], [1], [0, 0, 1, 1], [], []>} : vector<8x32xf32>, vector<32x33xf32>, vector<8x33xf32> -> vector<8x33xf32>
    %8 = vector.extract_strided_slice %7 {offsets = [0, 0], sizes = [8, 32], strides = [1, 1]} : vector<8x33xf32> to vector<8x32xf32>
    %c0_7 = arith.constant 0 : index
    %c0_8 = arith.constant 0 : index
    %c0_9 = arith.constant 0 : index
    %9 = vector.load %arg5[%c0_7, %c0_8, %c0_9] : memref<1x1x32xf32, #tpu.memory_space<vmem>>, vector<1x1x32xf32>
    %10 = vector.shape_cast %9 : vector<1x1x32xf32> to vector<1x32xf32>
    %11 = vector.broadcast %10 : vector<1x32xf32> to vector<8x32xf32>
    %12 = arith.addf %8, %11 : vector<8x32xf32>
    %13 = vector.extract_strided_slice %7 {offsets = [0, 32], sizes = [8, 1], strides = [1, 1]} : vector<8x33xf32> to vector<8x1xf32>
    %cst_10 = arith.constant 0.000000e+00 : f32
    %14 = vector.broadcast %cst_10 : f32 to vector<1x32xf32>
    %15 = arith.maximumf %4, %14 : vector<1x32xf32>
    %c0_11 = arith.constant 0 : index
    %c0_12 = arith.constant 0 : index
    %c0_13 = arith.constant 0 : index
    %16 = vector.load %arg3[%c0_11, %c0_12, %c0_13] : memref<1x32x1xf32, #tpu.memory_space<vmem>>, vector<1x32x1xf32>
    %17 = vector.shape_cast %16 : vector<1x32x1xf32> to vector<32x1xf32>
    %cst_14 = arith.constant dense<0.000000e+00> : vector<1x1xf32>
    %18 = tpu.matmul %15, %17, %cst_14 {dimension_numbers = #tpu.dot_dimension_numbers<[1], [0], [0], [1], [0, 0, 1, 1], [], []>} : vector<1x32xf32>, vector<32x1xf32>, vector<1x1xf32> -> vector<1x1xf32>
    %19 = vector.broadcast %18 : vector<1x1xf32> to vector<8x1xf32>
    %20 = arith.addf %13, %19 : vector<8x1xf32>
    %c0_15 = arith.constant 0 : index
    %c0_16 = arith.constant 0 : index
    %c0_17 = arith.constant 0 : index
    %21 = vector.load %arg4[%c0_15, %c0_16, %c0_17] : memref<1x1x1xf32, #tpu.memory_space<vmem>>, vector<1x1x1xf32>
    %22 = vector.shape_cast %21 : vector<1x1x1xf32> to vector<1x1xf32>
    %23 = vector.broadcast %22 : vector<1x1xf32> to vector<8x1xf32>
    %24 = arith.addf %20, %23 : vector<8x1xf32>
    %cst_18 = arith.constant 0.000000e+00 : f32
    %25 = vector.broadcast %cst_18 : f32 to vector<8x1xf32>
    %26 = arith.cmpf ogt, %24, %25 : vector<8x1xf32>
    %cst_19 = arith.constant 0.00999999977 : f32
    %27 = vector.broadcast %cst_19 : f32 to vector<8x1xf32>
    %28 = arith.mulf %27, %24 : vector<8x1xf32>
    %29 = arith.select %26, %24, %28 : vector<8x1xi1>, vector<8x1xf32>
    %cst_20 = arith.constant dense<0xFF800000> : vector<1xf32>
    %30 = vector.multi_reduction <maximumf>, %29, %cst_20 [0] : vector<8x1xf32> to vector<1xf32>
    %31 = vector.shape_cast %30 : vector<1xf32> to vector<1x1xf32>
    %32 = vector.broadcast %31 : vector<1x1xf32> to vector<8x1xf32>
    %33 = arith.subf %29, %32 : vector<8x1xf32>
    %34 = math.exp %33 : vector<8x1xf32>
    %cst_21 = arith.constant dense<0.000000e+00> : vector<1xf32>
    %35 = vector.multi_reduction <add>, %34, %cst_21 [0] : vector<8x1xf32> to vector<1xf32>
    %36 = vector.shape_cast %35 : vector<1xf32> to vector<1x1xf32>
    %37 = tpu.reciprocal %36 {approx = true} : vector<1x1xf32> -> vector<1x1xf32>
    %38 = vector.broadcast %37 : vector<1x1xf32> to vector<8x1xf32>
    %39 = arith.mulf %34, %38 : vector<8x1xf32>
    %40 = vector.broadcast %39 : vector<8x1xf32> to vector<8x32xf32>
    %41 = arith.mulf %40, %12 : vector<8x32xf32>
    %cst_22 = arith.constant dense<0.000000e+00> : vector<32xf32>
    %42 = vector.multi_reduction <add>, %41, %cst_22 [0] : vector<8x32xf32> to vector<32xf32>
    %43 = vector.shape_cast %42 : vector<32xf32> to vector<1x32xf32>
    %cst_23 = arith.constant 0.000000e+00 : f32
    %44 = vector.broadcast %cst_23 : f32 to vector<1x32xf32>
    %45 = arith.cmpf ogt, %43, %44 : vector<1x32xf32>
    %cst_24 = arith.constant 0.000000e+00 : f32
    %46 = vector.broadcast %cst_24 : f32 to vector<1x32xf32>
    %47 = arith.minimumf %43, %46 : vector<1x32xf32>
    %48 = math.exp %47 : vector<1x32xf32>
    %cst_25 = arith.constant 1.000000e+00 : f32
    %49 = vector.broadcast %cst_25 : f32 to vector<1x32xf32>
    %50 = arith.subf %48, %49 : vector<1x32xf32>
    %51 = arith.select %45, %43, %50 : vector<1x32xi1>, vector<1x32xf32>
    %c0_26 = arith.constant 0 : index
    %c0_27 = arith.constant 0 : index
    %c0_28 = arith.constant 0 : index
    %52 = vector.load %arg6[%c0_26, %c0_27, %c0_28] : memref<1x32x96xf32, #tpu.memory_space<vmem>>, vector<1x32x96xf32>
    %53 = vector.shape_cast %52 : vector<1x32x96xf32> to vector<32x96xf32>
    %c0_29 = arith.constant 0 : index
    %c0_30 = arith.constant 0 : index
    %c0_31 = arith.constant 0 : index
    %54 = vector.load %arg7[%c0_29, %c0_30, %c0_31] : memref<1x32x96xf32, #tpu.memory_space<vmem>>, vector<1x32x96xf32>
    %55 = vector.shape_cast %54 : vector<1x32x96xf32> to vector<32x96xf32>
    %c0_32 = arith.constant 0 : index
    %c0_33 = arith.constant 0 : index
    %c0_34 = arith.constant 0 : index
    %56 = vector.load %arg8[%c0_32, %c0_33, %c0_34] : memref<1x2x96xf32, #tpu.memory_space<vmem>>, vector<1x2x96xf32>
    %57 = vector.shape_cast %56 : vector<1x2x96xf32> to vector<2x96xf32>
    %cst_35 = arith.constant dense<0.000000e+00> : vector<1x96xf32>
    %58 = tpu.matmul %51, %53, %cst_35 {dimension_numbers = #tpu.dot_dimension_numbers<[1], [0], [0], [1], [0, 0, 1, 1], [], []>} : vector<1x32xf32>, vector<32x96xf32>, vector<1x96xf32> -> vector<1x96xf32>
    %59 = vector.extract_strided_slice %57 {offsets = [0, 0], sizes = [1, 96], strides = [1, 1]} : vector<2x96xf32> to vector<1x96xf32>
    %60 = arith.addf %58, %59 : vector<1x96xf32>
    %cst_36 = arith.constant dense<0.000000e+00> : vector<1x96xf32>
    %61 = tpu.matmul %4, %55, %cst_36 {dimension_numbers = #tpu.dot_dimension_numbers<[1], [0], [0], [1], [0, 0, 1, 1], [], []>} : vector<1x32xf32>, vector<32x96xf32>, vector<1x96xf32> -> vector<1x96xf32>
    %62 = vector.extract_strided_slice %57 {offsets = [1, 0], sizes = [1, 96], strides = [1, 1]} : vector<2x96xf32> to vector<1x96xf32>
    %63 = arith.addf %61, %62 : vector<1x96xf32>
    %64 = vector.extract_strided_slice %60 {offsets = [0, 0], sizes = [1, 32], strides = [1, 1]} : vector<1x96xf32> to vector<1x32xf32>
    %65 = vector.extract_strided_slice %63 {offsets = [0, 0], sizes = [1, 32], strides = [1, 1]} : vector<1x96xf32> to vector<1x32xf32>
    %66 = arith.addf %64, %65 : vector<1x32xf32>
    %67 = arith.negf %66 : vector<1x32xf32>
    %68 = math.exp %67 : vector<1x32xf32>
    %cst_37 = arith.constant 1.000000e+00 : f32
    %69 = vector.broadcast %cst_37 : f32 to vector<1x32xf32>
    %70 = arith.addf %69, %68 : vector<1x32xf32>
    %71 = arith.divf %69, %70 : vector<1x32xf32>
    %72 = vector.extract_strided_slice %60 {offsets = [0, 32], sizes = [1, 32], strides = [1, 1]} : vector<1x96xf32> to vector<1x32xf32>
    %73 = vector.extract_strided_slice %63 {offsets = [0, 32], sizes = [1, 32], strides = [1, 1]} : vector<1x96xf32> to vector<1x32xf32>
    %74 = arith.addf %72, %73 : vector<1x32xf32>
    %75 = arith.negf %74 : vector<1x32xf32>
    %76 = math.exp %75 : vector<1x32xf32>
    %cst_38 = arith.constant 1.000000e+00 : f32
    %77 = vector.broadcast %cst_38 : f32 to vector<1x32xf32>
    %78 = arith.addf %77, %76 : vector<1x32xf32>
    %79 = arith.divf %77, %78 : vector<1x32xf32>
    %80 = vector.extract_strided_slice %60 {offsets = [0, 64], sizes = [1, 32], strides = [1, 1]} : vector<1x96xf32> to vector<1x32xf32>
    %81 = vector.extract_strided_slice %63 {offsets = [0, 64], sizes = [1, 32], strides = [1, 1]} : vector<1x96xf32> to vector<1x32xf32>
    %82 = arith.mulf %71, %81 : vector<1x32xf32>
    %83 = arith.addf %80, %82 : vector<1x32xf32>
    %84 = math.tanh %83 : vector<1x32xf32>
    %cst_39 = arith.constant 1.000000e+00 : f32
    %85 = vector.broadcast %cst_39 : f32 to vector<1x32xf32>
    %86 = arith.subf %85, %79 : vector<1x32xf32>
    %87 = arith.mulf %86, %84 : vector<1x32xf32>
    %88 = arith.mulf %79, %4 : vector<1x32xf32>
    %89 = arith.addf %87, %88 : vector<1x32xf32>
    %c0_40 = arith.constant 0 : index
    %c0_41 = arith.constant 0 : index
    %90 = vector.load %arg12[%c0_40, %c0_41] : memref<1x32xf32, #tpu.memory_space<vmem>>, vector<1x32xf32>
    tpu.vector_store %arg12[%c0_40, %c0_41], %89 {strides = array<i32>} : memref<1x32xf32, #tpu.memory_space<vmem>>, vector<1x32xf32>,
    %c1_i32 = arith.constant 1 : i32
    %91 = arith.cmpi eq, %arg0, %c1_i32 : i32
    %92 = arith.extui %91 : i1 to i32
    %c0_i32_42 = arith.constant 0 : i32
    %93 = arith.cmpi ne, %92, %c0_i32_42 : i32
    scf.if %93 {
      %c0_43 = arith.constant 0 : index
      %c0_44 = arith.constant 0 : index
      %94 = vector.load %arg9[%c0_43, %c0_44] : memref<32x1xf32, #tpu.memory_space<vmem>>, vector<32x1xf32>
      %cst_45 = arith.constant dense<0.000000e+00> : vector<1x1xf32>
      %95 = tpu.matmul %89, %94, %cst_45 {dimension_numbers = #tpu.dot_dimension_numbers<[1], [0], [0], [1], [0, 0, 1, 1], [], []>} : vector<1x32xf32>, vector<32x1xf32>, vector<1x1xf32> -> vector<1x1xf32>
      %c0_46 = arith.constant 0 : index
      %c0_47 = arith.constant 0 : index
      %96 = vector.load %arg10[%c0_46, %c0_47] : memref<1x1xf32, #tpu.memory_space<vmem>>, vector<1x1xf32>
      %97 = arith.addf %95, %96 : vector<1x1xf32>
      %c0_48 = arith.constant 0 : index
      %c0_49 = arith.constant 0 : index
      %98 = vector.load %arg11[%c0_48, %c0_49] : memref<1x1xf32, #tpu.memory_space<vmem>>, vector<1x1xf32>
      tpu.vector_store %arg11[%c0_48, %c0_49], %97 {strides = array<i32>} : memref<1x1xf32, #tpu.memory_space<vmem>>, vector<1x1xf32>,
    } else {
    }
    return
  }
  func.func @transform_0(%arg0: i32) -> (i32, i32) {
    %c0_i32 = arith.constant 0 : i32
    %c0_i32_0 = arith.constant 0 : i32
    %c0_i32_1 = arith.constant 0 : i32
    return %c0_i32, %c0_i32_0 : i32, i32
  }
  func.func @transform_1(%arg0: i32) -> (i32, i32, i32) {
    %c0_i32 = arith.constant 0 : i32
    %c0_i32_0 = arith.constant 0 : i32
    %c0_i32_1 = arith.constant 0 : i32
    return %arg0, %c0_i32, %c0_i32_0 : i32, i32, i32
  }
  func.func @transform_2(%arg0: i32) -> (i32, i32, i32) {
    %c0_i32 = arith.constant 0 : i32
    %c0_i32_0 = arith.constant 0 : i32
    %c0_i32_1 = arith.constant 0 : i32
    return %arg0, %c0_i32, %c0_i32_0 : i32, i32, i32
  }
  func.func @transform_3(%arg0: i32) -> (i32, i32, i32) {
    %c0_i32 = arith.constant 0 : i32
    %c0_i32_0 = arith.constant 0 : i32
    %c0_i32_1 = arith.constant 0 : i32
    return %arg0, %c0_i32, %c0_i32_0 : i32, i32, i32
  }
  func.func @transform_4(%arg0: i32) -> (i32, i32, i32) {
    %c0_i32 = arith.constant 0 : i32
    %c0_i32_0 = arith.constant 0 : i32
    %c0_i32_1 = arith.constant 0 : i32
    return %arg0, %c0_i32, %c0_i32_0 : i32, i32, i32
  }
  func.func @transform_5(%arg0: i32) -> (i32, i32, i32) {
    %c0_i32 = arith.constant 0 : i32
    %c0_i32_0 = arith.constant 0 : i32
    %c0_i32_1 = arith.constant 0 : i32
    return %arg0, %c0_i32, %c0_i32_0 : i32, i32, i32
  }
  func.func @transform_6(%arg0: i32) -> (i32, i32, i32) {
    %c0_i32 = arith.constant 0 : i32
    %c0_i32_0 = arith.constant 0 : i32
    %c0_i32_1 = arith.constant 0 : i32
    return %arg0, %c0_i32, %c0_i32_0 : i32, i32, i32
  }
  func.func @transform_7(%arg0: i32) -> (i32, i32, i32) {
    %c0_i32 = arith.constant 0 : i32
    %c0_i32_0 = arith.constant 0 : i32
    %c0_i32_1 = arith.constant 0 : i32
    return %arg0, %c0_i32, %c0_i32_0 : i32, i32, i32
  }
  func.func @transform_8(%arg0: i32) -> (i32, i32) {
    %c0_i32 = arith.constant 0 : i32
    %c0_i32_0 = arith.constant 0 : i32
    %c0_i32_1 = arith.constant 0 : i32
    return %c0_i32, %c0_i32_0 : i32, i32
  }
  func.func @transform_9(%arg0: i32) -> (i32, i32) {
    %c0_i32 = arith.constant 0 : i32
    %c0_i32_0 = arith.constant 0 : i32
    %c0_i32_1 = arith.constant 0 : i32
    return %c0_i32, %c0_i32_0 : i32, i32
  }
  func.func @transform_10(%arg0: i32) -> (i32, i32) {
    %c0_i32 = arith.constant 0 : i32
    %c0_i32_0 = arith.constant 0 : i32
    %c0_i32_1 = arith.constant 0 : i32
    return %c0_i32, %c0_i32_0 : i32, i32
  }
}

</mosaic_0001>

<llo_original>
// kernel: attentive_fp_forward.3
$region0: #{attentive_fp_forward.3}
  #allocation0 [shape = 'u32[]', space=smem, size = 0x4, offset = 0x4, fixed_abs, tag = 'smem constant byte address 0x4 - core index']
  #allocation1 [shape = 'u32[144,128]{1,0:T(1,128)}', space=vmem, size = 0x12000, scoped, tag = 'internal scratch']
  #allocation2 [shape = 'f32[1,1]{1,0:T(1,128)S(1)}', space=vmem, size = 0x200, scoped, tag = 'scoped memory for attentive_fp_forward.3']
  %s0 = inlined_call_operand.vmem [shape: f32[8,16], index: 0, kind: input, shape index: {}]
  %s1 = inlined_call_operand.vmem [shape: f32[8,8,8], index: 1, kind: input, shape index: {}]
  %s2 = inlined_call_operand.vmem [shape: f32[8,8], index: 2, kind: input, shape index: {}]
  %s3 = inlined_call_operand.vmem [shape: f32[16,64], index: 3, kind: input, shape index: {}]
  %s4 = inlined_call_operand.hbm [shape: f32[8,32], index: 4, kind: input, shape index: {}]
  %s5 = inlined_call_operand.hbm [shape: f32[3,32], index: 5, kind: input, shape index: {}]
  %s6 = inlined_call_operand.vmem [shape: f32[32,1], index: 6, kind: input, shape index: {}]
  %s7 = inlined_call_operand.vmem [shape: f32[1,32], index: 7, kind: input, shape index: {}]
  %s8 = inlined_call_operand.<no memory space> [shape: f32[1,1], index: 8, kind: input, shape index: {}]
  %s9 = inlined_call_operand.vmem [shape: f32[32,32], index: 9, kind: input, shape index: {}]
  %s10 = inlined_call_operand.hbm [shape: f32[32,96], index: 10, kind: input, shape index: {}]
  %s11 = inlined_call_operand.hbm [shape: f32[32,96], index: 11, kind: input, shape index: {}]
  %s12 = inlined_call_operand.vmem [shape: f32[2,96], index: 12, kind: input, shape index: {}]
  %s13 = inlined_call_operand.vmem [shape: f32[8,32], index: 13, kind: output, shape index: {}]
  %s14 = sld [smem:[#allocation0]]
  $region78: #{attentive_fp_forward.3} parent=0
    _
  %s16 = ssub.s32 1, %s14
  %s17 = scalar_select 0, %s16, %s14
  %v18 = vstv %s8
  %19 = vst [vmem:[#allocation2] sm:$0x1] %v18
  $region1: #{attentive_fp_forward.3} parent=0
    #allocation3 [shape = 'u8[4096]{0}', space=vmem, size = 0x1000, scoped, tag = 'input window, operand 4, single buffered']
    #allocation4 [shape = 's32[1]{0}', space=sflag, size = 0x4, scoped, tag = 'scoped memory for attentive_fp_forward.3']
    #allocation5 [shape = 'u8[2048]{0}', space=vmem, size = 0x800, scoped, tag = 'input window, operand 5, single buffered']
    #allocation6 [shape = 's32[1]{0}', space=sflag, size = 0x4, scoped, tag = 'scoped memory for attentive_fp_forward.3']
    #allocation7 [shape = 'u8[16384]{0}', space=vmem, size = 0x4000, scoped, tag = 'input window, operand 10, single buffered']
    #allocation8 [shape = 'u8[16384]{0}', space=vmem, size = 0x4000, scoped, tag = 'input window, operand 11, single buffered']
    #allocation9 [shape = 's32[1]{0}', space=sflag, size = 0x4, scoped, tag = 'scoped memory for attentive_fp_forward.3']
    %20 = vsyncpa [#allocation4], 0
    %21 = vsyncpa [#allocation6], 0
    %22 = vsyncpa [#allocation9], 0
    // Predicated region
    $region2: #{attentive_fp_forward.3} parent=1 // pred_check
      _
    $region3: #{attentive_fp_forward.3} parent=1 // pred_check_branch
      %24 = sbr.rel (0) target = $region5
    $region4: #{attentive_fp_forward.3} parent=1 // pred_region
      _
    $region5: #{attentive_fp_forward.3} parent=1 // pred_fallthru
      _
    // Predicated region
    $region6: #{attentive_fp_forward.3} parent=1 // pred_check
      _
    $region7: #{attentive_fp_forward.3} parent=1 // pred_check_branch
      %26 = sbr.rel (0) target = $region9
    $region8: #{attentive_fp_forward.3} parent=1 // pred_region
      _
    $region9: #{attentive_fp_forward.3} parent=1 // pred_fallthru
      _
    // Predicated region
    $region10: #{attentive_fp_forward.3} parent=1 // pred_check
      _
    $region11: #{attentive_fp_forward.3} parent=1 // pred_check_branch
      %28 = sbr.rel (0) target = $region13
    $region12: #{attentive_fp_forward.3} parent=1 // pred_region
      _
    $region13: #{attentive_fp_forward.3} parent=1 // pred_fallthru
      _
    // Predicated region
    $region14: #{attentive_fp_forward.3} parent=1 // pred_check
      _
    $region15: #{attentive_fp_forward.3} parent=1 // pred_check_branch
      %30 = sbr.rel (0) target = $region17
    $region16: #{attentive_fp_forward.3} parent=1 // pred_region
      _
    $region17: #{attentive_fp_forward.3} parent=1 // pred_fallthru
      _
    // Predicated region
    $region18: #{attentive_fp_forward.3} parent=1 // pred_check
      _
    $region19: #{attentive_fp_forward.3} parent=1 // pred_check_branch
      %32 = sbr.rel (0) target = $region21
    $region20: #{attentive_fp_forward.3} parent=1 // pred_region
      %s34 = ssub.s32 128, 128
      %35 = vsyncadd [#allocation4], %s34
      %s37 = sshll.u32 [#allocation3], 4
      %s38 = int_to_ptr.vmem [resolvable:$true] %s37
      %40 = dma.hbm_to_vmem [thread:$0]  %s4, 128, %s38, [#allocation4]
    $region21: #{attentive_fp_forward.3} parent=1 // pred_fallthru
      _
    // Predicated region
    $region22: #{attentive_fp_forward.3} parent=1 // pred_check
      _
    $region23: #{attentive_fp_forward.3} parent=1 // pred_check_branch
      %42 = sbr.rel (0) target = $region25
    $region24: #{attentive_fp_forward.3} parent=1 // pred_region
      %s44 = ssub.s32 64, 64
      %45 = vsyncadd [#allocation6], %s44
      %s47 = sshll.u32 [#allocation5], 4
      %s48 = int_to_ptr.vmem [resolvable:$true] %s47
      %50 = dma.hbm_to_vmem [thread:$0]  %s5, 64, %s48, [#allocation6]
    $region25: #{attentive_fp_forward.3} parent=1 // pred_fallthru
      _
    // Predicated region
    $region26: #{attentive_fp_forward.3} parent=1 // pred_check
      _
    $region27: #{attentive_fp_forward.3} parent=1 // pred_check_branch
      %52 = sbr.rel (0) target = $region29
    $region28: #{attentive_fp_forward.3} parent=1 // pred_region
      _
    $region29: #{attentive_fp_forward.3} parent=1 // pred_fallthru
      _
    // Predicated region
    $region30: #{attentive_fp_forward.3} parent=1 // pred_check
      _
    $region31: #{attentive_fp_forward.3} parent=1 // pred_check_branch
      %54 = sbr.rel (0) target = $region33
    $region32: #{attentive_fp_forward.3} parent=1 // pred_region
      _
    $region33: #{attentive_fp_forward.3} parent=1 // pred_fallthru
      _
    // Predicated region
    $region34: #{attentive_fp_forward.3} parent=1 // pred_check
      _
    $region35: #{attentive_fp_forward.3} parent=1 // pred_check_branch
      %56 = sbr.rel (0) target = $region37
    $region36: #{attentive_fp_forward.3} parent=1 // pred_region
      _
    $region37: #{attentive_fp_forward.3} parent=1 // pred_fallthru
      _
    // Predicated region
    $region38: #{attentive_fp_forward.3} parent=1 // pred_check
      _
    $region39: #{attentive_fp_forward.3} parent=1 // pred_check_branch
      %58 = sbr.rel (0) target = $region41
    $region40: #{attentive_fp_forward.3} parent=1 // pred_region
      _
    $region41: #{attentive_fp_forward.3} parent=1 // pred_fallthru
      _
    // Predicated region
    $region42: #{attentive_fp_forward.3} parent=1 // pred_check
      _
    $region43: #{attentive_fp_forward.3} parent=1 // pred_check_branch
      %60 = sbr.rel (0) target = $region45
    $region44: #{attentive_fp_forward.3} parent=1 // pred_region
      %s62 = ssub.s32 512, 512
      %63 = vsyncadd [#allocation6], %s62
      %s64 = sshll.u32 [#allocation7], 4
      %s65 = int_to_ptr.vmem [resolvable:$true] %s64
      %70 = dma.hbm_to_vmem [thread:$0]  %s10, 512, %s65, [#allocation6], 128, 128, 8
    $region45: #{attentive_fp_forward.3} parent=1 // pred_fallthru
      _
    // Predicated region
    $region46: #{attentive_fp_forward.3} parent=1 // pred_check
      _
    $region47: #{attentive_fp_forward.3} parent=1 // pred_check_branch
      %72 = sbr.rel (0) target = $region49
    $region48: #{attentive_fp_forward.3} parent=1 // pred_region
      %s74 = ssub.s32 512, 512
      %75 = vsyncadd [#allocation9], %s74
      %s76 = sshll.u32 [#allocation8], 4
      %s77 = int_to_ptr.vmem [resolvable:$true] %s76
      %82 = dma.hbm_to_vmem [thread:$0]  %s11, 512, %s77, [#allocation9], 128, 128, 8
    $region49: #{attentive_fp_forward.3} parent=1 // pred_fallthru
      _
    // Predicated region
    $region50: #{attentive_fp_forward.3} parent=1 // pred_check
      _
    $region51: #{attentive_fp_forward.3} parent=1 // pred_check_branch
      %84 = sbr.rel (0) target = $region53
    $region52: #{attentive_fp_forward.3} parent=1 // pred_region
      _
    $region53: #{attentive_fp_forward.3} parent=1 // pred_fallthru
      _
    // Predicated region
    $region54: #{attentive_fp_forward.3} parent=1 // pred_check
      _
    $region55: #{attentive_fp_forward.3} parent=1 // pred_check_branch
      %86 = sbr.rel (0) target = $region57
    $region56: #{attentive_fp_forward.3} parent=1 // pred_region
      %87 = dma.done [#allocation4], 128
    $region57: #{attentive_fp_forward.3} parent=1 // pred_fallthru
      _
    // Predicated region
    $region58: #{attentive_fp_forward.3} parent=1 // pred_check
      _
    $region59: #{attentive_fp_forward.3} parent=1 // pred_check_branch
      %89 = sbr.rel (0) target = $region61
    $region60: #{attentive_fp_forward.3} parent=1 // pred_region
      %90 = dma.done [#allocation6], 64
    $region61: #{attentive_fp_forward.3} parent=1 // pred_fallthru
      _
    // Predicated region
    $region62: #{attentive_fp_forward.3} parent=1 // pred_check
      _
    $region63: #{attentive_fp_forward.3} parent=1 // pred_check_branch
      %92 = sbr.rel (0) target = $region65
    $region64: #{attentive_fp_forward.3} parent=1 // pred_region
      %93 = dma.done [#allocation6], 512
    $region65: #{attentive_fp_forward.3} parent=1 // pred_fallthru
      _
    // Predicated region
    $region66: #{attentive_fp_forward.3} parent=1 // pred_check
      _
    $region67: #{attentive_fp_forward.3} parent=1 // pred_check_branch
      %95 = sbr.rel (0) target = $region69
    $region68: #{attentive_fp_forward.3} parent=1 // pred_region
      %96 = dma.done [#allocation9], 512
    $region69: #{attentive_fp_forward.3} parent=1 // pred_fallthru
      _
    %v97 = vld [vmem:[%s0] sm:$0xff]
    %v98 = vld [vmem:[%s2] sm:$0xff]
    %v99 = vld [vmem:[#allocation5] sm:$0x7]
    %v100 = vld [vmem:[%s3] sm:$0xff]
    %v101 = vld [vmem:[%s3 + $0x8] sm:$0xff]
    %vm102 = vcmask 130048
    %v104 = vsel %vm102, %v97, 0
    %106 = vmatprep.subr.mxu0 0.0
    %107 = vmatpush1.msra.mxu0 %v100
    %108 = vmatprep.subr.mxu0 0.0
    %109 = vmatpush1.msra.mxu0 %v101
    %110 = vmatprep.subr.mxu0 0.0
    %111 = vmatpush1.msra.mxu0 0.0
    %112 = vmatprep.subr.mxu0 0.0
    %113 = vmatpush1.msra.mxu0 0.0
    %114 = vmatprep.subr.mxu0 0.0
    %115 = vmatpush1.msra.mxu0 0.0
    %116 = vmatprep.subr.mxu0 0.0
    %117 = vmatpush1.msra.mxu0 0.0
    %118 = vmatprep.subr.mxu0 0.0
    %119 = vmatpush1.msra.mxu0 0.0
    %120 = vmatprep.subr.mxu0 0.0
    %121 = vmatpush1.msra.mxu0 0.0
    %122 = vmatprep.subr.mxu0 0.0
    %123 = vmatpush1.msra.mxu0 0.0
    %124 = vmatprep.subr.mxu0 0.0
    %125 = vmatpush1.msra.mxu0 0.0
    %126 = vmatprep.subr.mxu0 0.0
    %127 = vmatpush1.msra.mxu0 0.0
    %128 = vmatprep.subr.mxu0 0.0
    %129 = vmatpush1.msra.mxu0 0.0
    %130 = vmatprep.subr.mxu0 0.0
    %131 = vmatpush1.msra.mxu0 0.0
    %132 = vmatprep.subr.mxu0 0.0
    %133 = vmatpush1.msra.mxu0 0.0
    %134 = vmatprep.subr.mxu0 0.0
    %135 = vmatpush1.msra.mxu0 0.0
    %136 = vmatprep.subr.mxu0 0.0
    %137 = vmatpush1.msra.mxu0 0.0
    %138 = vmatprep.subr.mxu0 0.0
    %139 = vmatpush1.msra.mxu0 0.0
    %140 = vmatprep.subr.mxu0 0.0
    %141 = vmatpush1.msra.mxu0 0.0
    %142 = vmatprep.subr.mxu0 0.0
    %143 = vmatpush1.msra.mxu0 0.0
    %144 = vmatprep.subr.mxu0 0.0
    %145 = vmatpush1.msra.mxu0 0.0
    %146 = vmatprep.subr.mxu0 0.0
    %147 = vmatpush1.msra.mxu0 0.0
    %148 = vmatprep.subr.mxu0 0.0
    %149 = vmatpush1.msra.mxu0 0.0
    %150 = vmatprep.subr.mxu0 0.0
    %151 = vmatpush1.msra.mxu0 0.0
    %152 = vmatprep.subr.mxu0 0.0
    %153 = vmatpush1.msra.mxu0 0.0
    %154 = vmatprep.subr.mxu0 0.0
    %155 = vmatpush1.msra.mxu0 0.0
    %156 = vmatprep.subr.mxu0 0.0
    %157 = vmatpush1.msra.mxu0 0.0
    %158 = vmatprep.subr.mxu0 0.0
    %159 = vmatpush1.msra.mxu0 0.0
    %160 = vmatprep.subr.mxu0 0.0
    %161 = vmatpush1.msra.mxu0 0.0
    %162 = vmatprep.subr.mxu0 0.0
    %163 = vmatpush1.msra.mxu0 0.0
    %164 = vmatprep.subr.mxu0 0.0
    %165 = vmatpush1.msra.mxu0 0.0
    %166 = vmatprep.subr.mxu0 0.0
    %167 = vmatpush1.msra.mxu0 0.0
    %168 = vmatprep.subr.mxu0 0.0
    %169 = vmatpush1.msra.mxu0 0.0
    %170 = vmatprep.mubr.f32.mxu0 0.0
    %171 = vmatmul.mubr.f32.gmra.mrb[0].mxu0 %v104
    %v172 = vpop.f32.mrb[0].mxu0
    %v173 = vadd.f32 0.0, %v172
    %v174 = vpop.f32.mrb[0].mxu0
    %175 = vdwg.mxu0
    %v176 = vlaneseq
    %v177 = vshrl.u32 %v176, 7
    %v178 = vsub.s32 0, %v177
    %v179 = vrot.slane %v99, %v178
    %v180 = vadd.f32 %v173, %v179
    %vm181 = vcmp.gt.f32.partialorder %v180, 0.0
    %v182 = vmul.f32 %v180, 0.01
    %v183 = vsel %vm181, %v180, %v182
    %v184 = vld [vmem:[%s1] sm:$0xff]
    %v185 = vld [vmem:[%s1 + $0x8] sm:$0xff]
    %v186 = vld [vmem:[%s1 + $0x10] sm:$0xff]
    %v187 = vld [vmem:[%s1 + $0x18] sm:$0xff]
    %v188 = vld [vmem:[%s1 + $0x20] sm:$0xff]
    %v189 = vld [vmem:[%s1 + $0x28] sm:$0xff]
    %v190 = vld [vmem:[%s1 + $0x30] sm:$0xff]
    %v191 = vld [vmem:[%s1 + $0x38] sm:$0xff]
    %v192 = vld [vmem:[#allocation3] sm:$0xff]
    %vm193 = vcmask 64512
    %v195 = vsel %vm193, %v184, 0
    %v198 = vsel %vm193, %v185, 0
    %v201 = vsel %vm193, %v186, 0
    %v204 = vsel %vm193, %v187, 0
    %v207 = vsel %vm193, %v188, 0
    %v210 = vsel %vm193, %v189, 0
    %v213 = vsel %vm193, %v190, 0
    %v216 = vsel %vm193, %v191, 0
    %218 = vmatprep.subr.mxu0 0.0
    %219 = vmatpush1.msra.mxu0 %v192
    %220 = vmatprep.subr.mxu0 0.0
    %221 = vmatpush1.msra.mxu0 0.0
    %222 = vmatprep.subr.mxu0 0.0
    %223 = vmatpush1.msra.mxu0 0.0
    %224 = vmatprep.subr.mxu0 0.0
    %225 = vmatpush1.msra.mxu0 0.0
    %226 = vmatprep.subr.mxu0 0.0
    %227 = vmatpush1.msra.mxu0 0.0
    %228 = vmatprep.subr.mxu0 0.0
    %229 = vmatpush1.msra.mxu0 0.0
    %230 = vmatprep.subr.mxu0 0.0
    %231 = vmatpush1.msra.mxu0 0.0
    %232 = vmatprep.subr.mxu0 0.0
    %233 = vmatpush1.msra.mxu0 0.0
    %234 = vmatprep.subr.mxu0 0.0
    %235 = vmatpush1.msra.mxu0 0.0
    %236 = vmatprep.subr.mxu0 0.0
    %237 = vmatpush1.msra.mxu0 0.0
    %238 = vmatprep.subr.mxu0 0.0
    %239 = vmatpush1.msra.mxu0 0.0
    %240 = vmatprep.subr.mxu0 0.0
    %241 = vmatpush1.msra.mxu0 0.0
    %242 = vmatprep.subr.mxu0 0.0
    %243 = vmatpush1.msra.mxu0 0.0
    %244 = vmatprep.subr.mxu0 0.0
    %245 = vmatpush1.msra.mxu0 0.0
    %246 = vmatprep.subr.mxu0 0.0
    %247 = vmatpush1.msra.mxu0 0.0
    %248 = vmatprep.subr.mxu0 0.0
    %249 = vmatpush1.msra.mxu0 0.0
    %250 = vmatprep.subr.mxu0 0.0
    %251 = vmatpush1.msra.mxu0 0.0
    %252 = vmatprep.subr.mxu0 0.0
    %253 = vmatpush1.msra.mxu0 0.0
    %254 = vmatprep.subr.mxu0 0.0
    %255 = vmatpush1.msra.mxu0 0.0
    %256 = vmatprep.subr.mxu0 0.0
    %257 = vmatpush1.msra.mxu0 0.0
    %258 = vmatprep.subr.mxu0 0.0
    %259 = vmatpush1.msra.mxu0 0.0
    %260 = vmatprep.subr.mxu0 0.0
    %261 = vmatpush1.msra.mxu0 0.0
    %262 = vmatprep.subr.mxu0 0.0
    %263 = vmatpush1.msra.mxu0 0.0
    %264 = vmatprep.subr.mxu0 0.0
    %265 = vmatpush1.msra.mxu0 0.0
    %266 = vmatprep.subr.mxu0 0.0
    %267 = vmatpush1.msra.mxu0 0.0
    %268 = vmatprep.subr.mxu0 0.0
    %269 = vmatpush1.msra.mxu0 0.0
    %270 = vmatprep.subr.mxu0 0.0
    %271 = vmatpush1.msra.mxu0 0.0
    %272 = vmatprep.subr.mxu0 0.0
    %273 = vmatpush1.msra.mxu0 0.0
    %274 = vmatprep.subr.mxu0 0.0
    %275 = vmatpush1.msra.mxu0 0.0
    %276 = vmatprep.subr.mxu0 0.0
    %277 = vmatpush1.msra.mxu0 0.0
    %278 = vmatprep.subr.mxu0 0.0
    %279 = vmatpush1.msra.mxu0 0.0
    %280 = vmatprep.subr.mxu0 0.0
    %281 = vmatpush1.msra.mxu0 0.0
    %282 = vmatprep.mubr.f32.mxu0 0.0
    %283 = vmatmul.mubr.f32.gmra.mrb[0].mxu0 %v195
    %v284 = vpop.f32.mrb[0].mxu0
    %v285 = vadd.f32 0.0, %v284
    %v286 = vpop.f32.mrb[0].mxu0
    %287 = vmatprep.mubr.f32.mxu0 0.0
    %288 = vmatmul.mubr.f32.gmra.mrb[0].mxu0 %v198
    %v289 = vpop.f32.mrb[0].mxu0
    %v290 = vadd.f32 0.0, %v289
    %v291 = vpop.f32.mrb[0].mxu0
    %292 = vmatprep.mubr.f32.mxu0 0.0
    %293 = vmatmul.mubr.f32.gmra.mrb[0].mxu0 %v201
    %v294 = vpop.f32.mrb[0].mxu0
    %v295 = vadd.f32 0.0, %v294
    %v296 = vpop.f32.mrb[0].mxu0
    %297 = vmatprep.mubr.f32.mxu0 0.0
    %298 = vmatmul.mubr.f32.gmra.mrb[0].mxu0 %v204
    %v299 = vpop.f32.mrb[0].mxu0
    %v300 = vadd.f32 0.0, %v299
    %v301 = vpop.f32.mrb[0].mxu0
    %302 = vmatprep.mubr.f32.mxu0 0.0
    %303 = vmatmul.mubr.f32.gmra.mrb[0].mxu0 %v207
    %v304 = vpop.f32.mrb[0].mxu0
    %v305 = vadd.f32 0.0, %v304
    %v306 = vpop.f32.mrb[0].mxu0
    %307 = vmatprep.mubr.f32.mxu0 0.0
    %308 = vmatmul.mubr.f32.gmra.mrb[0].mxu0 %v210
    %v309 = vpop.f32.mrb[0].mxu0
    %v310 = vadd.f32 0.0, %v309
    %v311 = vpop.f32.mrb[0].mxu0
    %312 = vmatprep.mubr.f32.mxu0 0.0
    %313 = vmatmul.mubr.f32.gmra.mrb[0].mxu0 %v213
    %v314 = vpop.f32.mrb[0].mxu0
    %v315 = vadd.f32 0.0, %v314
    %v316 = vpop.f32.mrb[0].mxu0
    %317 = vmatprep.mubr.f32.mxu0 0.0
    %318 = vmatmul.mubr.f32.gmra.mrb[0].mxu0 %v216
    %v319 = vpop.f32.mrb[0].mxu0
    %v320 = vadd.f32 0.0, %v319
    %v321 = vpop.f32.mrb[0].mxu0
    %322 = vdwg.mxu0
    %324 = vrot.lane.b32.xlu0 %v173, 96
    %v325 = vpop.permute.xlu0 %324
    %v327 = vadd.f32 %v285, %v325
    %v328 = vadd.f32 %v290, %v325
    %v329 = vadd.f32 %v295, %v325
    %v330 = vadd.f32 %v300, %v325
    %v331 = vadd.f32 %v305, %v325
    %v332 = vadd.f32 %v310, %v325
    %v333 = vadd.f32 %v315, %v325
    %v334 = vadd.f32 %v320, %v325
    %v335 = vlaneseq
    %v336 = vshrl.u32 %v335, 7
    %v337 = vsub.s32 1, %v336
    %v338 = vrot.slane %v99, %v337
    %v339 = vadd.f32 %v327, %v338
    %v340 = vadd.f32 %v328, %v338
    %v341 = vadd.f32 %v329, %v338
    %v342 = vadd.f32 %v330, %v338
    %v343 = vadd.f32 %v331, %v338
    %v344 = vadd.f32 %v332, %v338
    %v345 = vadd.f32 %v333, %v338
    %v346 = vadd.f32 %v334, %v338
    %vm347 = vcmp.gt.f32.partialorder %v339, 0.0
    %vm348 = vcmp.gt.f32.partialorder %v340, 0.0
    %vm349 = vcmp.gt.f32.partialorder %v341, 0.0
    %vm350 = vcmp.gt.f32.partialorder %v342, 0.0
    %vm351 = vcmp.gt.f32.partialorder %v343, 0.0
    %vm352 = vcmp.gt.f32.partialorder %v344, 0.0
    %vm353 = vcmp.gt.f32.partialorder %v345, 0.0
    %vm354 = vcmp.gt.f32.partialorder %v346, 0.0
    %v355 = vmul.f32 %v339, 0.01
    %v356 = vmul.f32 %v340, 0.01
    %v357 = vmul.f32 %v341, 0.01
    %v358 = vmul.f32 %v342, 0.01
    %v359 = vmul.f32 %v343, 0.01
    %v360 = vmul.f32 %v344, 0.01
    %v361 = vmul.f32 %v345, 0.01
    %v362 = vmul.f32 %v346, 0.01
    %v363 = vsel %vm347, %v339, %v355
    %v364 = vsel %vm348, %v340, %v356
    %v365 = vsel %vm349, %v341, %v357
    %v366 = vsel %vm350, %v342, %v358
    %v367 = vsel %vm351, %v343, %v359
    %v368 = vsel %vm352, %v344, %v360
    %v369 = vsel %vm353, %v345, %v361
    %v370 = vsel %vm354, %v346, %v362
    %v371 = vld [vmem:[%s6] sm:$0xff]
    %v372 = vld [vmem:[%s6 + $0x8] sm:$0xff]
    %v373 = vld [vmem:[%s6 + $0x10] sm:$0xff]
    %v374 = vld [vmem:[%s6 + $0x18] sm:$0xff]
    %v375 = vld [vmem:[#allocation2] sm:$0x1]
    %v377 = vlaneseq
    %v378 = vshrl.u32 %v377, 7
    %v379 = vsub.s32 0, %v378
    %v380 = vrot.slane %v375, %v379
    %vm382 = vcmask 261120
    %v384 = vsel %vm382, %v183, 0
    %386 = vmatprep.subr.mxu0 0.0
    %387 = vmatpush1.msra.mxu0 %v371
    %388 = vmatprep.subr.mxu0 0.0
    %389 = vmatpush1.msra.mxu0 %v372
    %390 = vmatprep.subr.mxu0 0.0
    %391 = vmatpush1.msra.mxu0 %v373
    %392 = vmatprep.subr.mxu0 0.0
    %393 = vmatpush1.msra.mxu0 %v374
    %394 = vmatprep.subr.mxu0 0.0
    %395 = vmatpush1.msra.mxu0 0.0
    %396 = vmatprep.subr.mxu0 0.0
    %397 = vmatpush1.msra.mxu0 0.0
    %398 = vmatprep.subr.mxu0 0.0
    %399 = vmatpush1.msra.mxu0 0.0
    %400 = vmatprep.subr.mxu0 0.0
    %401 = vmatpush1.msra.mxu0 0.0
    %402 = vmatprep.subr.mxu0 0.0
    %403 = vmatpush1.msra.mxu0 0.0
    %404 = vmatprep.subr.mxu0 0.0
    %405 = vmatpush1.msra.mxu0 0.0
    %406 = vmatprep.subr.mxu0 0.0
    %407 = vmatpush1.msra.mxu0 0.0
    %408 = vmatprep.subr.mxu0 0.0
    %409 = vmatpush1.msra.mxu0 0.0
    %410 = vmatprep.subr.mxu0 0.0
    %411 = vmatpush1.msra.mxu0 0.0
    %412 = vmatprep.subr.mxu0 0.0
    %413 = vmatpush1.msra.mxu0 0.0
    %414 = vmatprep.subr.mxu0 0.0
    %415 = vmatpush1.msra.mxu0 0.0
    %416 = vmatprep.subr.mxu0 0.0
    %417 = vmatpush1.msra.mxu0 0.0
    %418 = vmatprep.subr.mxu0 0.0
    %419 = vmatpush1.msra.mxu0 0.0
    %420 = vmatprep.subr.mxu0 0.0
    %421 = vmatpush1.msra.mxu0 0.0
    %422 = vmatprep.subr.mxu0 0.0
    %423 = vmatpush1.msra.mxu0 0.0
    %424 = vmatprep.subr.mxu0 0.0
    %425 = vmatpush1.msra.mxu0 0.0
    %426 = vmatprep.subr.mxu0 0.0
    %427 = vmatpush1.msra.mxu0 0.0
    %428 = vmatprep.subr.mxu0 0.0
    %429 = vmatpush1.msra.mxu0 0.0
    %430 = vmatprep.subr.mxu0 0.0
    %431 = vmatpush1.msra.mxu0 0.0
    %432 = vmatprep.subr.mxu0 0.0
    %433 = vmatpush1.msra.mxu0 0.0
    %434 = vmatprep.subr.mxu0 0.0
    %435 = vmatpush1.msra.mxu0 0.0
    %436 = vmatprep.subr.mxu0 0.0
    %437 = vmatpush1.msra.mxu0 0.0
    %438 = vmatprep.subr.mxu0 0.0
    %439 = vmatpush1.msra.mxu0 0.0
    %440 = vmatprep.subr.mxu0 0.0
    %441 = vmatpush1.msra.mxu0 0.0
    %442 = vmatprep.subr.mxu0 0.0
    %443 = vmatpush1.msra.mxu0 0.0
    %444 = vmatprep.subr.mxu0 0.0
    %445 = vmatpush1.msra.mxu0 0.0
    %446 = vmatprep.subr.mxu0 0.0
    %447 = vmatpush1.msra.mxu0 0.0
    %448 = vmatprep.subr.mxu0 0.0
    %449 = vmatpush1.msra.mxu0 0.0
    %450 = vmatprep.mubr.f32.mxu0 0.0
    %451 = vmatmul.mubr.f32.gmra.mrb[0].mxu0 %v384
    %v452 = vpop.f32.mrb[0].mxu0
    %v453 = vadd.f32 %v380, %v452
    %v454 = vpop.f32.mrb[0].mxu0
    %455 = vdwg.mxu0
    %v456 = vld [vmem:[%s7] sm:$0x1]
    %v458 = vlaneseq
    %v459 = vshrl.u32 %v458, 7
    %v460 = vsub.s32 0, %v459
    %v461 = vrot.slane %v456, %v460
    %v463 = vmul.f32 %v363, %v461
    %v464 = vmul.f32 %v364, %v461
    %v465 = vmul.f32 %v365, %v461
    %v466 = vmul.f32 %v366, %v461
    %v467 = vmul.f32 %v367, %v461
    %v468 = vmul.f32 %v368, %v461
    %v469 = vmul.f32 %v369, %v461
    %v470 = vmul.f32 %v370, %v461
    %v471 = vsel %vm382, %v463, 0.0
    %472 = vadd.xlane.f32.xlu0 %v471
    %v473 = vpop.xlane.xlu0 %472
    %v474 = vsel %vm382, %v464, 0.0
    %475 = vadd.xlane.f32.xlu0 %v474
    %v476 = vpop.xlane.xlu0 %475
    %v477 = vsel %vm382, %v465, 0.0
    %478 = vadd.xlane.f32.xlu0 %v477
    %v479 = vpop.xlane.xlu0 %478
    %v480 = vsel %vm382, %v466, 0.0
    %481 = vadd.xlane.f32.xlu0 %v480
    %v482 = vpop.xlane.xlu0 %481
    %v483 = vsel %vm382, %v467, 0.0
    %484 = vadd.xlane.f32.xlu0 %v483
    %v485 = vpop.xlane.xlu0 %484
    %v486 = vsel %vm382, %v468, 0.0
    %487 = vadd.xlane.f32.xlu0 %v486
    %v488 = vpop.xlane.xlu0 %487
    %v489 = vsel %vm382, %v469, 0.0
    %490 = vadd.xlane.f32.xlu0 %v489
    %v491 = vpop.xlane.xlu0 %490
    %v492 = vsel %vm382, %v470, 0.0
    %493 = vadd.xlane.f32.xlu0 %v492
    %v494 = vpop.xlane.xlu0 %493
    %496 = vset.pattern.permute.xlu0 0
    %497 = vperm.xlu0 %496, %v453
    %v498 = vpop.permute.xlu0 %497
    %v508 = vlaneseq
    %v509 = vand.u32 %v508, 127
    %v510 = vlaneseq
    %v511 = vshrl.u32 %v510, 7
    %v512 = vsub.s32 %v509, %v511
    %v513 = vrot.slane %v473, %v512
    %v514 = vlaneseq
    %v515 = vshrl.u32 %v514, 7
    %v516 = vsub.s32 %v509, %v515
    %v517 = vrot.slane %v476, %v516
    %v518 = vlaneseq
    %v519 = vshrl.u32 %v518, 7
    %v520 = vsub.s32 %v509, %v519
    %v521 = vrot.slane %v479, %v520
    %v522 = vlaneseq
    %v523 = vshrl.u32 %v522, 7
    %v524 = vsub.s32 %v509, %v523
    %v525 = vrot.slane %v482, %v524
    %v526 = vlaneseq
    %v527 = vshrl.u32 %v526, 7
    %v528 = vsub.s32 %v509, %v527
    %v529 = vrot.slane %v485, %v528
    %v530 = vlaneseq
    %v531 = vshrl.u32 %v530, 7
    %v532 = vsub.s32 %v509, %v531
    %v533 = vrot.slane %v488, %v532
    %v534 = vlaneseq
    %v535 = vshrl.u32 %v534, 7
    %v536 = vsub.s32 %v509, %v535
    %v537 = vrot.slane %v491, %v536
    %v538 = vlaneseq
    %v539 = vshrl.u32 %v538, 7
    %v540 = vsub.s32 %v509, %v539
    %v541 = vrot.slane %v494, %v540
    %vm542 = vcmask 1041409
    %v543 = vsel %vm542, %v517, %v513
    %vm544 = vcmask 1042434
    %v545 = vsel %vm544, %v521, %v543
    %vm546 = vcmask 1043459
    %v547 = vsel %vm546, %v525, %v545
    %vm548 = vcmask 1044484
    %v549 = vsel %vm548, %v529, %v547
    %vm550 = vcmask 1045509
    %v551 = vsel %vm550, %v533, %v549
    %vm552 = vcmask 1046534
    %v553 = vsel %vm552, %v537, %v551
    %vm554 = vcmask 1047559
    %v555 = vsel %vm554, %v541, %v553
    %v557 = vadd.f32 %v498, %v555
    %vm558 = vcmp.gt.f32.partialorder %v557, 0.0
    %v559 = vmul.f32 %v557, 0.01
    %v560 = vsel %vm558, %v557, %v559
    %vm561 = vcmp.gt.f32.partialorder %v98, 0.0
    %v562 = vsel %vm561, %v560, -1e+30
    %v563 = vsel %vm193, %v562, -inf
    %564 = vmax.xlane.f32.xlu0 %v563
    %v565 = vpop.xlane.xlu0 %564
    %v566 = vsub.f32 %v562, %v565
    %v567 = vmul.f32 %v566, 1.442695
    %v568 = vpow.pop %v567
    %v569 = vsel %vm561, %v568, 0.0
    %v570 = vsel %vm193, %v569, 0.0
    %571 = vadd.xlane.f32.xlu0 %v570
    %v572 = vpop.xlane.xlu0 %571
    %v573 = vmax.f32 %v572, 1e-30
    %v574 = vrcp.pop %v573
    %v575 = vmul.f32 %v569, %v574
    %v576 = vsel %vm193, %v575, 0.0
    %577 = vadd.xlane.f32.xlu0 %v576
    %v578 = vpop.xlane.xlu0 %577
    %v579 = vlaneseq
    %v580 = vshrl.u32 %v579, 7
    %v581 = vsub.s32 0, %v580
    %v582 = vrot.slane %v575, %v581
    %584 = vbcast.lane.b32.xlu0 %v582, 256
    %v585 = vpop.permute.xlu0 %584
    %v586 = vlaneseq
    %v587 = vshrl.u32 %v586, 7
    %v588 = vsub.s32 1, %v587
    %v589 = vrot.slane %v575, %v588
    %591 = vbcast.lane.b32.xlu0 %v589, 256
    %v592 = vpop.permute.xlu0 %591
    %v593 = vlaneseq
    %v594 = vshrl.u32 %v593, 7
    %v595 = vsub.s32 2, %v594
    %v596 = vrot.slane %v575, %v595
    %598 = vbcast.lane.b32.xlu0 %v596, 256
    %v599 = vpop.permute.xlu0 %598
    %v600 = vlaneseq
    %v601 = vshrl.u32 %v600, 7
    %v602 = vsub.s32 3, %v601
    %v603 = vrot.slane %v575, %v602
    %605 = vbcast.lane.b32.xlu0 %v603, 256
    %v606 = vpop.permute.xlu0 %605
    %v607 = vlaneseq
    %v608 = vshrl.u32 %v607, 7
    %v609 = vsub.s32 4, %v608
    %v610 = vrot.slane %v575, %v609
    %612 = vbcast.lane.b32.xlu0 %v610, 256
    %v613 = vpop.permute.xlu0 %612
    %v614 = vlaneseq
    %v615 = vshrl.u32 %v614, 7
    %v616 = vsub.s32 5, %v615
    %v617 = vrot.slane %v575, %v616
    %619 = vbcast.lane.b32.xlu0 %v617, 256
    %v620 = vpop.permute.xlu0 %619
    %v621 = vlaneseq
    %v622 = vshrl.u32 %v621, 7
    %v623 = vsub.s32 6, %v622
    %v624 = vrot.slane %v575, %v623
    %626 = vbcast.lane.b32.xlu0 %v624, 256
    %v627 = vpop.permute.xlu0 %626
    %v628 = vlaneseq
    %v629 = vshrl.u32 %v628, 7
    %v630 = vsub.s32 7, %v629
    %v631 = vrot.slane %v575, %v630
    %633 = vbcast.lane.b32.xlu0 %v631, 256
    %v634 = vpop.permute.xlu0 %633
    %v635 = vmul.f32 %v585, %v363
    %v636 = vmul.f32 %v592, %v364
    %v637 = vmul.f32 %v599, %v365
    %v638 = vmul.f32 %v606, %v366
    %v639 = vmul.f32 %v613, %v367
    %v640 = vmul.f32 %v620, %v368
    %v641 = vmul.f32 %v627, %v369
    %v642 = vmul.f32 %v634, %v370
    %v643 = vsel %vm382, %v635, 0.0
    %v644 = vrot.slane %v643, 4
    %v645 = vadd.f32 %v643, %v644
    %v646 = vrot.slane %v645, 2
    %v647 = vadd.f32 %v645, %v646
    %v648 = vrot.slane %v647, 1
    %v649 = vadd.f32 %v647, %v648
    %v650 = vsel %vm382, %v636, 0.0
    %v651 = vrot.slane %v650, 4
    %v652 = vadd.f32 %v650, %v651
    %v653 = vrot.slane %v652, 2
    %v654 = vadd.f32 %v652, %v653
    %v655 = vrot.slane %v654, 1
    %v656 = vadd.f32 %v654, %v655
    %v657 = vsel %vm382, %v637, 0.0
    %v658 = vrot.slane %v657, 4
    %v659 = vadd.f32 %v657, %v658
    %v660 = vrot.slane %v659, 2
    %v661 = vadd.f32 %v659, %v660
    %v662 = vrot.slane %v661, 1
    %v663 = vadd.f32 %v661, %v662
    %v664 = vsel %vm382, %v638, 0.0
    %v665 = vrot.slane %v664, 4
    %v666 = vadd.f32 %v664, %v665
    %v667 = vrot.slane %v666, 2
    %v668 = vadd.f32 %v666, %v667
    %v669 = vrot.slane %v668, 1
    %v670 = vadd.f32 %v668, %v669
    %v671 = vsel %vm382, %v639, 0.0
    %v672 = vrot.slane %v671, 4
    %v673 = vadd.f32 %v671, %v672
    %v674 = vrot.slane %v673, 2
    %v675 = vadd.f32 %v673, %v674
    %v676 = vrot.slane %v675, 1
    %v677 = vadd.f32 %v675, %v676
    %v678 = vsel %vm382, %v640, 0.0
    %v679 = vrot.slane %v678, 4
    %v680 = vadd.f32 %v678, %v679
    %v681 = vrot.slane %v680, 2
    %v682 = vadd.f32 %v680, %v681
    %v683 = vrot.slane %v682, 1
    %v684 = vadd.f32 %v682, %v683
    %v685 = vsel %vm382, %v641, 0.0
    %v686 = vrot.slane %v685, 4
    %v687 = vadd.f32 %v685, %v686
    %v688 = vrot.slane %v687, 2
    %v689 = vadd.f32 %v687, %v688
    %v690 = vrot.slane %v689, 1
    %v691 = vadd.f32 %v689, %v690
    %v692 = vsel %vm382, %v642, 0.0
    %v693 = vrot.slane %v692, 4
    %v694 = vadd.f32 %v692, %v693
    %v695 = vrot.slane %v694, 2
    %v696 = vadd.f32 %v694, %v695
    %v697 = vrot.slane %v696, 1
    %v698 = vadd.f32 %v696, %v697
    %v699 = vld [vmem:[%s9] sm:$0xff]
    %v700 = vld [vmem:[%s9 + $0x8] sm:$0xff]
    %v701 = vld [vmem:[%s9 + $0x10] sm:$0xff]
    %v702 = vld [vmem:[%s9 + $0x18] sm:$0xff]
    %v703 = vlaneseq
    %v704 = vshrl.u32 %v703, 7
    %v705 = vsub.s32 2, %v704
    %v706 = vrot.slane %v99, %v705
    %v707 = vmul.f32 %v706, %v578
    %v716 = vsel %vm542, %v656, %v649
    %v717 = vsel %vm544, %v663, %v716
    %v718 = vsel %vm546, %v670, %v717
    %v719 = vsel %vm548, %v677, %v718
    %v720 = vsel %vm550, %v684, %v719
    %v721 = vsel %vm552, %v691, %v720
    %v722 = vsel %vm554, %v698, %v721
    %v723 = vsel %vm382, %v722, 0
    %725 = vmatprep.subr.mxu0 0.0
    %726 = vmatpush1.msra.mxu0 %v699
    %727 = vmatprep.subr.mxu0 0.0
    %728 = vmatpush1.msra.mxu0 %v700
    %729 = vmatprep.subr.mxu0 0.0
    %730 = vmatpush1.msra.mxu0 %v701
    %731 = vmatprep.subr.mxu0 0.0
    %732 = vmatpush1.msra.mxu0 %v702
    %733 = vmatprep.subr.mxu0 0.0
    %734 = vmatpush1.msra.mxu0 0.0
    %735 = vmatprep.subr.mxu0 0.0
    %736 = vmatpush1.msra.mxu0 0.0
    %737 = vmatprep.subr.mxu0 0.0
    %738 = vmatpush1.msra.mxu0 0.0
    %739 = vmatprep.subr.mxu0 0.0
    %740 = vmatpush1.msra.mxu0 0.0
    %741 = vmatprep.subr.mxu0 0.0
    %742 = vmatpush1.msra.mxu0 0.0
    %743 = vmatprep.subr.mxu0 0.0
    %744 = vmatpush1.msra.mxu0 0.0
    %745 = vmatprep.subr.mxu0 0.0
    %746 = vmatpush1.msra.mxu0 0.0
    %747 = vmatprep.subr.mxu0 0.0
    %748 = vmatpush1.msra.mxu0 0.0
    %749 = vmatprep.subr.mxu0 0.0
    %750 = vmatpush1.msra.mxu0 0.0
    %751 = vmatprep.subr.mxu0 0.0
    %752 = vmatpush1.msra.mxu0 0.0
    %753 = vmatprep.subr.mxu0 0.0
    %754 = vmatpush1.msra.mxu0 0.0
    %755 = vmatprep.subr.mxu0 0.0
    %756 = vmatpush1.msra.mxu0 0.0
    %757 = vmatprep.subr.mxu0 0.0
    %758 = vmatpush1.msra.mxu0 0.0
    %759 = vmatprep.subr.mxu0 0.0
    %760 = vmatpush1.msra.mxu0 0.0
    %761 = vmatprep.subr.mxu0 0.0
    %762 = vmatpush1.msra.mxu0 0.0
    %763 = vmatprep.subr.mxu0 0.0
    %764 = vmatpush1.msra.mxu0 0.0
    %765 = vmatprep.subr.mxu0 0.0
    %766 = vmatpush1.msra.mxu0 0.0
    %767 = vmatprep.subr.mxu0 0.0
    %768 = vmatpush1.msra.mxu0 0.0
    %769 = vmatprep.subr.mxu0 0.0
    %770 = vmatpush1.msra.mxu0 0.0
    %771 = vmatprep.subr.mxu0 0.0
    %772 = vmatpush1.msra.mxu0 0.0
    %773 = vmatprep.subr.mxu0 0.0
    %774 = vmatpush1.msra.mxu0 0.0
    %775 = vmatprep.subr.mxu0 0.0
    %776 = vmatpush1.msra.mxu0 0.0
    %777 = vmatprep.subr.mxu0 0.0
    %778 = vmatpush1.msra.mxu0 0.0
    %779 = vmatprep.subr.mxu0 0.0
    %780 = vmatpush1.msra.mxu0 0.0
    %781 = vmatprep.subr.mxu0 0.0
    %782 = vmatpush1.msra.mxu0 0.0
    %783 = vmatprep.subr.mxu0 0.0
    %784 = vmatpush1.msra.mxu0 0.0
    %785 = vmatprep.subr.mxu0 0.0
    %786 = vmatpush1.msra.mxu0 0.0
    %787 = vmatprep.subr.mxu0 0.0
    %788 = vmatpush1.msra.mxu0 0.0
    %789 = vmatprep.mubr.f32.mxu0 0.0
    %790 = vmatmul.mubr.f32.gmra.mrb[0].mxu0 %v723
    %v791 = vpop.f32.mrb[0].mxu0
    %v792 = vadd.f32 %v707, %v791
    %v793 = vpop.f32.mrb[0].mxu0
    %794 = vdwg.mxu0
    %vm795 = vcmp.gt.f32.partialorder %v792, 0.0
    %v796 = vmin.f32 %v792, 0.0
    %v797 = vmul.f32 %v796, 1.442695
    %v798 = vpow.pop %v797
    %v799 = vsub.f32 %v798, 1.0
    %v800 = vsel %vm795, %v792, %v799
    %v801 = vld [vmem:[#allocation7] sm:$0xff]
    %v802 = vld [vmem:[#allocation7 + $0x8] sm:$0xff]
    %v803 = vld [vmem:[#allocation7 + $0x10] sm:$0xff]
    %v804 = vld [vmem:[#allocation7 + $0x18] sm:$0xff]
    %v805 = vld [vmem:[#allocation8] sm:$0xff]
    %v806 = vld [vmem:[#allocation8 + $0x8] sm:$0xff]
    %v807 = vld [vmem:[#allocation8 + $0x10] sm:$0xff]
    %v808 = vld [vmem:[#allocation8 + $0x18] sm:$0xff]
    %v809 = vld [vmem:[%s12] sm:$0x3]
    %v810 = vlaneseq
    %v811 = vshrl.u32 %v810, 7
    %v812 = vsub.s32 0, %v811
    %v813 = vrot.slane %v809, %v812
    %v815 = vsel %vm382, %v800, 0
    %817 = vmatprep.subr.mxu0 0.0
    %818 = vmatpush1.msra.mxu0 %v801
    %819 = vmatprep.subr.mxu0 0.0
    %820 = vmatpush1.msra.mxu0 %v802
    %821 = vmatprep.subr.mxu0 0.0
    %822 = vmatpush1.msra.mxu0 %v803
    %823 = vmatprep.subr.mxu0 0.0
    %824 = vmatpush1.msra.mxu0 %v804
    %825 = vmatprep.subr.mxu0 0.0
    %826 = vmatpush1.msra.mxu0 0.0
    %827 = vmatprep.subr.mxu0 0.0
    %828 = vmatpush1.msra.mxu0 0.0
    %829 = vmatprep.subr.mxu0 0.0
    %830 = vmatpush1.msra.mxu0 0.0
    %831 = vmatprep.subr.mxu0 0.0
    %832 = vmatpush1.msra.mxu0 0.0
    %833 = vmatprep.subr.mxu0 0.0
    %834 = vmatpush1.msra.mxu0 0.0
    %835 = vmatprep.subr.mxu0 0.0
    %836 = vmatpush1.msra.mxu0 0.0
    %837 = vmatprep.subr.mxu0 0.0
    %838 = vmatpush1.msra.mxu0 0.0
    %839 = vmatprep.subr.mxu0 0.0
    %840 = vmatpush1.msra.mxu0 0.0
    %841 = vmatprep.subr.mxu0 0.0
    %842 = vmatpush1.msra.mxu0 0.0
    %843 = vmatprep.subr.mxu0 0.0
    %844 = vmatpush1.msra.mxu0 0.0
    %845 = vmatprep.subr.mxu0 0.0
    %846 = vmatpush1.msra.mxu0 0.0
    %847 = vmatprep.subr.mxu0 0.0
    %848 = vmatpush1.msra.mxu0 0.0
    %849 = vmatprep.subr.mxu0 0.0
    %850 = vmatpush1.msra.mxu0 0.0
    %851 = vmatprep.subr.mxu0 0.0
    %852 = vmatpush1.msra.mxu0 0.0
    %853 = vmatprep.subr.mxu0 0.0
    %854 = vmatpush1.msra.mxu0 0.0
    %855 = vmatprep.subr.mxu0 0.0
    %856 = vmatpush1.msra.mxu0 0.0
    %857 = vmatprep.subr.mxu0 0.0
    %858 = vmatpush1.msra.mxu0 0.0
    %859 = vmatprep.subr.mxu0 0.0
    %860 = vmatpush1.msra.mxu0 0.0
    %861 = vmatprep.subr.mxu0 0.0
    %862 = vmatpush1.msra.mxu0 0.0
    %863 = vmatprep.subr.mxu0 0.0
    %864 = vmatpush1.msra.mxu0 0.0
    %865 = vmatprep.subr.mxu0 0.0
    %866 = vmatpush1.msra.mxu0 0.0
    %867 = vmatprep.subr.mxu0 0.0
    %868 = vmatpush1.msra.mxu0 0.0
    %869 = vmatprep.subr.mxu0 0.0
    %870 = vmatpush1.msra.mxu0 0.0
    %871 = vmatprep.subr.mxu0 0.0
    %872 = vmatpush1.msra.mxu0 0.0
    %873 = vmatprep.subr.mxu0 0.0
    %874 = vmatpush1.msra.mxu0 0.0
    %875 = vmatprep.subr.mxu0 0.0
    %876 = vmatpush1.msra.mxu0 0.0
    %877 = vmatprep.subr.mxu0 0.0
    %878 = vmatpush1.msra.mxu0 0.0
    %879 = vmatprep.subr.mxu0 0.0
    %880 = vmatpush1.msra.mxu0 0.0
    %881 = vmatprep.mubr.f32.mxu0 0.0
    %882 = vmatmul.mubr.f32.gmra.mrb[0].mxu0 %v815
    %v883 = vpop.f32.mrb[0].mxu0
    %v884 = vadd.f32 %v813, %v883
    %v885 = vpop.f32.mrb[0].mxu0
    %886 = vdwg.mxu0
    %v887 = vlaneseq
    %v888 = vshrl.u32 %v887, 7
    %v889 = vsub.s32 1, %v888
    %v890 = vrot.slane %v809, %v889
    %891 = vmatprep.subr.mxu0 0.0
    %892 = vmatpush1.msra.mxu0 %v805
    %893 = vmatprep.subr.mxu0 0.0
    %894 = vmatpush1.msra.mxu0 %v806
    %895 = vmatprep.subr.mxu0 0.0
    %896 = vmatpush1.msra.mxu0 %v807
    %897 = vmatprep.subr.mxu0 0.0
    %898 = vmatpush1.msra.mxu0 %v808
    %899 = vmatprep.subr.mxu0 0.0
    %900 = vmatpush1.msra.mxu0 0.0
    %901 = vmatprep.subr.mxu0 0.0
    %902 = vmatpush1.msra.mxu0 0.0
    %903 = vmatprep.subr.mxu0 0.0
    %904 = vmatpush1.msra.mxu0 0.0
    %905 = vmatprep.subr.mxu0 0.0
    %906 = vmatpush1.msra.mxu0 0.0
    %907 = vmatprep.subr.mxu0 0.0
    %908 = vmatpush1.msra.mxu0 0.0
    %909 = vmatprep.subr.mxu0 0.0
    %910 = vmatpush1.msra.mxu0 0.0
    %911 = vmatprep.subr.mxu0 0.0
    %912 = vmatpush1.msra.mxu0 0.0
    %913 = vmatprep.subr.mxu0 0.0
    %914 = vmatpush1.msra.mxu0 0.0
    %915 = vmatprep.subr.mxu0 0.0
    %916 = vmatpush1.msra.mxu0 0.0
    %917 = vmatprep.subr.mxu0 0.0
    %918 = vmatpush1.msra.mxu0 0.0
    %919 = vmatprep.subr.mxu0 0.0
    %920 = vmatpush1.msra.mxu0 0.0
    %921 = vmatprep.subr.mxu0 0.0
    %922 = vmatpush1.msra.mxu0 0.0
    %923 = vmatprep.subr.mxu0 0.0
    %924 = vmatpush1.msra.mxu0 0.0
    %925 = vmatprep.subr.mxu0 0.0
    %926 = vmatpush1.msra.mxu0 0.0
    %927 = vmatprep.subr.mxu0 0.0
    %928 = vmatpush1.msra.mxu0 0.0
    %929 = vmatprep.subr.mxu0 0.0
    %930 = vmatpush1.msra.mxu0 0.0
    %931 = vmatprep.subr.mxu0 0.0
    %932 = vmatpush1.msra.mxu0 0.0
    %933 = vmatprep.subr.mxu0 0.0
    %934 = vmatpush1.msra.mxu0 0.0
    %935 = vmatprep.subr.mxu0 0.0
    %936 = vmatpush1.msra.mxu0 0.0
    %937 = vmatprep.subr.mxu0 0.0
    %938 = vmatpush1.msra.mxu0 0.0
    %939 = vmatprep.subr.mxu0 0.0
    %940 = vmatpush1.msra.mxu0 0.0
    %941 = vmatprep.subr.mxu0 0.0
    %942 = vmatpush1.msra.mxu0 0.0
    %943 = vmatprep.subr.mxu0 0.0
    %944 = vmatpush1.msra.mxu0 0.0
    %945 = vmatprep.subr.mxu0 0.0
    %946 = vmatpush1.msra.mxu0 0.0
    %947 = vmatprep.subr.mxu0 0.0
    %948 = vmatpush1.msra.mxu0 0.0
    %949 = vmatprep.subr.mxu0 0.0
    %950 = vmatpush1.msra.mxu0 0.0
    %951 = vmatprep.subr.mxu0 0.0
    %952 = vmatpush1.msra.mxu0 0.0
    %953 = vmatprep.subr.mxu0 0.0
    %954 = vmatpush1.msra.mxu0 0.0
    %955 = vmatprep.mubr.f32.mxu0 0.0
    %956 = vmatmul.mubr.f32.gmra.mrb[0].mxu0 %v384
    %v957 = vpop.f32.mrb[0].mxu0
    %v958 = vadd.f32 %v890, %v957
    %v959 = vpop.f32.mrb[0].mxu0
    %960 = vdwg.mxu0
    %v961 = vadd.f32 %v884, %v958
    %v962 = vxor.u32 %v961, 2147483648
    %v963 = vmul.f32 %v962, 1.442695
    %v964 = vpow.pop %v963
    %v965 = vadd.f32 %v964, 1.0
    %v966 = vrcp.pop %v965
    %v967 = vmul.f32 1.0, %v966
    %969 = vrot.lane.b32.xlu0 %v958, 64
    %v970 = vpop.permute.xlu0 %969
    %v972 = vmul.f32 %v967, %v970
    %974 = vrot.lane.b32.xlu0 %v972, 64
    %v975 = vpop.permute.xlu0 %974
    %v977 = vadd.f32 %v884, %v975
    %v978 = vtanh.pop %v977
    %v979 = vsub.f32 1.0, %v967
    %981 = vrot.lane.b32.xlu0 %v978, 96
    %v982 = vpop.permute.xlu0 %981
    %v984 = vmul.f32 %v979, %v982
    %985 = vrot.lane.b32.xlu0 %v183, 32
    %v986 = vpop.permute.xlu0 %985
    %v988 = vmul.f32 %v967, %v986
    %v989 = vadd.f32 %v984, %v988
    %v990 = vmax.f32 %v989, 0.0
    %992 = vrot.lane.b32.xlu0 %v990, 96
    %v993 = vpop.permute.xlu0 %992
    %995 = vst.msk [vmem:[%s13] sm:$0xff] %vm382, %v993
    // Predicated region
    $region70: #{attentive_fp_forward.3} parent=1 // pred_check
      _
    $region71: #{attentive_fp_forward.3} parent=1 // pred_check_branch
      %997 = sbr.rel (0) target = $region73
    $region72: #{attentive_fp_forward.3} parent=1 // pred_region
      _
    $region73: #{attentive_fp_forward.3} parent=1 // pred_fallthru
      _
    // Predicated region
    $region74: #{attentive_fp_forward.3} parent=1 // pred_check
      _
    $region75: #{attentive_fp_forward.3} parent=1 // pred_check_branch
      %999 = sbr.rel (0) target = $region77
    $region76: #{attentive_fp_forward.3} parent=1 // pred_region
      _
    $region77: #{attentive_fp_forward.3} parent=1 // pred_fallthru
      _
    %1000 = vsyncpa [#allocation4], 1
    %1001 = vsyncpa [#allocation6], 1
    %1002 = vsyncpa [#allocation9], 1

// kernel: attentive_fp_forward.4
$region0: #{attentive_fp_forward.4}
  #allocation0 [shape = 'u32[]', space=smem, size = 0x4, offset = 0x4, fixed_abs, tag = 'smem constant byte address 0x4 - core index']
  #allocation1 [shape = 'u32[144,128]{1,0:T(1,128)}', space=vmem, size = 0x12000, scoped, tag = 'internal scratch']
  #allocation2 [shape = 'f32[1,1,1]{2,1,0:T(1,128)S(1)}', space=vmem, size = 0x200, scoped, tag = 'scoped memory for attentive_fp_forward.4']
  %s0 = inlined_call_operand.vmem [shape: f32[8,32], index: 0, kind: input, shape index: {}]
  %s1 = inlined_call_operand.vmem [shape: f32[8,8], index: 1, kind: input, shape index: {}]
  %s2 = inlined_call_operand.vmem [shape: f32[1,32,33], index: 2, kind: input, shape index: {}]
  %s3 = inlined_call_operand.vmem [shape: f32[1,1,32], index: 3, kind: input, shape index: {}]
  %s4 = inlined_call_operand.vmem [shape: f32[1,1,32], index: 4, kind: input, shape index: {}]
  %s5 = inlined_call_operand.<no memory space> [shape: f32[1,1,1], index: 5, kind: input, shape index: {}]
  %s6 = inlined_call_operand.vmem [shape: f32[1,32,96], index: 6, kind: input, shape index: {}]
  %s7 = inlined_call_operand.vmem [shape: f32[1,32,96], index: 7, kind: input, shape index: {}]
  %s8 = inlined_call_operand.vmem [shape: f32[1,2,96], index: 8, kind: input, shape index: {}]
  %s9 = inlined_call_operand.vmem [shape: f32[8,32], index: 9, kind: output, shape index: {}]
  %s10 = sld [smem:[#allocation0]]
  $region50: #{attentive_fp_forward.4} parent=0
    _
  %s12 = ssub.s32 1, %s10
  %s13 = scalar_select 0, %s12, %s10
  %v14 = vstv %s5
  %15 = vst [vmem:[#allocation2] sm:$0x1] %v14
  // Predicated region
  $region2: #{attentive_fp_forward.4} parent=0 // pred_check
    _
  $region3: #{attentive_fp_forward.4} parent=0 // pred_check_branch
    %17 = sbr.rel (0) target = $region5
  $region4: #{attentive_fp_forward.4} parent=0 // pred_region
    _
  $region5: #{attentive_fp_forward.4} parent=0 // pred_fallthru
    _
  // Predicated region
  $region6: #{attentive_fp_forward.4} parent=0 // pred_check
    _
  $region7: #{attentive_fp_forward.4} parent=0 // pred_check_branch
    %19 = sbr.rel (0) target = $region9
  $region8: #{attentive_fp_forward.4} parent=0 // pred_region
    _
  $region9: #{attentive_fp_forward.4} parent=0 // pred_fallthru
    _
  // Predicated region
  $region10: #{attentive_fp_forward.4} parent=0 // pred_check
    _
  $region11: #{attentive_fp_forward.4} parent=0 // pred_check_branch
    %21 = sbr.rel (0) target = $region13
  $region12: #{attentive_fp_forward.4} parent=0 // pred_region
    _
  $region13: #{attentive_fp_forward.4} parent=0 // pred_fallthru
    _
  // Predicated region
  $region14: #{attentive_fp_forward.4} parent=0 // pred_check
    _
  $region15: #{attentive_fp_forward.4} parent=0 // pred_check_branch
    %23 = sbr.rel (0) target = $region17
  $region16: #{attentive_fp_forward.4} parent=0 // pred_region
    _
  $region17: #{attentive_fp_forward.4} parent=0 // pred_fallthru
    _
  // Predicated region
  $region18: #{attentive_fp_forward.4} parent=0 // pred_check
    _
  $region19: #{attentive_fp_forward.4} parent=0 // pred_check_branch
    %25 = sbr.rel (0) target = $region21
  $region20: #{attentive_fp_forward.4} parent=0 // pred_region
    _
  $region21: #{attentive_fp_forward.4} parent=0 // pred_fallthru
    _
  // Predicated region
  $region22: #{attentive_fp_forward.4} parent=0 // pred_check
    _
  $region23: #{attentive_fp_forward.4} parent=0 // pred_check_branch
    %27 = sbr.rel (0) target = $region25
  $region24: #{attentive_fp_forward.4} parent=0 // pred_region
    _
  $region25: #{attentive_fp_forward.4} parent=0 // pred_fallthru
    _
  // Predicated region
  $region26: #{attentive_fp_forward.4} parent=0 // pred_check
    _
  $region27: #{attentive_fp_forward.4} parent=0 // pred_check_branch
    %29 = sbr.rel (0) target = $region29
  $region28: #{attentive_fp_forward.4} parent=0 // pred_region
    _
  $region29: #{attentive_fp_forward.4} parent=0 // pred_fallthru
    _
  // Predicated region
  $region30: #{attentive_fp_forward.4} parent=0 // pred_check
    _
  $region31: #{attentive_fp_forward.4} parent=0 // pred_check_branch
    %31 = sbr.rel (0) target = $region33
  $region32: #{attentive_fp_forward.4} parent=0 // pred_region
    _
  $region33: #{attentive_fp_forward.4} parent=0 // pred_fallthru
    _
  // Predicated region
  $region34: #{attentive_fp_forward.4} parent=0 // pred_check
    _
  $region35: #{attentive_fp_forward.4} parent=0 // pred_check_branch
    %33 = sbr.rel (0) target = $region37
  $region36: #{attentive_fp_forward.4} parent=0 // pred_region
    _
  $region37: #{attentive_fp_forward.4} parent=0 // pred_fallthru
    _
  %p34 = scmp.eq.s32.totalorder 0, 0
  // Predicated region
  $region38: #{attentive_fp_forward.4} parent=0 // pred_check
    %p35 = pneg %p34
  $region39: #{attentive_fp_forward.4} parent=0 // pred_check_branch
    %37 = sbr.rel (%p35) target = $region41
  $region40: #{attentive_fp_forward.4} parent=0 // pred_region
    %v38 = vld [vmem:[%s0] sm:$0xff]
    %vm39 = vcmask 261120
    %40 = vst.msk [vmem:[%s9] sm:$0xff] %vm39, %v38
  $region41: #{attentive_fp_forward.4} parent=0 // pred_fallthru
    _
  %v41 = vld [vmem:[%s9] sm:$0xff]
  %v42 = vld [vmem:[%s1] sm:$0xff]
  %v43 = vld [vmem:[%s2] sm:$0xff]
  %v44 = vld [vmem:[%s2 + $0x8] sm:$0xff]
  %v45 = vld [vmem:[%s2 + $0x10] sm:$0xff]
  %v46 = vld [vmem:[%s2 + $0x18] sm:$0xff]
  %vm47 = vcmask 261120
  %v49 = vsel %vm47, %v41, 0
  %51 = vmatprep.subr.mxu0 0.0
  %52 = vmatpush1.msra.mxu0 %v43
  %53 = vmatprep.subr.mxu0 0.0
  %54 = vmatpush1.msra.mxu0 %v44
  %55 = vmatprep.subr.mxu0 0.0
  %56 = vmatpush1.msra.mxu0 %v45
  %57 = vmatprep.subr.mxu0 0.0
  %58 = vmatpush1.msra.mxu0 %v46
  %59 = vmatprep.subr.mxu0 0.0
  %60 = vmatpush1.msra.mxu0 0.0
  %61 = vmatprep.subr.mxu0 0.0
  %62 = vmatpush1.msra.mxu0 0.0
  %63 = vmatprep.subr.mxu0 0.0
  %64 = vmatpush1.msra.mxu0 0.0
  %65 = vmatprep.subr.mxu0 0.0
  %66 = vmatpush1.msra.mxu0 0.0
  %67 = vmatprep.subr.mxu0 0.0
  %68 = vmatpush1.msra.mxu0 0.0
  %69 = vmatprep.subr.mxu0 0.0
  %70 = vmatpush1.msra.mxu0 0.0
  %71 = vmatprep.subr.mxu0 0.0
  %72 = vmatpush1.msra.mxu0 0.0
  %73 = vmatprep.subr.mxu0 0.0
  %74 = vmatpush1.msra.mxu0 0.0
  %75 = vmatprep.subr.mxu0 0.0
  %76 = vmatpush1.msra.mxu0 0.0
  %77 = vmatprep.subr.mxu0 0.0
  %78 = vmatpush1.msra.mxu0 0.0
  %79 = vmatprep.subr.mxu0 0.0
  %80 = vmatpush1.msra.mxu0 0.0
  %81 = vmatprep.subr.mxu0 0.0
  %82 = vmatpush1.msra.mxu0 0.0
  %83 = vmatprep.subr.mxu0 0.0
  %84 = vmatpush1.msra.mxu0 0.0
  %85 = vmatprep.subr.mxu0 0.0
  %86 = vmatpush1.msra.mxu0 0.0
  %87 = vmatprep.subr.mxu0 0.0
  %88 = vmatpush1.msra.mxu0 0.0
  %89 = vmatprep.subr.mxu0 0.0
  %90 = vmatpush1.msra.mxu0 0.0
  %91 = vmatprep.subr.mxu0 0.0
  %92 = vmatpush1.msra.mxu0 0.0
  %93 = vmatprep.subr.mxu0 0.0
  %94 = vmatpush1.msra.mxu0 0.0
  %95 = vmatprep.subr.mxu0 0.0
  %96 = vmatpush1.msra.mxu0 0.0
  %97 = vmatprep.subr.mxu0 0.0
  %98 = vmatpush1.msra.mxu0 0.0
  %99 = vmatprep.subr.mxu0 0.0
  %100 = vmatpush1.msra.mxu0 0.0
  %101 = vmatprep.subr.mxu0 0.0
  %102 = vmatpush1.msra.mxu0 0.0
  %103 = vmatprep.subr.mxu0 0.0
  %104 = vmatpush1.msra.mxu0 0.0
  %105 = vmatprep.subr.mxu0 0.0
  %106 = vmatpush1.msra.mxu0 0.0
  %107 = vmatprep.subr.mxu0 0.0
  %108 = vmatpush1.msra.mxu0 0.0
  %109 = vmatprep.subr.mxu0 0.0
  %110 = vmatpush1.msra.mxu0 0.0
  %111 = vmatprep.subr.mxu0 0.0
  %112 = vmatpush1.msra.mxu0 0.0
  %113 = vmatprep.subr.mxu0 0.0
  %114 = vmatpush1.msra.mxu0 0.0
  %115 = vmatprep.mubr.f32.mxu0 0.0
  %116 = vmatmul.mubr.f32.gmra.mrb[0].mxu0 %v49
  %v117 = vpop.f32.mrb[0].mxu0
  %v118 = vadd.f32 0.0, %v117
  %v119 = vpop.f32.mrb[0].mxu0
  %120 = vdwg.mxu0
  %v121 = vld [vmem:[%s4] sm:$0x1]
  %v123 = vlaneseq
  %v124 = vshrl.u32 %v123, 7
  %v125 = vsub.s32 0, %v124
  %v126 = vrot.slane %v121, %v125
  %v128 = vadd.f32 %v118, %v126
  %v129 = vld [vmem:[%s3] sm:$0x1]
  %v131 = vsel %vm47, %v129, 0
  %133 = vmatprep.subr.mxu0 0.0
  %134 = vmatpush1.xpose.msra.mxu0 %v49
  %135 = vmatprep.subr.mxu0 0.0
  %136 = vmatpush1.xpose.msra.mxu0 0.0
  %137 = vmatprep.subr.mxu0 0.0
  %138 = vmatpush1.xpose.msra.mxu0 0.0
  %139 = vmatprep.subr.mxu0 0.0
  %140 = vmatpush1.xpose.msra.mxu0 0.0
  %141 = vmatprep.subr.mxu0 0.0
  %142 = vmatpush1.xpose.msra.mxu0 0.0
  %143 = vmatprep.subr.mxu0 0.0
  %144 = vmatpush1.xpose.msra.mxu0 0.0
  %145 = vmatprep.subr.mxu0 0.0
  %146 = vmatpush1.xpose.msra.mxu0 0.0
  %147 = vmatprep.subr.mxu0 0.0
  %148 = vmatpush1.xpose.msra.mxu0 0.0
  %149 = vmatprep.subr.mxu0 0.0
  %150 = vmatpush1.xpose.msra.mxu0 0.0
  %151 = vmatprep.subr.mxu0 0.0
  %152 = vmatpush1.xpose.msra.mxu0 0.0
  %153 = vmatprep.subr.mxu0 0.0
  %154 = vmatpush1.xpose.msra.mxu0 0.0
  %155 = vmatprep.subr.mxu0 0.0
  %156 = vmatpush1.xpose.msra.mxu0 0.0
  %157 = vmatprep.subr.mxu0 0.0
  %158 = vmatpush1.xpose.msra.mxu0 0.0
  %159 = vmatprep.subr.mxu0 0.0
  %160 = vmatpush1.xpose.msra.mxu0 0.0
  %161 = vmatprep.subr.mxu0 0.0
  %162 = vmatpush1.xpose.msra.mxu0 0.0
  %163 = vmatprep.subr.mxu0 0.0
  %164 = vmatpush1.xpose.msra.mxu0 0.0
  %165 = vmatprep.subr.mxu0 0.0
  %166 = vmatpush1.xpose.msra.mxu0 0.0
  %167 = vmatprep.subr.mxu0 0.0
  %168 = vmatpush1.xpose.msra.mxu0 0.0
  %169 = vmatprep.subr.mxu0 0.0
  %170 = vmatpush1.xpose.msra.mxu0 0.0
  %171 = vmatprep.subr.mxu0 0.0
  %172 = vmatpush1.xpose.msra.mxu0 0.0
  %173 = vmatprep.subr.mxu0 0.0
  %174 = vmatpush1.xpose.msra.mxu0 0.0
  %175 = vmatprep.subr.mxu0 0.0
  %176 = vmatpush1.xpose.msra.mxu0 0.0
  %177 = vmatprep.subr.mxu0 0.0
  %178 = vmatpush1.xpose.msra.mxu0 0.0
  %179 = vmatprep.subr.mxu0 0.0
  %180 = vmatpush1.xpose.msra.mxu0 0.0
  %181 = vmatprep.subr.mxu0 0.0
  %182 = vmatpush1.xpose.msra.mxu0 0.0
  %183 = vmatprep.subr.mxu0 0.0
  %184 = vmatpush1.xpose.msra.mxu0 0.0
  %185 = vmatprep.subr.mxu0 0.0
  %186 = vmatpush1.xpose.msra.mxu0 0.0
  %187 = vmatprep.subr.mxu0 0.0
  %188 = vmatpush1.xpose.msra.mxu0 0.0
  %189 = vmatprep.subr.mxu0 0.0
  %190 = vmatpush1.xpose.msra.mxu0 0.0
  %191 = vmatprep.subr.mxu0 0.0
  %192 = vmatpush1.xpose.msra.mxu0 0.0
  %193 = vmatprep.subr.mxu0 0.0
  %194 = vmatpush1.xpose.msra.mxu0 0.0
  %195 = vmatprep.subr.mxu0 0.0
  %196 = vmatpush1.xpose.msra.mxu0 0.0
  %197 = vmatprep.mubr.f32.mxu0 0.0
  %198 = vmatmul.mubr.f32.gmra.mrb[0].mxu0 %v131
  %v199 = vpop.f32.mrb[0].mxu0
  %v200 = vadd.f32 0.0, %v199
  %v201 = vpop.f32.mrb[0].mxu0
  %202 = vdwg.mxu0
  %204 = vset.pattern.permute.xlu0 32
  %205 = vperm.xlu0 %204, %v118
  %v206 = vpop.permute.xlu0 %205
  %v208 = vlaneseq
  %v209 = vshrl.u32 %v208, 7
  %v210 = vsub.s32 0, %v209
  %v211 = vrot.slane %v200, %v210
  %v212 = vadd.f32 %v206, %v211
  %v213 = vld [vmem:[#allocation2] sm:$0x1]
  %v215 = vlaneseq
  %v216 = vshrl.u32 %v215, 7
  %v217 = vsub.s32 0, %v216
  %v218 = vrot.slane %v213, %v217
  %219 = vset.pattern.permute.xlu0 0
  %220 = vperm.xlu0 %219, %v218
  %v221 = vpop.permute.xlu0 %220
  %v223 = vadd.f32 %v212, %v221
  %vm224 = vcmp.gt.f32.partialorder %v223, 0.0
  %v225 = vmul.f32 %v223, 0.01
  %v226 = vsel %vm224, %v223, %v225
  %vm227 = vcmp.gt.f32.partialorder %v42, 0.0
  %v228 = vsel %vm227, %v226, -1e+30
  %vm229 = vcmask 64512
  %v230 = vsel %vm229, %v228, -inf
  %231 = vmax.xlane.f32.xlu0 %v230
  %v232 = vpop.xlane.xlu0 %231
  %v233 = vsub.f32 %v228, %v232
  %v234 = vmul.f32 %v233, 1.442695
  %v235 = vpow.pop %v234
  %v236 = vsel %vm227, %v235, 0.0
  %v237 = vsel %vm229, %v236, 0.0
  %238 = vadd.xlane.f32.xlu0 %v237
  %v239 = vpop.xlane.xlu0 %238
  %v240 = vmax.f32 %v239, 1e-30
  %v241 = vrcp.pop %v240
  %v242 = vmul.f32 %v236, %v241
  %v244 = vsel %vm229, %v242, 0
  %246 = vmatprep.subr.mxu0 0.0
  %247 = vmatpush1.msra.mxu0 %v128
  %248 = vmatprep.subr.mxu0 0.0
  %249 = vmatpush1.msra.mxu0 0.0
  %250 = vmatprep.subr.mxu0 0.0
  %251 = vmatpush1.msra.mxu0 0.0
  %252 = vmatprep.subr.mxu0 0.0
  %253 = vmatpush1.msra.mxu0 0.0
  %254 = vmatprep.subr.mxu0 0.0
  %255 = vmatpush1.msra.mxu0 0.0
  %256 = vmatprep.subr.mxu0 0.0
  %257 = vmatpush1.msra.mxu0 0.0
  %258 = vmatprep.subr.mxu0 0.0
  %259 = vmatpush1.msra.mxu0 0.0
  %260 = vmatprep.subr.mxu0 0.0
  %261 = vmatpush1.msra.mxu0 0.0
  %262 = vmatprep.subr.mxu0 0.0
  %263 = vmatpush1.msra.mxu0 0.0
  %264 = vmatprep.subr.mxu0 0.0
  %265 = vmatpush1.msra.mxu0 0.0
  %266 = vmatprep.subr.mxu0 0.0
  %267 = vmatpush1.msra.mxu0 0.0
  %268 = vmatprep.subr.mxu0 0.0
  %269 = vmatpush1.msra.mxu0 0.0
  %270 = vmatprep.subr.mxu0 0.0
  %271 = vmatpush1.msra.mxu0 0.0
  %272 = vmatprep.subr.mxu0 0.0
  %273 = vmatpush1.msra.mxu0 0.0
  %274 = vmatprep.subr.mxu0 0.0
  %275 = vmatpush1.msra.mxu0 0.0
  %276 = vmatprep.subr.mxu0 0.0
  %277 = vmatpush1.msra.mxu0 0.0
  %278 = vmatprep.subr.mxu0 0.0
  %279 = vmatpush1.msra.mxu0 0.0
  %280 = vmatprep.subr.mxu0 0.0
  %281 = vmatpush1.msra.mxu0 0.0
  %282 = vmatprep.subr.mxu0 0.0
  %283 = vmatpush1.msra.mxu0 0.0
  %284 = vmatprep.subr.mxu0 0.0
  %285 = vmatpush1.msra.mxu0 0.0
  %286 = vmatprep.subr.mxu0 0.0
  %287 = vmatpush1.msra.mxu0 0.0
  %288 = vmatprep.subr.mxu0 0.0
  %289 = vmatpush1.msra.mxu0 0.0
  %290 = vmatprep.subr.mxu0 0.0
  %291 = vmatpush1.msra.mxu0 0.0
  %292 = vmatprep.subr.mxu0 0.0
  %293 = vmatpush1.msra.mxu0 0.0
  %294 = vmatprep.subr.mxu0 0.0
  %295 = vmatpush1.msra.mxu0 0.0
  %296 = vmatprep.subr.mxu0 0.0
  %297 = vmatpush1.msra.mxu0 0.0
  %298 = vmatprep.subr.mxu0 0.0
  %299 = vmatpush1.msra.mxu0 0.0
  %300 = vmatprep.subr.mxu0 0.0
  %301 = vmatpush1.msra.mxu0 0.0
  %302 = vmatprep.subr.mxu0 0.0
  %303 = vmatpush1.msra.mxu0 0.0
  %304 = vmatprep.subr.mxu0 0.0
  %305 = vmatpush1.msra.mxu0 0.0
  %306 = vmatprep.subr.mxu0 0.0
  %307 = vmatpush1.msra.mxu0 0.0
  %308 = vmatprep.subr.mxu0 0.0
  %309 = vmatpush1.msra.mxu0 0.0
  %310 = vmatprep.mubr.f32.mxu0 0.0
  %311 = vmatmul.mubr.f32.gmra.mrb[0].mxu0 %v244
  %v312 = vpop.f32.mrb[0].mxu0
  %v313 = vadd.f32 0.0, %v312
  %v314 = vpop.f32.mrb[0].mxu0
  %315 = vdwg.mxu0
  %vm316 = vcmp.gt.f32.partialorder %v313, 0.0
  %v317 = vmin.f32 %v313, 0.0
  %v318 = vmul.f32 %v317, 1.442695
  %v319 = vpow.pop %v318
  %v320 = vsub.f32 %v319, 1.0
  %v321 = vsel %vm316, %v313, %v320
  %v322 = vld [vmem:[%s6] sm:$0xff]
  %v323 = vld [vmem:[%s6 + $0x8] sm:$0xff]
  %v324 = vld [vmem:[%s6 + $0x10] sm:$0xff]
  %v325 = vld [vmem:[%s6 + $0x18] sm:$0xff]
  %v326 = vld [vmem:[%s7] sm:$0xff]
  %v327 = vld [vmem:[%s7 + $0x8] sm:$0xff]
  %v328 = vld [vmem:[%s7 + $0x10] sm:$0xff]
  %v329 = vld [vmem:[%s7 + $0x18] sm:$0xff]
  %v330 = vld [vmem:[%s8] sm:$0x3]
  %v331 = vlaneseq
  %v332 = vshrl.u32 %v331, 7
  %v333 = vsub.s32 0, %v332
  %v334 = vrot.slane %v330, %v333
  %v336 = vsel %vm47, %v321, 0
  %338 = vmatprep.subr.mxu0 0.0
  %339 = vmatpush1.msra.mxu0 %v322
  %340 = vmatprep.subr.mxu0 0.0
  %341 = vmatpush1.msra.mxu0 %v323
  %342 = vmatprep.subr.mxu0 0.0
  %343 = vmatpush1.msra.mxu0 %v324
  %344 = vmatprep.subr.mxu0 0.0
  %345 = vmatpush1.msra.mxu0 %v325
  %346 = vmatprep.subr.mxu0 0.0
  %347 = vmatpush1.msra.mxu0 0.0
  %348 = vmatprep.subr.mxu0 0.0
  %349 = vmatpush1.msra.mxu0 0.0
  %350 = vmatprep.subr.mxu0 0.0
  %351 = vmatpush1.msra.mxu0 0.0
  %352 = vmatprep.subr.mxu0 0.0
  %353 = vmatpush1.msra.mxu0 0.0
  %354 = vmatprep.subr.mxu0 0.0
  %355 = vmatpush1.msra.mxu0 0.0
  %356 = vmatprep.subr.mxu0 0.0
  %357 = vmatpush1.msra.mxu0 0.0
  %358 = vmatprep.subr.mxu0 0.0
  %359 = vmatpush1.msra.mxu0 0.0
  %360 = vmatprep.subr.mxu0 0.0
  %361 = vmatpush1.msra.mxu0 0.0
  %362 = vmatprep.subr.mxu0 0.0
  %363 = vmatpush1.msra.mxu0 0.0
  %364 = vmatprep.subr.mxu0 0.0
  %365 = vmatpush1.msra.mxu0 0.0
  %366 = vmatprep.subr.mxu0 0.0
  %367 = vmatpush1.msra.mxu0 0.0
  %368 = vmatprep.subr.mxu0 0.0
  %369 = vmatpush1.msra.mxu0 0.0
  %370 = vmatprep.subr.mxu0 0.0
  %371 = vmatpush1.msra.mxu0 0.0
  %372 = vmatprep.subr.mxu0 0.0
  %373 = vmatpush1.msra.mxu0 0.0
  %374 = vmatprep.subr.mxu0 0.0
  %375 = vmatpush1.msra.mxu0 0.0
  %376 = vmatprep.subr.mxu0 0.0
  %377 = vmatpush1.msra.mxu0 0.0
  %378 = vmatprep.subr.mxu0 0.0
  %379 = vmatpush1.msra.mxu0 0.0
  %380 = vmatprep.subr.mxu0 0.0
  %381 = vmatpush1.msra.mxu0 0.0
  %382 = vmatprep.subr.mxu0 0.0
  %383 = vmatpush1.msra.mxu0 0.0
  %384 = vmatprep.subr.mxu0 0.0
  %385 = vmatpush1.msra.mxu0 0.0
  %386 = vmatprep.subr.mxu0 0.0
  %387 = vmatpush1.msra.mxu0 0.0
  %388 = vmatprep.subr.mxu0 0.0
  %389 = vmatpush1.msra.mxu0 0.0
  %390 = vmatprep.subr.mxu0 0.0
  %391 = vmatpush1.msra.mxu0 0.0
  %392 = vmatprep.subr.mxu0 0.0
  %393 = vmatpush1.msra.mxu0 0.0
  %394 = vmatprep.subr.mxu0 0.0
  %395 = vmatpush1.msra.mxu0 0.0
  %396 = vmatprep.subr.mxu0 0.0
  %397 = vmatpush1.msra.mxu0 0.0
  %398 = vmatprep.subr.mxu0 0.0
  %399 = vmatpush1.msra.mxu0 0.0
  %400 = vmatprep.subr.mxu0 0.0
  %401 = vmatpush1.msra.mxu0 0.0
  %402 = vmatprep.mubr.f32.mxu0 0.0
  %403 = vmatmul.mubr.f32.gmra.mrb[0].mxu0 %v336
  %v404 = vpop.f32.mrb[0].mxu0
  %v405 = vadd.f32 %v334, %v404
  %v406 = vpop.f32.mrb[0].mxu0
  %407 = vdwg.mxu0
  %v408 = vlaneseq
  %v409 = vshrl.u32 %v408, 7
  %v410 = vsub.s32 1, %v409
  %v411 = vrot.slane %v330, %v410
  %412 = vmatprep.subr.mxu0 0.0
  %413 = vmatpush1.msra.mxu0 %v326
  %414 = vmatprep.subr.mxu0 0.0
  %415 = vmatpush1.msra.mxu0 %v327
  %416 = vmatprep.subr.mxu0 0.0
  %417 = vmatpush1.msra.mxu0 %v328
  %418 = vmatprep.subr.mxu0 0.0
  %419 = vmatpush1.msra.mxu0 %v329
  %420 = vmatprep.subr.mxu0 0.0
  %421 = vmatpush1.msra.mxu0 0.0
  %422 = vmatprep.subr.mxu0 0.0
  %423 = vmatpush1.msra.mxu0 0.0
  %424 = vmatprep.subr.mxu0 0.0
  %425 = vmatpush1.msra.mxu0 0.0
  %426 = vmatprep.subr.mxu0 0.0
  %427 = vmatpush1.msra.mxu0 0.0
  %428 = vmatprep.subr.mxu0 0.0
  %429 = vmatpush1.msra.mxu0 0.0
  %430 = vmatprep.subr.mxu0 0.0
  %431 = vmatpush1.msra.mxu0 0.0
  %432 = vmatprep.subr.mxu0 0.0
  %433 = vmatpush1.msra.mxu0 0.0
  %434 = vmatprep.subr.mxu0 0.0
  %435 = vmatpush1.msra.mxu0 0.0
  %436 = vmatprep.subr.mxu0 0.0
  %437 = vmatpush1.msra.mxu0 0.0
  %438 = vmatprep.subr.mxu0 0.0
  %439 = vmatpush1.msra.mxu0 0.0
  %440 = vmatprep.subr.mxu0 0.0
  %441 = vmatpush1.msra.mxu0 0.0
  %442 = vmatprep.subr.mxu0 0.0
  %443 = vmatpush1.msra.mxu0 0.0
  %444 = vmatprep.subr.mxu0 0.0
  %445 = vmatpush1.msra.mxu0 0.0
  %446 = vmatprep.subr.mxu0 0.0
  %447 = vmatpush1.msra.mxu0 0.0
  %448 = vmatprep.subr.mxu0 0.0
  %449 = vmatpush1.msra.mxu0 0.0
  %450 = vmatprep.subr.mxu0 0.0
  %451 = vmatpush1.msra.mxu0 0.0
  %452 = vmatprep.subr.mxu0 0.0
  %453 = vmatpush1.msra.mxu0 0.0
  %454 = vmatprep.subr.mxu0 0.0
  %455 = vmatpush1.msra.mxu0 0.0
  %456 = vmatprep.subr.mxu0 0.0
  %457 = vmatpush1.msra.mxu0 0.0
  %458 = vmatprep.subr.mxu0 0.0
  %459 = vmatpush1.msra.mxu0 0.0
  %460 = vmatprep.subr.mxu0 0.0
  %461 = vmatpush1.msra.mxu0 0.0
  %462 = vmatprep.subr.mxu0 0.0
  %463 = vmatpush1.msra.mxu0 0.0
  %464 = vmatprep.subr.mxu0 0.0
  %465 = vmatpush1.msra.mxu0 0.0
  %466 = vmatprep.subr.mxu0 0.0
  %467 = vmatpush1.msra.mxu0 0.0
  %468 = vmatprep.subr.mxu0 0.0
  %469 = vmatpush1.msra.mxu0 0.0
  %470 = vmatprep.subr.mxu0 0.0
  %471 = vmatpush1.msra.mxu0 0.0
  %472 = vmatprep.subr.mxu0 0.0
  %473 = vmatpush1.msra.mxu0 0.0
  %474 = vmatprep.subr.mxu0 0.0
  %475 = vmatpush1.msra.mxu0 0.0
  %476 = vmatprep.mubr.f32.mxu0 0.0
  %477 = vmatmul.mubr.f32.gmra.mrb[0].mxu0 %v49
  %v478 = vpop.f32.mrb[0].mxu0
  %v479 = vadd.f32 %v411, %v478
  %v480 = vpop.f32.mrb[0].mxu0
  %481 = vdwg.mxu0
  %v482 = vadd.f32 %v405, %v479
  %v483 = vxor.u32 %v482, 2147483648
  %v484 = vmul.f32 %v483, 1.442695
  %v485 = vpow.pop %v484
  %v486 = vadd.f32 %v485, 1.0
  %v487 = vrcp.pop %v486
  %v488 = vmul.f32 1.0, %v487
  %490 = vrot.lane.b32.xlu0 %v479, 64
  %v491 = vpop.permute.xlu0 %490
  %v493 = vmul.f32 %v488, %v491
  %495 = vrot.lane.b32.xlu0 %v493, 64
  %v496 = vpop.permute.xlu0 %495
  %v498 = vadd.f32 %v405, %v496
  %v499 = vtanh.pop %v498
  %v500 = vsub.f32 1.0, %v488
  %502 = vrot.lane.b32.xlu0 %v499, 96
  %v503 = vpop.permute.xlu0 %502
  %v505 = vmul.f32 %v500, %v503
  %506 = vrot.lane.b32.xlu0 %v41, 32
  %v507 = vpop.permute.xlu0 %506
  %v509 = vmul.f32 %v488, %v507
  %v510 = vadd.f32 %v505, %v509
  %v511 = vmax.f32 %v510, 0.0
  %513 = vrot.lane.b32.xlu0 %v511, 96
  %v514 = vpop.permute.xlu0 %513
  %516 = vst.msk [vmem:[%s9] sm:$0xff] %vm47, %v514
  // Predicated region
  $region42: #{attentive_fp_forward.4} parent=0 // pred_check
    _
  $region43: #{attentive_fp_forward.4} parent=0 // pred_check_branch
    %518 = sbr.rel (0) target = $region45
  $region44: #{attentive_fp_forward.4} parent=0 // pred_region
    _
  $region45: #{attentive_fp_forward.4} parent=0 // pred_fallthru
    _
  // Predicated region
  $region46: #{attentive_fp_forward.4} parent=0 // pred_check
    _
  $region47: #{attentive_fp_forward.4} parent=0 // pred_check_branch
    %520 = sbr.rel (0) target = $region49
  $region48: #{attentive_fp_forward.4} parent=0 // pred_region
    _
  $region49: #{attentive_fp_forward.4} parent=0 // pred_fallthru
    _

// kernel: attentive_fp_forward.5
$region0: #{attentive_fp_forward.5}
  #allocation0 [shape = 'u32[]', space=smem, size = 0x4, offset = 0x4, fixed_abs, tag = 'smem constant byte address 0x4 - core index']
  #allocation1 [shape = 'u32[144,128]{1,0:T(1,128)}', space=vmem, size = 0x12000, scoped, tag = 'internal scratch']
  #allocation2 [shape = 'f32[1,32]{1,0:T(1,128)}', space=vmem, size = 0x200, scoped, tag = 'scratch operand']
  #allocation3 [shape = 'f32[1,1]{1,0:T(1,128)S(1)}', space=vmem, size = 0x200, scoped, tag = 'scoped memory for attentive_fp_forward.5']
  %s0 = inlined_call_operand.vmem [shape: f32[8,32], index: 0, kind: input, shape index: {}]
  %s1 = inlined_call_operand.vmem [shape: f32[2,32,33], index: 1, kind: input, shape index: {}]
  %s2 = inlined_call_operand.vmem [shape: f32[2,32,1], index: 2, kind: input, shape index: {}]
  %s3 = inlined_call_operand.vmem [shape: f32[2,1,1], index: 3, kind: input, shape index: {}]
  %s4 = inlined_call_operand.vmem [shape: f32[2,1,32], index: 4, kind: input, shape index: {}]
  %s5 = inlined_call_operand.vmem [shape: f32[2,32,96], index: 5, kind: input, shape index: {}]
  %s6 = inlined_call_operand.vmem [shape: f32[2,32,96], index: 6, kind: input, shape index: {}]
  %s7 = inlined_call_operand.vmem [shape: f32[2,2,96], index: 7, kind: input, shape index: {}]
  %s8 = inlined_call_operand.vmem [shape: f32[32,1], index: 8, kind: input, shape index: {}]
  %s9 = inlined_call_operand.<no memory space> [shape: f32[1,1], index: 9, kind: input, shape index: {}]
  %s10 = inlined_call_operand.hbm [shape: f32[1,1], index: 10, kind: output, shape index: {}]
  %s11 = sld [smem:[#allocation0]]
  $region81: #{attentive_fp_forward.5} parent=0
    _
  %s13 = ssub.s32 1, %s11
  %s14 = scalar_select 0, %s13, %s11
  %v15 = vstv %s9
  %16 = vst [vmem:[#allocation3] sm:$0x1] %v15
  $region1: #{attentive_fp_forward.5} parent=0
    #allocation4 [shape = 'u8[512]{0}', space=vmem, size = 0x400, scoped, tag = 'output window, operand 0, single buffered']
    #allocation5 [shape = 's32[2]{0}', space=sflag, size = 0x8, scoped, tag = 'scoped memory for attentive_fp_forward.5']
    %17 = vsyncpa [#allocation5], 0
    loop: start=0, step=1, limit=4
    $region2: #{attentive_fp_forward.5} parent=1 // loop_pre_header
      _
    $region3: #{attentive_fp_forward.5} parent=1 // loop_header
      %s19 = sphi 0, %s23
      %p20 = scmp.ge.s32.totalorder %s19, 4
      %s27 = sphi 0, %s27
      %s29 = sphi 0, %s27
      %s30 = sphi 0, %s29
      %s44 = sphi 0, %s30
      %s50 = sphi 0, %s52
      %s53 = sphi 0, %s50
      %s54 = sphi 0, %s53
      %s70 = sphi 0, %s54
      %s76 = sphi 0, %s78
      %s79 = sphi 0, %s76
      %s80 = sphi 0, %s79
      %s96 = sphi 0, %s80
      %s102 = sphi 0, %s104
      %s105 = sphi 0, %s102
      %s106 = sphi 0, %s105
      %s122 = sphi 0, %s106
      %s128 = sphi 0, %s130
      %s131 = sphi 0, %s128
      %s132 = sphi 0, %s131
      %s148 = sphi 0, %s132
      %s154 = sphi 0, %s156
      %s157 = sphi 0, %s154
      %s158 = sphi 0, %s157
      %s174 = sphi 0, %s158
      %s180 = sphi 0, %s182
      %s183 = sphi 0, %s180
      %s184 = sphi 0, %s183
      %s200 = sphi 0, %s184
      %s206 = sphi 0, %s208
      %s209 = sphi 0, %s206
      %s210 = sphi 0, %s209
      %s226 = sphi 0, %s210
      %s230 = sphi 0, %s230
      %s232 = sphi 0, %s230
      %s233 = sphi 0, %s232
      %s247 = sphi 0, %s233
      %s251 = sphi 0, %s251
      %s253 = sphi 0, %s251
      %s254 = sphi 0, %s253
      %s268 = sphi 0, %s254
      %s272 = sphi 0, %s272
      %s274 = sphi 0, %s272
      %s275 = sphi 0, %s274
      %s289 = sphi 0, %s275
    $region4: #{attentive_fp_forward.5} parent=1 // loop_header_branch
      %22 = sbr.rel (%p20) target = $region8
    $region5: #{attentive_fp_forward.5} parent=1 // loop_body
      %s24 = ssub.s32 %s19, 1
      %s25 = ssub.s32 %s19, 2
      %s26 = sadd.s32 %s19, 1
      %s28 = sadd.s32 %s27, 1
      %p31 = scmp.eq.s32.totalorder %s19, 1
      %p32 = scmp.ne.s32.totalorder %s27, %s29
      %p33 = scmp.eq.s32.totalorder %s19, 0
      %p34 = por %p32, %p33
      %p35 = scmp.ne.s32.totalorder %s27, %s29
      %p36 = scmp.eq.s32.totalorder %s24, 1
      %p37 = por %p35, %p36
      %p38 = scmp.ne.s32.totalorder %s29, %s30
      %p39 = scmp.eq.s32.totalorder %s24, 0
      %p40 = por %p38, %p39
      %p41 = scmp.ne.s32.totalorder %s29, %s30
      %p42 = scmp.eq.s32.totalorder %s25, 1
      %p43 = por %p41, %p42
      %p45 = scmp.ne.s32.totalorder %s30, %s44
      %p46 = scmp.eq.s32.totalorder %s25, 0
      %p47 = por %p45, %p46
      %s48 = ssub.s32 %s19, %s26
      %p49 = scmp.eq.s32.totalorder %s48, 0
      %s51 = sadd.s32 %s50, 1
      %s52 = scalar_select %p49, %s50, %s51
      %p55 = pneg %p49
      %p56 = scmp.eq.s32.totalorder %s19, 1
      %p57 = por %p55, %p56
      %p58 = scmp.ne.s32.totalorder %s50, %s53
      %p59 = scmp.eq.s32.totalorder %s19, 0
      %p60 = por %p58, %p59
      %p61 = scmp.ne.s32.totalorder %s50, %s53
      %p62 = scmp.eq.s32.totalorder %s24, 1
      %p63 = por %p61, %p62
      %p64 = scmp.ne.s32.totalorder %s53, %s54
      %p65 = scmp.eq.s32.totalorder %s24, 0
      %p66 = por %p64, %p65
      %p67 = scmp.ne.s32.totalorder %s53, %s54
      %p68 = scmp.eq.s32.totalorder %s25, 1
      %p69 = por %p67, %p68
      %p71 = scmp.ne.s32.totalorder %s54, %s70
      %p72 = scmp.eq.s32.totalorder %s25, 0
      %p73 = por %p71, %p72
      %s74 = ssub.s32 %s19, %s26
      %p75 = scmp.eq.s32.totalorder %s74, 0
      %s77 = sadd.s32 %s76, 1
      %s78 = scalar_select %p75, %s76, %s77
      %p81 = pneg %p75
      %p82 = scmp.eq.s32.totalorder %s19, 1
      %p83 = por %p81, %p82
      %p84 = scmp.ne.s32.totalorder %s76, %s79
      %p85 = scmp.eq.s32.totalorder %s19, 0
      %p86 = por %p84, %p85
      %p87 = scmp.ne.s32.totalorder %s76, %s79
      %p88 = scmp.eq.s32.totalorder %s24, 1
      %p89 = por %p87, %p88
      %p90 = scmp.ne.s32.totalorder %s79, %s80
      %p91 = scmp.eq.s32.totalorder %s24, 0
      %p92 = por %p90, %p91
      %p93 = scmp.ne.s32.totalorder %s79, %s80
      %p94 = scmp.eq.s32.totalorder %s25, 1
      %p95 = por %p93, %p94
      %p97 = scmp.ne.s32.totalorder %s80, %s96
      %p98 = scmp.eq.s32.totalorder %s25, 0
      %p99 = por %p97, %p98
      %s100 = ssub.s32 %s19, %s26
      %p101 = scmp.eq.s32.totalorder %s100, 0
      %s103 = sadd.s32 %s102, 1
      %s104 = scalar_select %p101, %s102, %s103
      %p107 = pneg %p101
      %p108 = scmp.eq.s32.totalorder %s19, 1
      %p109 = por %p107, %p108
      %p110 = scmp.ne.s32.totalorder %s102, %s105
      %p111 = scmp.eq.s32.totalorder %s19, 0
      %p112 = por %p110, %p111
      %p113 = scmp.ne.s32.totalorder %s102, %s105
      %p114 = scmp.eq.s32.totalorder %s24, 1
      %p115 = por %p113, %p114
      %p116 = scmp.ne.s32.totalorder %s105, %s106
      %p117 = scmp.eq.s32.totalorder %s24, 0
      %p118 = por %p116, %p117
      %p119 = scmp.ne.s32.totalorder %s105, %s106
      %p120 = scmp.eq.s32.totalorder %s25, 1
      %p121 = por %p119, %p120
      %p123 = scmp.ne.s32.totalorder %s106, %s122
      %p124 = scmp.eq.s32.totalorder %s25, 0
      %p125 = por %p123, %p124
      %s126 = ssub.s32 %s19, %s26
      %p127 = scmp.eq.s32.totalorder %s126, 0
      %s129 = sadd.s32 %s128, 1
      %s130 = scalar_select %p127, %s128, %s129
      %p133 = pneg %p127
      %p134 = scmp.eq.s32.totalorder %s19, 1
      %p135 = por %p133, %p134
      %p136 = scmp.ne.s32.totalorder %s128, %s131
      %p137 = scmp.eq.s32.totalorder %s19, 0
      %p138 = por %p136, %p137
      %p139 = scmp.ne.s32.totalorder %s128, %s131
      %p140 = scmp.eq.s32.totalorder %s24, 1
      %p141 = por %p139, %p140
      %p142 = scmp.ne.s32.totalorder %s131, %s132
      %p143 = scmp.eq.s32.totalorder %s24, 0
      %p144 = por %p142, %p143
      %p145 = scmp.ne.s32.totalorder %s131, %s132
      %p146 = scmp.eq.s32.totalorder %s25, 1
      %p147 = por %p145, %p146
      %p149 = scmp.ne.s32.totalorder %s132, %s148
      %p150 = scmp.eq.s32.totalorder %s25, 0
      %p151 = por %p149, %p150
      %s152 = ssub.s32 %s19, %s26
      %p153 = scmp.eq.s32.totalorder %s152, 0
      %s155 = sadd.s32 %s154, 1
      %s156 = scalar_select %p153, %s154, %s155
      %p159 = pneg %p153
      %p160 = scmp.eq.s32.totalorder %s19, 1
      %p161 = por %p159, %p160
      %p162 = scmp.ne.s32.totalorder %s154, %s157
      %p163 = scmp.eq.s32.totalorder %s19, 0
      %p164 = por %p162, %p163
      %p165 = scmp.ne.s32.totalorder %s154, %s157
      %p166 = scmp.eq.s32.totalorder %s24, 1
      %p167 = por %p165, %p166
      %p168 = scmp.ne.s32.totalorder %s157, %s158
      %p169 = scmp.eq.s32.totalorder %s24, 0
      %p170 = por %p168, %p169
      %p171 = scmp.ne.s32.totalorder %s157, %s158
      %p172 = scmp.eq.s32.totalorder %s25, 1
      %p173 = por %p171, %p172
      %p175 = scmp.ne.s32.totalorder %s158, %s174
      %p176 = scmp.eq.s32.totalorder %s25, 0
      %p177 = por %p175, %p176
      %s178 = ssub.s32 %s19, %s26
      %p179 = scmp.eq.s32.totalorder %s178, 0
      %s181 = sadd.s32 %s180, 1
      %s182 = scalar_select %p179, %s180, %s181
      %p185 = pneg %p179
      %p186 = scmp.eq.s32.totalorder %s19, 1
      %p187 = por %p185, %p186
      %p188 = scmp.ne.s32.totalorder %s180, %s183
      %p189 = scmp.eq.s32.totalorder %s19, 0
      %p190 = por %p188, %p189
      %p191 = scmp.ne.s32.totalorder %s180, %s183
      %p192 = scmp.eq.s32.totalorder %s24, 1
      %p193 = por %p191, %p192
      %p194 = scmp.ne.s32.totalorder %s183, %s184
      %p195 = scmp.eq.s32.totalorder %s24, 0
      %p196 = por %p194, %p195
      %p197 = scmp.ne.s32.totalorder %s183, %s184
      %p198 = scmp.eq.s32.totalorder %s25, 1
      %p199 = por %p197, %p198
      %p201 = scmp.ne.s32.totalorder %s184, %s200
      %p202 = scmp.eq.s32.totalorder %s25, 0
      %p203 = por %p201, %p202
      %s204 = ssub.s32 %s19, %s26
      %p205 = scmp.eq.s32.totalorder %s204, 0
      %s207 = sadd.s32 %s206, 1
      %s208 = scalar_select %p205, %s206, %s207
      %p211 = pneg %p205
      %p212 = scmp.eq.s32.totalorder %s19, 1
      %p213 = por %p211, %p212
      %p214 = scmp.ne.s32.totalorder %s206, %s209
      %p215 = scmp.eq.s32.totalorder %s19, 0
      %p216 = por %p214, %p215
      %p217 = scmp.ne.s32.totalorder %s206, %s209
      %p218 = scmp.eq.s32.totalorder %s24, 1
      %p219 = por %p217, %p218
      %p220 = scmp.ne.s32.totalorder %s209, %s210
      %p221 = scmp.eq.s32.totalorder %s24, 0
      %p222 = por %p220, %p221
      %p223 = scmp.ne.s32.totalorder %s209, %s210
      %p224 = scmp.eq.s32.totalorder %s25, 1
      %p225 = por %p223, %p224
      %p227 = scmp.ne.s32.totalorder %s210, %s226
      %p228 = scmp.eq.s32.totalorder %s25, 0
      %p229 = por %p227, %p228
      %s231 = sadd.s32 %s230, 1
      %p234 = scmp.eq.s32.totalorder %s19, 1
      %p235 = scmp.ne.s32.totalorder %s230, %s232
      %p236 = scmp.eq.s32.totalorder %s19, 0
      %p237 = por %p235, %p236
      %p238 = scmp.ne.s32.totalorder %s230, %s232
      %p239 = scmp.eq.s32.totalorder %s24, 1
      %p240 = por %p238, %p239
      %p241 = scmp.ne.s32.totalorder %s232, %s233
      %p242 = scmp.eq.s32.totalorder %s24, 0
      %p243 = por %p241, %p242
      %p244 = scmp.ne.s32.totalorder %s232, %s233
      %p245 = scmp.eq.s32.totalorder %s25, 1
      %p246 = por %p244, %p245
      %p248 = scmp.ne.s32.totalorder %s233, %s247
      %p249 = scmp.eq.s32.totalorder %s25, 0
      %p250 = por %p248, %p249
      %s252 = sadd.s32 %s251, 1
      %p255 = scmp.eq.s32.totalorder %s19, 1
      %p256 = scmp.ne.s32.totalorder %s251, %s253
      %p257 = scmp.eq.s32.totalorder %s19, 0
      %p258 = por %p256, %p257
      %p259 = scmp.ne.s32.totalorder %s251, %s253
      %p260 = scmp.eq.s32.totalorder %s24, 1
      %p261 = por %p259, %p260
      %p262 = scmp.ne.s32.totalorder %s253, %s254
      %p263 = scmp.eq.s32.totalorder %s24, 0
      %p264 = por %p262, %p263
      %p265 = scmp.ne.s32.totalorder %s253, %s254
      %p266 = scmp.eq.s32.totalorder %s25, 1
      %p267 = por %p265, %p266
      %p269 = scmp.ne.s32.totalorder %s254, %s268
      %p270 = scmp.eq.s32.totalorder %s25, 0
      %p271 = por %p269, %p270
      %s273 = sadd.s32 %s272, 1
      %p276 = scmp.eq.s32.totalorder %s19, 1
      %p277 = scmp.ne.s32.totalorder %s272, %s274
      %p278 = scmp.eq.s32.totalorder %s19, 0
      %p279 = por %p277, %p278
      %p280 = scmp.ne.s32.totalorder %s272, %s274
      %p281 = scmp.eq.s32.totalorder %s24, 1
      %p282 = por %p280, %p281
      %p283 = scmp.ne.s32.totalorder %s274, %s275
      %p284 = scmp.eq.s32.totalorder %s24, 0
      %p285 = por %p283, %p284
      %p286 = scmp.ne.s32.totalorder %s274, %s275
      %p287 = scmp.eq.s32.totalorder %s25, 1
      %p288 = por %p286, %p287
      %p290 = scmp.ne.s32.totalorder %s275, %s289
      %p291 = scmp.eq.s32.totalorder %s25, 0
      %p292 = por %p290, %p291
      %p293 = scmp.le.s32.totalorder 1, %s19
      %p294 = scmp.lt.s32.totalorder %s19, 3
      %p295 = pnand %p293, %p294
      %p296 = pneg %p295
      // Predicated region
      $region9: #{attentive_fp_forward.5} parent=5 // pred_check
        _
      $region10: #{attentive_fp_forward.5} parent=5 // pred_check_branch
        %298 = sbr.rel (%p295) target = $region12
      $region11: #{attentive_fp_forward.5} parent=5 // pred_region
        %s299 = ssub.s32 %s19, 1
        // Predicated region
        $region13: #{attentive_fp_forward.5} parent=11 // pred_check
          %p300 = pneg %p40
        $region14: #{attentive_fp_forward.5} parent=11 // pred_check_branch
          %302 = sbr.rel (%p300) target = $region16
        $region15: #{attentive_fp_forward.5} parent=11 // pred_region
          _
        $region16: #{attentive_fp_forward.5} parent=11 // pred_fallthru
          _
        // Predicated region
        $region17: #{attentive_fp_forward.5} parent=11 // pred_check
          %p303 = pneg %p243
        $region18: #{attentive_fp_forward.5} parent=11 // pred_check_branch
          %305 = sbr.rel (%p303) target = $region20
        $region19: #{attentive_fp_forward.5} parent=11 // pred_region
          _
        $region20: #{attentive_fp_forward.5} parent=11 // pred_fallthru
          _
        // Predicated region
        $region21: #{attentive_fp_forward.5} parent=11 // pred_check
          %p306 = pneg %p264
        $region22: #{attentive_fp_forward.5} parent=11 // pred_check_branch
          %308 = sbr.rel (%p306) target = $region24
        $region23: #{attentive_fp_forward.5} parent=11 // pred_region
          _
        $region24: #{attentive_fp_forward.5} parent=11 // pred_fallthru
          _
      $region12: #{attentive_fp_forward.5} parent=5 // pred_fallthru
        _
      %p309 = scmp.lt.s32.totalorder %s19, 2
      // Predicated region
      $region25: #{attentive_fp_forward.5} parent=5 // pred_check
        %p310 = pneg %p309
      $region26: #{attentive_fp_forward.5} parent=5 // pred_check_branch
        %312 = sbr.rel (%p310) target = $region28
      $region27: #{attentive_fp_forward.5} parent=5 // pred_region
        // Predicated region
        $region29: #{attentive_fp_forward.5} parent=27 // pred_check
          %p313 = pneg %p60
        $region30: #{attentive_fp_forward.5} parent=27 // pred_check_branch
          %315 = sbr.rel (%p313) target = $region32
        $region31: #{attentive_fp_forward.5} parent=27 // pred_region
          %p316 = scmp.lt.s32.totalorder %s19, 1
          %s317 = scalar_select %p316, %s19, 1
          %s318 = smul.addr %s317, 4
          %s319 = smul.addr %s318, 8
          %s320 = scalar_lea.vmem %s1, %s319
        $region32: #{attentive_fp_forward.5} parent=27 // pred_fallthru
          _
        // Predicated region
        $region33: #{attentive_fp_forward.5} parent=27 // pred_check
          %p321 = pneg %p86
        $region34: #{attentive_fp_forward.5} parent=27 // pred_check_branch
          %323 = sbr.rel (%p321) target = $region36
        $region35: #{attentive_fp_forward.5} parent=27 // pred_region
          %p324 = scmp.lt.s32.totalorder %s19, 1
          %s325 = scalar_select %p324, %s19, 1
          %s326 = smul.addr %s325, 4
          %s327 = smul.addr %s326, 8
          %s328 = scalar_lea.vmem %s2, %s327
        $region36: #{attentive_fp_forward.5} parent=27 // pred_fallthru
          _
        // Predicated region
        $region37: #{attentive_fp_forward.5} parent=27 // pred_check
          %p329 = pneg %p112
        $region38: #{attentive_fp_forward.5} parent=27 // pred_check_branch
          %331 = sbr.rel (%p329) target = $region40
        $region39: #{attentive_fp_forward.5} parent=27 // pred_region
          %p332 = scmp.lt.s32.totalorder %s19, 1
          %s333 = scalar_select %p332, %s19, 1
          %s334 = scalar_lea.vmem %s3, %s333
        $region40: #{attentive_fp_forward.5} parent=27 // pred_fallthru
          _
        // Predicated region
        $region41: #{attentive_fp_forward.5} parent=27 // pred_check
          %p335 = pneg %p138
        $region42: #{attentive_fp_forward.5} parent=27 // pred_check_branch
          %337 = sbr.rel (%p335) target = $region44
        $region43: #{attentive_fp_forward.5} parent=27 // pred_region
          %p338 = scmp.lt.s32.totalorder %s19, 1
          %s339 = scalar_select %p338, %s19, 1
          %s340 = scalar_lea.vmem %s4, %s339
        $region44: #{attentive_fp_forward.5} parent=27 // pred_fallthru
          _
        // Predicated region
        $region45: #{attentive_fp_forward.5} parent=27 // pred_check
          %p341 = pneg %p164
        $region46: #{attentive_fp_forward.5} parent=27 // pred_check_branch
          %343 = sbr.rel (%p341) target = $region48
        $region47: #{attentive_fp_forward.5} parent=27 // pred_region
          %p344 = scmp.lt.s32.totalorder %s19, 1
          %s345 = scalar_select %p344, %s19, 1
          %s346 = smul.addr %s345, 4
          %s347 = smul.addr %s346, 8
          %s348 = scalar_lea.vmem %s5, %s347
        $region48: #{attentive_fp_forward.5} parent=27 // pred_fallthru
          _
        // Predicated region
        $region49: #{attentive_fp_forward.5} parent=27 // pred_check
          %p349 = pneg %p190
        $region50: #{attentive_fp_forward.5} parent=27 // pred_check_branch
          %351 = sbr.rel (%p349) target = $region52
        $region51: #{attentive_fp_forward.5} parent=27 // pred_region
          %p352 = scmp.lt.s32.totalorder %s19, 1
          %s353 = scalar_select %p352, %s19, 1
          %s354 = smul.addr %s353, 4
          %s355 = smul.addr %s354, 8
          %s356 = scalar_lea.vmem %s6, %s355
        $region52: #{attentive_fp_forward.5} parent=27 // pred_fallthru
          _
        // Predicated region
        $region53: #{attentive_fp_forward.5} parent=27 // pred_check
          %p357 = pneg %p216
        $region54: #{attentive_fp_forward.5} parent=27 // pred_check_branch
          %359 = sbr.rel (%p357) target = $region56
        $region55: #{attentive_fp_forward.5} parent=27 // pred_region
          %p360 = scmp.lt.s32.totalorder %s19, 1
          %s361 = scalar_select %p360, %s19, 1
          %s362 = smul.addr %s361, 2
          %s363 = scalar_lea.vmem %s7, %s362
        $region56: #{attentive_fp_forward.5} parent=27 // pred_fallthru
          _
      $region28: #{attentive_fp_forward.5} parent=5 // pred_fallthru
        _
      %p364 = scmp.le.s32.totalorder 1, %s19
      %p365 = scmp.lt.s32.totalorder %s19, 3
      %p366 = pnand %p364, %p365
      %p367 = pneg %p366
      // Predicated region
      $region57: #{attentive_fp_forward.5} parent=5 // pred_check
        _
      $region58: #{attentive_fp_forward.5} parent=5 // pred_check_branch
        %369 = sbr.rel (%p366) target = $region60
      $region59: #{attentive_fp_forward.5} parent=5 // pred_region
        %s370 = ssub.s32 %s19, 1
        %p371 = pneg %p40
        %p372 = pneg %p37
        %p373 = scmp.lt.s32.totalorder %s24, 1
        %s374 = scalar_select %p373, %s24, 1
        %s375 = smul.addr %s374, 4
        %s376 = smul.addr %s375, 8
        %s377 = scalar_lea.vmem %s1, %s376
        %p378 = pneg %p66
        %p379 = pneg %p63
        %p380 = scmp.lt.s32.totalorder %s24, 1
        %s381 = scalar_select %p380, %s24, 1
        %s382 = smul.addr %s381, 4
        %s383 = smul.addr %s382, 8
        %s384 = scalar_lea.vmem %s2, %s383
        %p385 = pneg %p92
        %p386 = pneg %p89
        %p387 = scmp.lt.s32.totalorder %s24, 1
        %s388 = scalar_select %p387, %s24, 1
        %s389 = scalar_lea.vmem %s3, %s388
        %p390 = pneg %p118
        %p391 = pneg %p115
        %p392 = scmp.lt.s32.totalorder %s24, 1
        %s393 = scalar_select %p392, %s24, 1
        %s394 = scalar_lea.vmem %s4, %s393
        %p395 = pneg %p144
        %p396 = pneg %p141
        %p397 = scmp.lt.s32.totalorder %s24, 1
        %s398 = scalar_select %p397, %s24, 1
        %s399 = smul.addr %s398, 4
        %s400 = smul.addr %s399, 8
        %s401 = scalar_lea.vmem %s5, %s400
        %p402 = pneg %p170
        %p403 = pneg %p167
        %p404 = scmp.lt.s32.totalorder %s24, 1
        %s405 = scalar_select %p404, %s24, 1
        %s406 = smul.addr %s405, 4
        %s407 = smul.addr %s406, 8
        %s408 = scalar_lea.vmem %s6, %s407
        %p409 = pneg %p196
        %p410 = pneg %p193
        %p411 = scmp.lt.s32.totalorder %s24, 1
        %s412 = scalar_select %p411, %s24, 1
        %s413 = smul.addr %s412, 2
        %s414 = scalar_lea.vmem %s7, %s413
        %p415 = pneg %p222
        %p416 = pneg %p219
        %p417 = pneg %p243
        %p418 = pneg %p240
        %p419 = pneg %p264
        %p420 = pneg %p261
        %p421 = pneg %p285
        %p422 = pneg %p282
        %p423 = scmp.lt.s32.totalorder %s24, 1
        %s424 = scalar_select %p423, %s24, 1
        %s425 = smul.addr %s424, 4
        %s426 = smul.addr %s425, 8
        %s427 = scalar_lea.vmem %s1, %s426
        %p428 = scmp.lt.s32.totalorder %s24, 1
        %s429 = scalar_select %p428, %s24, 1
        %s430 = smul.addr %s429, 4
        %s431 = smul.addr %s430, 8
        %s432 = scalar_lea.vmem %s2, %s431
        %p433 = scmp.lt.s32.totalorder %s24, 1
        %s434 = scalar_select %p433, %s24, 1
        %s435 = scalar_lea.vmem %s3, %s434
        %p436 = scmp.lt.s32.totalorder %s24, 1
        %s437 = scalar_select %p436, %s24, 1
        %s438 = scalar_lea.vmem %s4, %s437
        %p439 = scmp.lt.s32.totalorder %s24, 1
        %s440 = scalar_select %p439, %s24, 1
        %s441 = smul.addr %s440, 4
        %s442 = smul.addr %s441, 8
        %s443 = scalar_lea.vmem %s5, %s442
        %p444 = scmp.lt.s32.totalorder %s24, 1
        %s445 = scalar_select %p444, %s24, 1
        %s446 = smul.addr %s445, 4
        %s447 = smul.addr %s446, 8
        %s448 = scalar_lea.vmem %s6, %s447
        %p449 = scmp.lt.s32.totalorder %s24, 1
        %s450 = scalar_select %p449, %s24, 1
        %s451 = smul.addr %s450, 2
        %s452 = scalar_lea.vmem %s7, %s451
        %v453 = vld [vmem:[%s0] sm:$0xff]
        %p454 = scmp.eq.s32.totalorder %s24, 0
        // Predicated region
        $region61: #{attentive_fp_forward.5} parent=59 // pred_check
          %p455 = pneg %p454
        $region62: #{attentive_fp_forward.5} parent=59 // pred_check_branch
          %457 = sbr.rel (%p455) target = $region64
        $region63: #{attentive_fp_forward.5} parent=59 // pred_region
          %vm458 = vcmask 261120
          %v459 = vsel %vm458, %v453, 0.0
          %v460 = vrot.slane %v459, 4
          %v461 = vadd.f32 %v459, %v460
          %v462 = vrot.slane %v461, 2
          %v463 = vadd.f32 %v461, %v462
          %v464 = vrot.slane %v463, 1
          %v465 = vadd.f32 %v463, %v464
          %vm466 = vcmask 253952
          %467 = vst.msk [vmem:[#allocation2] sm:$0x1] %vm466, %v465
        $region64: #{attentive_fp_forward.5} parent=59 // pred_fallthru
          _
        %v468 = vld [vmem:[#allocation2] sm:$0x1]
        %v469 = vld [vmem:[%s427] sm:$0xff]
        %v470 = vld [vmem:[%s427 + $0x8] sm:$0xff]
        %v471 = vld [vmem:[%s427 + $0x10] sm:$0xff]
        %v472 = vld [vmem:[%s427 + $0x18] sm:$0xff]
        %vm473 = vcmask 261120
        %v475 = vsel %vm473, %v453, 0
        %477 = vmatprep.subr.mxu0 0.0
        %478 = vmatpush1.msra.mxu0 %v469
        %479 = vmatprep.subr.mxu0 0.0
        %480 = vmatpush1.msra.mxu0 %v470
        %481 = vmatprep.subr.mxu0 0.0
        %482 = vmatpush1.msra.mxu0 %v471
        %483 = vmatprep.subr.mxu0 0.0
        %484 = vmatpush1.msra.mxu0 %v472
        %485 = vmatprep.subr.mxu0 0.0
        %486 = vmatpush1.msra.mxu0 0.0
        %487 = vmatprep.subr.mxu0 0.0
        %488 = vmatpush1.msra.mxu0 0.0
        %489 = vmatprep.subr.mxu0 0.0
        %490 = vmatpush1.msra.mxu0 0.0
        %491 = vmatprep.subr.mxu0 0.0
        %492 = vmatpush1.msra.mxu0 0.0
        %493 = vmatprep.subr.mxu0 0.0
        %494 = vmatpush1.msra.mxu0 0.0
        %495 = vmatprep.subr.mxu0 0.0
        %496 = vmatpush1.msra.mxu0 0.0
        %497 = vmatprep.subr.mxu0 0.0
        %498 = vmatpush1.msra.mxu0 0.0
        %499 = vmatprep.subr.mxu0 0.0
        %500 = vmatpush1.msra.mxu0 0.0
        %501 = vmatprep.subr.mxu0 0.0
        %502 = vmatpush1.msra.mxu0 0.0
        %503 = vmatprep.subr.mxu0 0.0
        %504 = vmatpush1.msra.mxu0 0.0
        %505 = vmatprep.subr.mxu0 0.0
        %506 = vmatpush1.msra.mxu0 0.0
        %507 = vmatprep.subr.mxu0 0.0
        %508 = vmatpush1.msra.mxu0 0.0
        %509 = vmatprep.subr.mxu0 0.0
        %510 = vmatpush1.msra.mxu0 0.0
        %511 = vmatprep.subr.mxu0 0.0
        %512 = vmatpush1.msra.mxu0 0.0
        %513 = vmatprep.subr.mxu0 0.0
        %514 = vmatpush1.msra.mxu0 0.0
        %515 = vmatprep.subr.mxu0 0.0
        %516 = vmatpush1.msra.mxu0 0.0
        %517 = vmatprep.subr.mxu0 0.0
        %518 = vmatpush1.msra.mxu0 0.0
        %519 = vmatprep.subr.mxu0 0.0
        %520 = vmatpush1.msra.mxu0 0.0
        %521 = vmatprep.subr.mxu0 0.0
        %522 = vmatpush1.msra.mxu0 0.0
        %523 = vmatprep.subr.mxu0 0.0
        %524 = vmatpush1.msra.mxu0 0.0
        %525 = vmatprep.subr.mxu0 0.0
        %526 = vmatpush1.msra.mxu0 0.0
        %527 = vmatprep.subr.mxu0 0.0
        %528 = vmatpush1.msra.mxu0 0.0
        %529 = vmatprep.subr.mxu0 0.0
        %530 = vmatpush1.msra.mxu0 0.0
        %531 = vmatprep.subr.mxu0 0.0
        %532 = vmatpush1.msra.mxu0 0.0
        %533 = vmatprep.subr.mxu0 0.0
        %534 = vmatpush1.msra.mxu0 0.0
        %535 = vmatprep.subr.mxu0 0.0
        %536 = vmatpush1.msra.mxu0 0.0
        %537 = vmatprep.subr.mxu0 0.0
        %538 = vmatpush1.msra.mxu0 0.0
        %539 = vmatprep.subr.mxu0 0.0
        %540 = vmatpush1.msra.mxu0 0.0
        %541 = vmatprep.mubr.f32.mxu0 0.0
        %542 = vmatmul.mubr.f32.gmra.mrb[0].mxu0 %v475
        %v543 = vpop.f32.mrb[0].mxu0
        %v544 = vadd.f32 0.0, %v543
        %v545 = vpop.f32.mrb[0].mxu0
        %546 = vdwg.mxu0
        %v547 = vld [vmem:[%s438] sm:$0x1]
        %v549 = vlaneseq
        %v550 = vshrl.u32 %v549, 7
        %v551 = vsub.s32 0, %v550
        %v552 = vrot.slane %v547, %v551
        %v554 = vadd.f32 %v544, %v552
        %v555 = vmax.f32 %v468, 0.0
        %v556 = vld [vmem:[%s432] sm:$0xff]
        %v557 = vld [vmem:[%s432 + $0x8] sm:$0xff]
        %v558 = vld [vmem:[%s432 + $0x10] sm:$0xff]
        %v559 = vld [vmem:[%s432 + $0x18] sm:$0xff]
        %v561 = vsel %vm473, %v555, 0
        %563 = vmatprep.subr.mxu0 0.0
        %564 = vmatpush1.msra.mxu0 %v556
        %565 = vmatprep.subr.mxu0 0.0
        %566 = vmatpush1.msra.mxu0 %v557
        %567 = vmatprep.subr.mxu0 0.0
        %568 = vmatpush1.msra.mxu0 %v558
        %569 = vmatprep.subr.mxu0 0.0
        %570 = vmatpush1.msra.mxu0 %v559
        %571 = vmatprep.subr.mxu0 0.0
        %572 = vmatpush1.msra.mxu0 0.0
        %573 = vmatprep.subr.mxu0 0.0
        %574 = vmatpush1.msra.mxu0 0.0
        %575 = vmatprep.subr.mxu0 0.0
        %576 = vmatpush1.msra.mxu0 0.0
        %577 = vmatprep.subr.mxu0 0.0
        %578 = vmatpush1.msra.mxu0 0.0
        %579 = vmatprep.subr.mxu0 0.0
        %580 = vmatpush1.msra.mxu0 0.0
        %581 = vmatprep.subr.mxu0 0.0
        %582 = vmatpush1.msra.mxu0 0.0
        %583 = vmatprep.subr.mxu0 0.0
        %584 = vmatpush1.msra.mxu0 0.0
        %585 = vmatprep.subr.mxu0 0.0
        %586 = vmatpush1.msra.mxu0 0.0
        %587 = vmatprep.subr.mxu0 0.0
        %588 = vmatpush1.msra.mxu0 0.0
        %589 = vmatprep.subr.mxu0 0.0
        %590 = vmatpush1.msra.mxu0 0.0
        %591 = vmatprep.subr.mxu0 0.0
        %592 = vmatpush1.msra.mxu0 0.0
        %593 = vmatprep.subr.mxu0 0.0
        %594 = vmatpush1.msra.mxu0 0.0
        %595 = vmatprep.subr.mxu0 0.0
        %596 = vmatpush1.msra.mxu0 0.0
        %597 = vmatprep.subr.mxu0 0.0
        %598 = vmatpush1.msra.mxu0 0.0
        %599 = vmatprep.subr.mxu0 0.0
        %600 = vmatpush1.msra.mxu0 0.0
        %601 = vmatprep.subr.mxu0 0.0
        %602 = vmatpush1.msra.mxu0 0.0
        %603 = vmatprep.subr.mxu0 0.0
        %604 = vmatpush1.msra.mxu0 0.0
        %605 = vmatprep.subr.mxu0 0.0
        %606 = vmatpush1.msra.mxu0 0.0
        %607 = vmatprep.subr.mxu0 0.0
        %608 = vmatpush1.msra.mxu0 0.0
        %609 = vmatprep.subr.mxu0 0.0
        %610 = vmatpush1.msra.mxu0 0.0
        %611 = vmatprep.subr.mxu0 0.0
        %612 = vmatpush1.msra.mxu0 0.0
        %613 = vmatprep.subr.mxu0 0.0
        %614 = vmatpush1.msra.mxu0 0.0
        %615 = vmatprep.subr.mxu0 0.0
        %616 = vmatpush1.msra.mxu0 0.0
        %617 = vmatprep.subr.mxu0 0.0
        %618 = vmatpush1.msra.mxu0 0.0
        %619 = vmatprep.subr.mxu0 0.0
        %620 = vmatpush1.msra.mxu0 0.0
        %621 = vmatprep.subr.mxu0 0.0
        %622 = vmatpush1.msra.mxu0 0.0
        %623 = vmatprep.subr.mxu0 0.0
        %624 = vmatpush1.msra.mxu0 0.0
        %625 = vmatprep.subr.mxu0 0.0
        %626 = vmatpush1.msra.mxu0 0.0
        %627 = vmatprep.mubr.f32.mxu0 0.0
        %628 = vmatmul.mubr.f32.gmra.mrb[0].mxu0 %v561
        %v629 = vpop.f32.mrb[0].mxu0
        %v630 = vadd.f32 0.0, %v629
        %v631 = vpop.f32.mrb[0].mxu0
        %632 = vdwg.mxu0
        %v633 = vlaneseq
        %v634 = vshrl.u32 %v633, 7
        %v635 = vsub.s32 0, %v634
        %v636 = vrot.slane %v630, %v635
        %638 = vrot.lane.b32.xlu0 %v636, 32
        %v639 = vpop.permute.xlu0 %638
        %v641 = vadd.f32 %v544, %v639
        %v642 = vld [vmem:[%s435] sm:$0x1]
        %v644 = vlaneseq
        %v645 = vshrl.u32 %v644, 7
        %v646 = vsub.s32 0, %v645
        %v647 = vrot.slane %v642, %v646
        %648 = vrot.lane.b32.xlu0 %v647, 32
        %v649 = vpop.permute.xlu0 %648
        %v651 = vadd.f32 %v641, %v649
        %vm652 = vcmp.gt.f32.partialorder %v651, 0.0
        %v653 = vmul.f32 %v651, 0.01
        %v654 = vsel %vm652, %v651, %v653
        %vm655 = vcmask 269568
        %v656 = vsel %vm655, %v654, -inf
        %v657 = vrot.slane %v656, 4
        %v658 = vmax.f32 %v656, %v657
        %v659 = vrot.slane %v658, 2
        %v660 = vmax.f32 %v658, %v659
        %v661 = vrot.slane %v660, 1
        %v662 = vmax.f32 %v660, %v661
        %v663 = vsub.f32 %v654, %v662
        %v664 = vmul.f32 %v663, 1.442695
        %v665 = vpow.pop %v664
        %v666 = vsel %vm655, %v665, 0.0
        %v667 = vrot.slane %v666, 4
        %v668 = vadd.f32 %v666, %v667
        %v669 = vrot.slane %v668, 2
        %v670 = vadd.f32 %v668, %v669
        %v671 = vrot.slane %v670, 1
        %v672 = vadd.f32 %v670, %v671
        %v673 = vrcp.pop %v672
        %v674 = vmul.f32 %v665, %v673
        %676 = vset.pattern.permute.xlu0 32
        %677 = vperm.xlu0 %676, %v674
        %v678 = vpop.permute.xlu0 %677
        %v680 = vmul.f32 %v678, %v554
        %v681 = vsel %vm473, %v680, 0.0
        %v682 = vrot.slane %v681, 4
        %v683 = vadd.f32 %v681, %v682
        %v684 = vrot.slane %v683, 2
        %v685 = vadd.f32 %v683, %v684
        %v686 = vrot.slane %v685, 1
        %v687 = vadd.f32 %v685, %v686
        %vm688 = vcmp.gt.f32.partialorder %v687, 0.0
        %v689 = vmin.f32 %v687, 0.0
        %v690 = vmul.f32 %v689, 1.442695
        %v691 = vpow.pop %v690
        %v692 = vsub.f32 %v691, 1.0
        %v693 = vsel %vm688, %v687, %v692
        %v694 = vld [vmem:[%s443] sm:$0xff]
        %v695 = vld [vmem:[%s443 + $0x8] sm:$0xff]
        %v696 = vld [vmem:[%s443 + $0x10] sm:$0xff]
        %v697 = vld [vmem:[%s443 + $0x18] sm:$0xff]
        %v698 = vld [vmem:[%s448] sm:$0xff]
        %v699 = vld [vmem:[%s448 + $0x8] sm:$0xff]
        %v700 = vld [vmem:[%s448 + $0x10] sm:$0xff]
        %v701 = vld [vmem:[%s448 + $0x18] sm:$0xff]
        %v702 = vld [vmem:[%s452] sm:$0x3]
        %v704 = vsel %vm473, %v693, 0
        %706 = vmatprep.subr.mxu0 0.0
        %707 = vmatpush1.msra.mxu0 %v694
        %708 = vmatprep.subr.mxu0 0.0
        %709 = vmatpush1.msra.mxu0 %v695
        %710 = vmatprep.subr.mxu0 0.0
        %711 = vmatpush1.msra.mxu0 %v696
        %712 = vmatprep.subr.mxu0 0.0
        %713 = vmatpush1.msra.mxu0 %v697
        %714 = vmatprep.subr.mxu0 0.0
        %715 = vmatpush1.msra.mxu0 0.0
        %716 = vmatprep.subr.mxu0 0.0
        %717 = vmatpush1.msra.mxu0 0.0
        %718 = vmatprep.subr.mxu0 0.0
        %719 = vmatpush1.msra.mxu0 0.0
        %720 = vmatprep.subr.mxu0 0.0
        %721 = vmatpush1.msra.mxu0 0.0
        %722 = vmatprep.subr.mxu0 0.0
        %723 = vmatpush1.msra.mxu0 0.0
        %724 = vmatprep.subr.mxu0 0.0
        %725 = vmatpush1.msra.mxu0 0.0
        %726 = vmatprep.subr.mxu0 0.0
        %727 = vmatpush1.msra.mxu0 0.0
        %728 = vmatprep.subr.mxu0 0.0
        %729 = vmatpush1.msra.mxu0 0.0
        %730 = vmatprep.subr.mxu0 0.0
        %731 = vmatpush1.msra.mxu0 0.0
        %732 = vmatprep.subr.mxu0 0.0
        %733 = vmatpush1.msra.mxu0 0.0
        %734 = vmatprep.subr.mxu0 0.0
        %735 = vmatpush1.msra.mxu0 0.0
        %736 = vmatprep.subr.mxu0 0.0
        %737 = vmatpush1.msra.mxu0 0.0
        %738 = vmatprep.subr.mxu0 0.0
        %739 = vmatpush1.msra.mxu0 0.0
        %740 = vmatprep.subr.mxu0 0.0
        %741 = vmatpush1.msra.mxu0 0.0
        %742 = vmatprep.subr.mxu0 0.0
        %743 = vmatpush1.msra.mxu0 0.0
        %744 = vmatprep.subr.mxu0 0.0
        %745 = vmatpush1.msra.mxu0 0.0
        %746 = vmatprep.subr.mxu0 0.0
        %747 = vmatpush1.msra.mxu0 0.0
        %748 = vmatprep.subr.mxu0 0.0
        %749 = vmatpush1.msra.mxu0 0.0
        %750 = vmatprep.subr.mxu0 0.0
        %751 = vmatpush1.msra.mxu0 0.0
        %752 = vmatprep.subr.mxu0 0.0
        %753 = vmatpush1.msra.mxu0 0.0
        %754 = vmatprep.subr.mxu0 0.0
        %755 = vmatpush1.msra.mxu0 0.0
        %756 = vmatprep.subr.mxu0 0.0
        %757 = vmatpush1.msra.mxu0 0.0
        %758 = vmatprep.subr.mxu0 0.0
        %759 = vmatpush1.msra.mxu0 0.0
        %760 = vmatprep.subr.mxu0 0.0
        %761 = vmatpush1.msra.mxu0 0.0
        %762 = vmatprep.subr.mxu0 0.0
        %763 = vmatpush1.msra.mxu0 0.0
        %764 = vmatprep.subr.mxu0 0.0
        %765 = vmatpush1.msra.mxu0 0.0
        %766 = vmatprep.subr.mxu0 0.0
        %767 = vmatpush1.msra.mxu0 0.0
        %768 = vmatprep.subr.mxu0 0.0
        %769 = vmatpush1.msra.mxu0 0.0
        %770 = vmatprep.mubr.f32.mxu0 0.0
        %771 = vmatmul.mubr.f32.gmra.mrb[0].mxu0 %v704
        %v772 = vpop.f32.mrb[0].mxu0
        %v773 = vadd.f32 %v702, %v772
        %v774 = vpop.f32.mrb[0].mxu0
        %775 = vdwg.mxu0
        %v777 = vrot.slane %v702, 1
        %v780 = vsel %vm473, %v468, 0
        %782 = vmatprep.subr.mxu0 0.0
        %783 = vmatpush1.msra.mxu0 %v698
        %784 = vmatprep.subr.mxu0 0.0
        %785 = vmatpush1.msra.mxu0 %v699
        %786 = vmatprep.subr.mxu0 0.0
        %787 = vmatpush1.msra.mxu0 %v700
        %788 = vmatprep.subr.mxu0 0.0
        %789 = vmatpush1.msra.mxu0 %v701
        %790 = vmatprep.subr.mxu0 0.0
        %791 = vmatpush1.msra.mxu0 0.0
        %792 = vmatprep.subr.mxu0 0.0
        %793 = vmatpush1.msra.mxu0 0.0
        %794 = vmatprep.subr.mxu0 0.0
        %795 = vmatpush1.msra.mxu0 0.0
        %796 = vmatprep.subr.mxu0 0.0
        %797 = vmatpush1.msra.mxu0 0.0
        %798 = vmatprep.subr.mxu0 0.0
        %799 = vmatpush1.msra.mxu0 0.0
        %800 = vmatprep.subr.mxu0 0.0
        %801 = vmatpush1.msra.mxu0 0.0
        %802 = vmatprep.subr.mxu0 0.0
        %803 = vmatpush1.msra.mxu0 0.0
        %804 = vmatprep.subr.mxu0 0.0
        %805 = vmatpush1.msra.mxu0 0.0
        %806 = vmatprep.subr.mxu0 0.0
        %807 = vmatpush1.msra.mxu0 0.0
        %808 = vmatprep.subr.mxu0 0.0
        %809 = vmatpush1.msra.mxu0 0.0
        %810 = vmatprep.subr.mxu0 0.0
        %811 = vmatpush1.msra.mxu0 0.0
        %812 = vmatprep.subr.mxu0 0.0
        %813 = vmatpush1.msra.mxu0 0.0
        %814 = vmatprep.subr.mxu0 0.0
        %815 = vmatpush1.msra.mxu0 0.0
        %816 = vmatprep.subr.mxu0 0.0
        %817 = vmatpush1.msra.mxu0 0.0
        %818 = vmatprep.subr.mxu0 0.0
        %819 = vmatpush1.msra.mxu0 0.0
        %820 = vmatprep.subr.mxu0 0.0
        %821 = vmatpush1.msra.mxu0 0.0
        %822 = vmatprep.subr.mxu0 0.0
        %823 = vmatpush1.msra.mxu0 0.0
        %824 = vmatprep.subr.mxu0 0.0
        %825 = vmatpush1.msra.mxu0 0.0
        %826 = vmatprep.subr.mxu0 0.0
        %827 = vmatpush1.msra.mxu0 0.0
        %828 = vmatprep.subr.mxu0 0.0
        %829 = vmatpush1.msra.mxu0 0.0
        %830 = vmatprep.subr.mxu0 0.0
        %831 = vmatpush1.msra.mxu0 0.0
        %832 = vmatprep.subr.mxu0 0.0
        %833 = vmatpush1.msra.mxu0 0.0
        %834 = vmatprep.subr.mxu0 0.0
        %835 = vmatpush1.msra.mxu0 0.0
        %836 = vmatprep.subr.mxu0 0.0
        %837 = vmatpush1.msra.mxu0 0.0
        %838 = vmatprep.subr.mxu0 0.0
        %839 = vmatpush1.msra.mxu0 0.0
        %840 = vmatprep.subr.mxu0 0.0
        %841 = vmatpush1.msra.mxu0 0.0
        %842 = vmatprep.subr.mxu0 0.0
        %843 = vmatpush1.msra.mxu0 0.0
        %844 = vmatprep.subr.mxu0 0.0
        %845 = vmatpush1.msra.mxu0 0.0
        %846 = vmatprep.mubr.f32.mxu0 0.0
        %847 = vmatmul.mubr.f32.gmra.mrb[0].mxu0 %v780
        %v848 = vpop.f32.mrb[0].mxu0
        %v849 = vadd.f32 %v777, %v848
        %v850 = vpop.f32.mrb[0].mxu0
        %851 = vdwg.mxu0
        %v852 = vadd.f32 %v773, %v849
        %v853 = vxor.u32 %v852, 2147483648
        %v854 = vmul.f32 %v853, 1.442695
        %v855 = vpow.pop %v854
        %v856 = vadd.f32 %v855, 1.0
        %v857 = vrcp.pop %v856
        %v858 = vmul.f32 1.0, %v857
        %860 = vrot.lane.b32.xlu0 %v849, 64
        %v861 = vpop.permute.xlu0 %860
        %v863 = vmul.f32 %v858, %v861
        %865 = vrot.lane.b32.xlu0 %v863, 64
        %v866 = vpop.permute.xlu0 %865
        %v868 = vadd.f32 %v773, %v866
        %v869 = vtanh.pop %v868
        %v870 = vsub.f32 1.0, %v858
        %872 = vrot.lane.b32.xlu0 %v869, 96
        %v873 = vpop.permute.xlu0 %872
        %v875 = vmul.f32 %v870, %v873
        %v876 = vlaneseq
        %v877 = vshrl.u32 %v876, 7
        %v878 = vsub.s32 0, %v877
        %v879 = vrot.slane %v468, %v878
        %880 = vrot.lane.b32.xlu0 %v879, 32
        %v881 = vpop.permute.xlu0 %880
        %v883 = vmul.f32 %v858, %v881
        %v884 = vadd.f32 %v875, %v883
        %886 = vrot.lane.b32.xlu0 %v884, 96
        %v887 = vpop.permute.xlu0 %886
        %vm889 = vcmask 253952
        %890 = vst.msk [vmem:[#allocation2] sm:$0x1] %vm889, %v887
        %p891 = scmp.eq.s32.totalorder %s24, 1
        // Predicated region
        $region65: #{attentive_fp_forward.5} parent=59 // pred_check
          %p892 = pneg %p891
        $region66: #{attentive_fp_forward.5} parent=59 // pred_check_branch
          %894 = sbr.rel (%p892) target = $region68
        $region67: #{attentive_fp_forward.5} parent=59 // pred_region
          %v895 = vld [vmem:[%s8] sm:$0xff]
          %v896 = vld [vmem:[%s8 + $0x8] sm:$0xff]
          %v897 = vld [vmem:[%s8 + $0x10] sm:$0xff]
          %v898 = vld [vmem:[%s8 + $0x18] sm:$0xff]
          %v899 = vld [vmem:[#allocation3] sm:$0x1]
          %v900 = vsel %vm473, %v887, 0
          %902 = vmatprep.subr.mxu0 0.0
          %903 = vmatpush1.msra.mxu0 %v895
          %904 = vmatprep.subr.mxu0 0.0
          %905 = vmatpush1.msra.mxu0 %v896
          %906 = vmatprep.subr.mxu0 0.0
          %907 = vmatpush1.msra.mxu0 %v897
          %908 = vmatprep.subr.mxu0 0.0
          %909 = vmatpush1.msra.mxu0 %v898
          %910 = vmatprep.subr.mxu0 0.0
          %911 = vmatpush1.msra.mxu0 0.0
          %912 = vmatprep.subr.mxu0 0.0
          %913 = vmatpush1.msra.mxu0 0.0
          %914 = vmatprep.subr.mxu0 0.0
          %915 = vmatpush1.msra.mxu0 0.0
          %916 = vmatprep.subr.mxu0 0.0
          %917 = vmatpush1.msra.mxu0 0.0
          %918 = vmatprep.subr.mxu0 0.0
          %919 = vmatpush1.msra.mxu0 0.0
          %920 = vmatprep.subr.mxu0 0.0
          %921 = vmatpush1.msra.mxu0 0.0
          %922 = vmatprep.subr.mxu0 0.0
          %923 = vmatpush1.msra.mxu0 0.0
          %924 = vmatprep.subr.mxu0 0.0
          %925 = vmatpush1.msra.mxu0 0.0
          %926 = vmatprep.subr.mxu0 0.0
          %927 = vmatpush1.msra.mxu0 0.0
          %928 = vmatprep.subr.mxu0 0.0
          %929 = vmatpush1.msra.mxu0 0.0
          %930 = vmatprep.subr.mxu0 0.0
          %931 = vmatpush1.msra.mxu0 0.0
          %932 = vmatprep.subr.mxu0 0.0
          %933 = vmatpush1.msra.mxu0 0.0
          %934 = vmatprep.subr.mxu0 0.0
          %935 = vmatpush1.msra.mxu0 0.0
          %936 = vmatprep.subr.mxu0 0.0
          %937 = vmatpush1.msra.mxu0 0.0
          %938 = vmatprep.subr.mxu0 0.0
          %939 = vmatpush1.msra.mxu0 0.0
          %940 = vmatprep.subr.mxu0 0.0
          %941 = vmatpush1.msra.mxu0 0.0
          %942 = vmatprep.subr.mxu0 0.0
          %943 = vmatpush1.msra.mxu0 0.0
          %944 = vmatprep.subr.mxu0 0.0
          %945 = vmatpush1.msra.mxu0 0.0
          %946 = vmatprep.subr.mxu0 0.0
          %947 = vmatpush1.msra.mxu0 0.0
          %948 = vmatprep.subr.mxu0 0.0
          %949 = vmatpush1.msra.mxu0 0.0
          %950 = vmatprep.subr.mxu0 0.0
          %951 = vmatpush1.msra.mxu0 0.0
          %952 = vmatprep.subr.mxu0 0.0
          %953 = vmatpush1.msra.mxu0 0.0
          %954 = vmatprep.subr.mxu0 0.0
          %955 = vmatpush1.msra.mxu0 0.0
          %956 = vmatprep.subr.mxu0 0.0
          %957 = vmatpush1.msra.mxu0 0.0
          %958 = vmatprep.subr.mxu0 0.0
          %959 = vmatpush1.msra.mxu0 0.0
          %960 = vmatprep.subr.mxu0 0.0
          %961 = vmatpush1.msra.mxu0 0.0
          %962 = vmatprep.subr.mxu0 0.0
          %963 = vmatpush1.msra.mxu0 0.0
          %964 = vmatprep.subr.mxu0 0.0
          %965 = vmatpush1.msra.mxu0 0.0
          %966 = vmatprep.mubr.f32.mxu0 0.0
          %967 = vmatmul.mubr.f32.gmra.mrb[0].mxu0 %v900
          %v968 = vpop.f32.mrb[0].mxu0
          %v969 = vadd.f32 %v899, %v968
          %v970 = vpop.f32.mrb[0].mxu0
          %971 = vdwg.mxu0
          %vm972 = vcmask 0
          %973 = vst.msk [vmem:[#allocation4] sm:$0x1] %vm972, %v969
        $region68: #{attentive_fp_forward.5} parent=59 // pred_fallthru
          _
        // Predicated region
        $region69: #{attentive_fp_forward.5} parent=59 // pred_check
          %p974 = pneg %p282
        $region70: #{attentive_fp_forward.5} parent=59 // pred_check_branch
          %976 = sbr.rel (%p974) target = $region72
        $region71: #{attentive_fp_forward.5} parent=59 // pred_region
          %s978 = ssub.s32 16, 16
          %979 = vsyncadd [#allocation5], %s978
          %s981 = sshll.u32 [#allocation4], 4
          %s982 = int_to_ptr.vmem [resolvable:$true] %s981
          %984 = dma.vmem_to_hbm [thread:$0]  %s982, 16, %s10, [#allocation5]
        $region72: #{attentive_fp_forward.5} parent=59 // pred_fallthru
          _
        // Predicated region
        $region73: #{attentive_fp_forward.5} parent=59 // pred_check
          %p985 = pneg %p282
        $region74: #{attentive_fp_forward.5} parent=59 // pred_check_branch
          %987 = sbr.rel (%p985) target = $region76
        $region75: #{attentive_fp_forward.5} parent=59 // pred_region
          %988 = dma.done [#allocation5], 16
        $region76: #{attentive_fp_forward.5} parent=59 // pred_fallthru
          _
      $region60: #{attentive_fp_forward.5} parent=5 // pred_fallthru
        _
      %p989 = scmp.le.s32.totalorder 2, %s19
      // Predicated region
      $region77: #{attentive_fp_forward.5} parent=5 // pred_check
        %p990 = pneg %p989
      $region78: #{attentive_fp_forward.5} parent=5 // pred_check_branch
        %992 = sbr.rel (%p990) target = $region80
      $region79: #{attentive_fp_forward.5} parent=5 // pred_region
        %s993 = ssub.s32 %s19, 2
      $region80: #{attentive_fp_forward.5} parent=5 // pred_fallthru
        _
    $region6: #{attentive_fp_forward.5} parent=1 // loop_footer
      %s23 = sadd.s32 1, %s19
    $region7: #{attentive_fp_forward.5} parent=1 // loop_footer_branch
      %18 = sbr.rel target = $region3
    $region8: #{attentive_fp_forward.5} parent=1 // loop_exit
      _
    %994 = vsyncpa [#allocation5], 1
    %s995 = scalar_lea.sflag [#allocation5], 1
    %996 = vsyncpa %s995, 1

</llo_original>
